<compile_context>
chip_gen: v5e
topology: v5e:2x2
jax: 0.10.0
libtpu: 0.0.40
codegen_flags: <defaults>
</compile_context>

<pallas_src>
import jax
import jax.numpy as jnp
from jax.experimental import pallas as pl
from jax.experimental.pallas import tpu as pltpu

KSIZES = (1, 2, 3, 5, 10)                   # feature_kernel keys
FEAT_PER_K = 64                             # feature_kernel values
NUM_EXPERT = 5
DOMAIN_NUM = 9
EXPERT_OUT = len(KSIZES) * FEAT_PER_K       # 320 (classifier input dim)
CONV_OUT = NUM_EXPERT * FEAT_PER_K          # 320 conv channels per (k, tap)
SHARED_PAD = 384                            # classifier input padded to 3*128 lanes

# Per kernel-size group: real width, 128-aligned padded width, column base.
GROUP_W = tuple(k * CONV_OUT for k in KSIZES)                       # 320..3200
GROUP_WPAD = tuple(((w + 127) // 128) * 128 for w in GROUP_W)       # 384..3200
GROUP_BASE = tuple(sum(GROUP_WPAD[:i]) for i in range(len(KSIZES)))
WCAT_COLS = sum(GROUP_WPAD)                                          # 6912


def _fast_plfnd_kernel(
    x_ref, mask_ref, dom_ref,
    att_w_ref, att_b_ref,
    gw1_ref, gb1_ref, gw2_ref, gb2_ref,
    pw_ref, pb_ref,
    wcat_ref, bcat_ref,
    cw1_ref, cb1_ref, cw2_ref, cb2_ref,
    prob_ref, shared_ref,
):
    x = x_ref[...]                                   # (BT, L, D) bf16
    BT, L, D = x.shape
    N = BT * L
    xf = x.astype(jnp.float32)                       # f32 copy for VPU math
    mask = mask_ref[...]                             # (BT, L)
    dom = dom_ref[...]                               # (BT, D)

    # ---------------- AttentionLayer: masked additive attention pooling ----
    # scores / softmax / weighted sum all on VPU+XLU (no M=1 MXU matmuls).
    scores = jnp.sum(xf * att_w_ref[...][None, :, :], axis=-1) + att_b_ref[...]
    scores = jnp.where(mask > 0.0, scores, -1e30)    # finite mask value: no NaNs
    sm = jnp.max(scores, axis=-1, keepdims=True)
    se = jnp.exp(scores - sm)
    p = se / jnp.sum(se, axis=-1, keepdims=True)     # (BT, L)
    feats = jnp.sum(p[:, :, None] * xf, axis=1)      # (BT, D) f32

    # ---------------- gate: Linear -> ReLU -> (Dropout) -> Linear -> Softmax
    # torch.cat([domain_embeddings, features], dim=-1): dom rows first.
    gate_in = jnp.concatenate([dom, feats], axis=-1).astype(jnp.bfloat16)   # (BT, 2D)
    h = jnp.dot(gate_in, gw1_ref[...], preferred_element_type=jnp.float32) + gb1_ref[...]
    h = jnp.maximum(h, 0.0)
    gl = (jnp.dot(h.astype(jnp.bfloat16), gw2_ref[...],
                  preferred_element_type=jnp.float32) + gb2_ref[...])
    gm = jnp.max(gl, axis=-1, keepdims=True)
    ge = jnp.exp(gl - gm)
    gate = ge / jnp.sum(ge, axis=-1, keepdims=True)  # (BT, 5)

    # ---------------- prob_classifier: Linear -> (Dropout) -> Softmax ------
    pll = (jnp.dot(feats.astype(jnp.bfloat16), pw_ref[...],
                   preferred_element_type=jnp.float32) + pb_ref[...])
    pm = jnp.max(pll, axis=-1, keepdims=True)
    pe = jnp.exp(pll - pm)
    prob = pe / jnp.sum(pe, axis=-1, keepdims=True)
    w = gate * prob                                  # (BT, 5) combined weights

    # Hoisted loop invariants (JAX does not CSE broadcast_in_dim).
    w_bcast = [jnp.broadcast_to(w[:, ei:ei + 1], (BT, FEAT_PER_K))
               for ei in range(NUM_EXPERT)]          # 5 x (BT, 64)
    pos = jax.lax.broadcasted_iota(jnp.int32, (N, 1), 0) % L
    bcat = bcat_ref[...]                             # (5, CONV_OUT)
    xflat = x.reshape(N, D)                          # (B*L, D) bf16

    # ---------------- conv experts: per-kernel-size matmul -> roll-add -----
    # -> mask -> global max-pool -> expert-weighted sum.  Nothing wider than
    # the current group's activation slab is ever live.
    shared_blocks = []
    for ki, k in enumerate(KSIZES):
        base = GROUP_BASE[ki]                        # 128-aligned column base
        wslab = wcat_ref[:, base:base + k * CONV_OUT]            # (D, k*320)
        zk = jnp.dot(xflat, wslab,
                     preferred_element_type=jnp.float32)          # (N, k*320)
        yk = zk[:, :CONV_OUT]
        for t in range(1, k):                        # tap recombination (XLU rolls)
            zt = zk[:, t * CONV_OUT:(t + 1) * CONV_OUT]
            yk = yk + pltpu.roll(zt, N - t, 0)       # yk[p] += z_t[p + t]
        # Positions p > L - k are invalid conv outputs (also covers any wrap
        # across batch rows): mask before the max-pool.
        yk = jnp.where(pos <= (L - k), yk, -1e30)
        pooled = jnp.max(yk.reshape(BT, L, CONV_OUT), axis=1) + bcat[ki:ki + 1, :]
        # Expert mixture on the VPU: shared_k[b, o] = sum_e w[b,e]*pooled[b, e*64+o]
        sk = w_bcast[0] * pooled[:, :FEAT_PER_K]
        for ei in range(1, NUM_EXPERT):
            sk = sk + w_bcast[ei] * pooled[:, ei * FEAT_PER_K:(ei + 1) * FEAT_PER_K]
        shared_blocks.append(sk)                     # (BT, 64)

    shared_blocks.append(jnp.zeros((BT, SHARED_PAD - EXPERT_OUT), jnp.float32))
    shared = jnp.concatenate(shared_blocks, axis=-1)  # (BT, 384) lane-dense
    shared_ref[...] = shared

    # ---------------- classifier: Linear -> ReLU -> (Dropout) -> Linear ----
    h1 = jnp.maximum(
        jnp.dot(shared.astype(jnp.bfloat16), cw1_ref[...],
                preferred_element_type=jnp.float32) + cb1_ref[...], 0.0)
    logit = (jnp.dot(h1.astype(jnp.bfloat16), cw2_ref[...],
                     preferred_element_type=jnp.float32) + cb2_ref[...])  # (BT, 1)
    prob_ref[...] = 1.0 / (1.0 + jnp.exp(-logit))    # exact sigmoid


# ----------------------------- wrapper-side constant builders ---------------
def _build_fused_conv_weights(params):
    """Concat per-(kernel_size, tap) conv weights; pad only at group boundaries."""
    blocks = []
    for ki, k in enumerate(KSIZES):
        wk = params[f"conv_w{k}"]                    # (k, D, CONV_OUT)
        g = jnp.concatenate([wk[t] for t in range(k)], axis=1)   # (D, k*320)
        pad = GROUP_WPAD[ki] - GROUP_W[ki]
        if pad:
            g = jnp.pad(g, ((0, 0), (0, pad)))
        blocks.append(g)
    wcat = jnp.concatenate(blocks, axis=1).astype(jnp.bfloat16)  # (D, WCAT_COLS)
    bcat = jnp.concatenate([params[f"conv_b{k}"] for k in KSIZES],
                           axis=0).astype(jnp.float32)           # (5, CONV_OUT)
    return wcat, bcat


def _choose_tiling(B, L, D, H):
    """Pick (batch_tile, vmem_limit_bytes) from the actual chip's VMEM."""
    try:
        vmem_cap = int(pltpu.get_tpu_info().vmem_capacity_bytes)
    except Exception:
        vmem_cap = 64 * 1024 * 1024                  # conservative (v7x per-core)
    vmem_limit = min(int(vmem_cap * 0.9), 120 * 1024 * 1024)

    # Resident weights (constant-index blocks are double-buffered), dominated by wcat.
    fixed = 2 * (D * WCAT_COLS * 2 +
                 4 * (2 * D * H + SHARED_PAD * H + (D + H) * NUM_EXPERT + 8 * D))
    # Per-sample live bytes: x in-buffers (bf16, double-buffered) + f32 upcast +
    # bf16 flat view + largest per-group slab (k=10: L x 3200 f32) + tap/accum.
    per_sample = L * (2 * 2 * D + 4 * D + 2 * D +
                      4 * KSIZES[-1] * CONV_OUT + 3 * 4 * CONV_OUT) + 8192
    budget = int(vmem_limit * 0.85) - fixed
    bt_cap = max(1, budget // per_sample)

    if B <= 8 or B % 8 != 0:
        bt = B
    else:
        divs = [t for t in range(8, B + 1, 8) if B % t == 0]
        # Prefer >= 2 grid steps (v7x megacore sharding), largest tile that fits.
        pref = ([t for t in divs if t <= bt_cap and (B // t) >= 2]
                or [t for t in divs if t <= bt_cap] or [divs[0]])
        bt = max(pref)
    return bt, vmem_limit


def fast_plfnd_forward(init_features, masks, category, params, *, batch_tile=None):
    """Returns (sigmoid(label_pred).squeeze(1), shared_features)."""
    B, L, D = init_features.shape
    assert L >= max(KSIZES), "sequence length must be >= the largest conv kernel (10)"
    H = params["gate_w1"].shape[1]

    bt_auto, vmem_limit = _choose_tiling(B, L, D, H)
    BT = bt_auto if batch_tile is None else batch_tile
    assert B % BT == 0 and (BT == B or BT % 8 == 0), "keep blocks (8,128)-friendly"

    # Embedding lookup is glue (gather) -> plain JAX.
    dom = jnp.take(params["domain_emb"], category, axis=0).astype(jnp.float32)

    wcat, bcat = _build_fused_conv_weights(params)
    cls_w1_pad = jnp.pad(params["cls_w1"], ((0, SHARED_PAD - EXPERT_OUT), (0, 0)))

    bf = lambda a: a.astype(jnp.bfloat16)
    inputs = [
        bf(init_features),                            # x as bf16 (half the DMA)
        masks.astype(jnp.float32),
        dom,
        params["att_w"].astype(jnp.float32), params["att_b"].astype(jnp.float32),
        bf(params["gate_w1"]), params["gate_b1"],
        bf(params["gate_w2"]), params["gate_b2"],
        bf(params["prob_w"]), params["prob_b"],
        wcat, bcat,
        bf(cls_w1_pad), params["cls_b1"],
        bf(params["cls_w2"]), params["cls_b2"],
    ]

    # Weights stay VMEM-resident across the batch grid (constant block index,
    # so their DMA happens once).
    def resident(a):
        return pl.BlockSpec(a.shape, lambda i: (0,) * a.ndim)

    in_specs = [
        pl.BlockSpec((BT, L, D), lambda i: (i, 0, 0)),    # x (batch-tiled)
        pl.BlockSpec((BT, L), lambda i: (i, 0)),          # masks
        pl.BlockSpec((BT, D), lambda i: (i, 0)),          # domain embeddings
    ] + [resident(a) for a in inputs[3:]]

    out_shape = (
        jax.ShapeDtypeStruct((B, 1), jnp.float32),        # sigmoid(label_pred)
        jax.ShapeDtypeStruct((B, SHARED_PAD), jnp.float32),  # shared_features (padded)
    )
    out_specs = (
        pl.BlockSpec((BT, 1), lambda i: (i, 0)),
        pl.BlockSpec((BT, SHARED_PAD), lambda i: (i, 0)),
    )

    probs, shared_pad = pl.pallas_call(
        _fast_plfnd_kernel,
        out_shape=out_shape,
        grid_spec=pltpu.PrefetchScalarGridSpec(
            num_scalar_prefetch=0,
            grid=(B // BT,),
            in_specs=in_specs,
            out_specs=out_specs,
        ),
        compiler_params=pltpu.CompilerParams(
            dimension_semantics=("parallel",),            # shards over 2 TCs on v7x
            vmem_limit_bytes=vmem_limit,
        ),
    )(*inputs)
    return probs[:, 0], shared_pad[:, :EXPERT_OUT]


def init_params(key, emb_dim, mlp_hidden):
    ks = jax.random.split(key, 32)
    i = iter(range(32))

    def w(shape, scale=0.05):
        return (scale * jax.random.normal(ks[next(i)], shape)).astype(jnp.float32)

    params = {
        "domain_emb": w((DOMAIN_NUM, emb_dim)),
        "att_w": w((1, emb_dim)),
        "att_b": w((1, 1)),
        "gate_w1": w((2 * emb_dim, mlp_hidden)),
        "gate_b1": w((1, mlp_hidden)),
        "gate_w2": w((mlp_hidden, NUM_EXPERT)),
        "gate_b2": w((1, NUM_EXPERT)),
        "prob_w": w((emb_dim, NUM_EXPERT)),
        "prob_b": w((1, NUM_EXPERT)),
        "cls_w1": w((EXPERT_OUT, mlp_hidden)),
        "cls_b1": w((1, mlp_hidden)),
        "cls_w2": w((mlp_hidden, 1)),
        "cls_b2": w((1, 1)),
    }
    for k in KSIZES:
        # conv weights stacked over experts along columns: col = e*64 + out_ch
        params[f"conv_w{k}"] = w((k, emb_dim, NUM_EXPERT * FEAT_PER_K))
        params[f"conv_b{k}"] = w((1, NUM_EXPERT * FEAT_PER_K))
    return params


if __name__ == "__main__":
    B, L, D, H = 2, 16, 32, 32          # batch, seq, emb_dim, mlp_dims[-1]
    key = jax.random.PRNGKey(0)
    k_feat, k_par = jax.random.split(key, 2)

    # init_features stands in for the frozen BERT output [B, L, D].
    init_features = jax.random.normal(k_feat, (B, L, D), jnp.float32)
    # ragged attention masks (sample 0: full length, sample 1: length 10)
    lengths = jnp.array([[L], [10]], jnp.int32)
    masks = (jnp.arange(L, dtype=jnp.int32)[None, :] < lengths).astype(jnp.float32)
    category = jnp.array([0, 3], jnp.int32)

    params = init_params(k_par, D, H)

    probs, shared = jax.jit(fast_plfnd_forward)(init_features, masks, category, params)
    jax.block_until_ready((probs, shared))
    assert probs.shape == (B,) and shared.shape == (B, EXPERT_OUT)
    assert bool(jnp.all(jnp.isfinite(probs))) and bool(jnp.all(jnp.isfinite(shared)))
    print("KERNEL_OK")
</pallas_src>

<mosaic_0001>
module attributes {stable_mosaic.version = 11 : i64} {
  func.func @_fast_plfnd_kernel(%arg0: i32, %arg1: memref<2x16x32xbf16, #tpu.memory_space<vmem>>, %arg2: memref<2x16xf32, #tpu.memory_space<vmem>>, %arg3: memref<2x32xf32, #tpu.memory_space<vmem>>, %arg4: memref<1x32xf32, #tpu.memory_space<vmem>>, %arg5: memref<1x1xf32, #tpu.memory_space<vmem>>, %arg6: memref<64x32xbf16, #tpu.memory_space<vmem>>, %arg7: memref<1x32xf32, #tpu.memory_space<vmem>>, %arg8: memref<32x5xbf16, #tpu.memory_space<vmem>>, %arg9: memref<1x5xf32, #tpu.memory_space<vmem>>, %arg10: memref<32x5xbf16, #tpu.memory_space<vmem>>, %arg11: memref<1x5xf32, #tpu.memory_space<vmem>>, %arg12: memref<32x6912xbf16, #tpu.memory_space<vmem>>, %arg13: memref<5x320xf32, #tpu.memory_space<vmem>>, %arg14: memref<384x32xbf16, #tpu.memory_space<vmem>>, %arg15: memref<1x32xf32, #tpu.memory_space<vmem>>, %arg16: memref<32x1xbf16, #tpu.memory_space<vmem>>, %arg17: memref<1x1xf32, #tpu.memory_space<vmem>>, %arg18: memref<2x1xf32, #tpu.memory_space<vmem>>, %arg19: memref<2x384xf32, #tpu.memory_space<vmem>>) attributes {dimension_semantics = [#tpu.dimension_semantics<parallel>], iteration_bounds = array<i64: 1>, scalar_prefetch = 0 : i64, scratch_operands = 0 : i64, tpu.core_type = #tpu.core_type<tc>, window_params = [{transform_indices = @transform_0, window_bounds = array<i64: 2, 16, 32>}, {transform_indices = @transform_1, window_bounds = array<i64: 2, 16>}, {transform_indices = @transform_2, window_bounds = array<i64: 2, 32>}, {pipeline_mode = #tpu.pipeline_mode<synchronous>, transform_indices = @transform_3, window_bounds = array<i64: 1, 32>}, {pipeline_mode = #tpu.pipeline_mode<synchronous>, transform_indices = @transform_4, window_bounds = array<i64: 1, 1>}, {pipeline_mode = #tpu.pipeline_mode<synchronous>, transform_indices = @transform_5, window_bounds = array<i64: 64, 32>}, {pipeline_mode = #tpu.pipeline_mode<synchronous>, transform_indices = @transform_6, window_bounds = array<i64: 1, 32>}, {pipeline_mode = #tpu.pipeline_mode<synchronous>, transform_indices = @transform_7, window_bounds = array<i64: 32, 5>}, {pipeline_mode = #tpu.pipeline_mode<synchronous>, transform_indices = @transform_8, window_bounds = array<i64: 1, 5>}, {pipeline_mode = #tpu.pipeline_mode<synchronous>, transform_indices = @transform_9, window_bounds = array<i64: 32, 5>}, {pipeline_mode = #tpu.pipeline_mode<synchronous>, transform_indices = @transform_10, window_bounds = array<i64: 1, 5>}, {pipeline_mode = #tpu.pipeline_mode<synchronous>, transform_indices = @transform_11, window_bounds = array<i64: 32, 6912>}, {pipeline_mode = #tpu.pipeline_mode<synchronous>, transform_indices = @transform_12, window_bounds = array<i64: 5, 320>}, {pipeline_mode = #tpu.pipeline_mode<synchronous>, transform_indices = @transform_13, window_bounds = array<i64: 384, 32>}, {pipeline_mode = #tpu.pipeline_mode<synchronous>, transform_indices = @transform_14, window_bounds = array<i64: 1, 32>}, {pipeline_mode = #tpu.pipeline_mode<synchronous>, transform_indices = @transform_15, window_bounds = array<i64: 32, 1>}, {pipeline_mode = #tpu.pipeline_mode<synchronous>, transform_indices = @transform_16, window_bounds = array<i64: 1, 1>}, {transform_indices = @transform_17, window_bounds = array<i64: 2, 1>}, {transform_indices = @transform_18, window_bounds = array<i64: 2, 384>}]} {
    %c0 = arith.constant 0 : index
    %c0_0 = arith.constant 0 : index
    %c0_1 = arith.constant 0 : index
    %0 = vector.load %arg1[%c0, %c0_0, %c0_1] : memref<2x16x32xbf16, #tpu.memory_space<vmem>>, vector<2x16x32xbf16>
    %1 = arith.extf %0 : vector<2x16x32xbf16> to vector<2x16x32xf32>
    %c0_2 = arith.constant 0 : index
    %c0_3 = arith.constant 0 : index
    %2 = vector.load %arg2[%c0_2, %c0_3] : memref<2x16xf32, #tpu.memory_space<vmem>>, vector<2x16xf32>
    %c0_4 = arith.constant 0 : index
    %c0_5 = arith.constant 0 : index
    %3 = vector.load %arg3[%c0_4, %c0_5] : memref<2x32xf32, #tpu.memory_space<vmem>>, vector<2x32xf32>
    %c0_6 = arith.constant 0 : index
    %c0_7 = arith.constant 0 : index
    %4 = vector.load %arg4[%c0_6, %c0_7] : memref<1x32xf32, #tpu.memory_space<vmem>>, vector<1x32xf32>
    %5 = vector.shape_cast %4 : vector<1x32xf32> to vector<1x1x32xf32>
    %6 = vector.broadcast %5 : vector<1x1x32xf32> to vector<2x16x32xf32>
    %7 = arith.mulf %1, %6 : vector<2x16x32xf32>
    %cst = arith.constant dense<0.000000e+00> : vector<2x16xf32>
    %8 = vector.multi_reduction <add>, %7, %cst [2] : vector<2x16x32xf32> to vector<2x16xf32>
    %c0_8 = arith.constant 0 : index
    %c0_9 = arith.constant 0 : index
    %9 = vector.load %arg5[%c0_8, %c0_9] : memref<1x1xf32, #tpu.memory_space<vmem>>, vector<1x1xf32>
    %10 = vector.broadcast %9 : vector<1x1xf32> to vector<2x16xf32>
    %11 = arith.addf %8, %10 : vector<2x16xf32>
    %cst_10 = arith.constant 0.000000e+00 : f32
    %12 = vector.broadcast %cst_10 : f32 to vector<2x16xf32>
    %13 = arith.cmpf ogt, %2, %12 : vector<2x16xf32>
    %cst_11 = arith.constant -1.000000e+30 : f32
    %14 = vector.broadcast %cst_11 : f32 to vector<2x16xf32>
    %15 = arith.select %13, %11, %14 : vector<2x16xi1>, vector<2x16xf32>
    %cst_12 = arith.constant dense<0xFF800000> : vector<2xf32>
    %16 = vector.multi_reduction <maximumf>, %15, %cst_12 [1] : vector<2x16xf32> to vector<2xf32>
    %17 = vector.shape_cast %16 : vector<2xf32> to vector<2x1xf32>
    %18 = vector.broadcast %17 : vector<2x1xf32> to vector<2x16xf32>
    %19 = arith.subf %15, %18 : vector<2x16xf32>
    %20 = math.exp %19 : vector<2x16xf32>
    %cst_13 = arith.constant dense<0.000000e+00> : vector<2xf32>
    %21 = vector.multi_reduction <add>, %20, %cst_13 [1] : vector<2x16xf32> to vector<2xf32>
    %22 = vector.shape_cast %21 : vector<2xf32> to vector<2x1xf32>
    %23 = vector.broadcast %22 : vector<2x1xf32> to vector<2x16xf32>
    %24 = arith.divf %20, %23 : vector<2x16xf32>
    %25 = vector.shape_cast %24 : vector<2x16xf32> to vector<2x16x1xf32>
    %26 = vector.broadcast %25 : vector<2x16x1xf32> to vector<2x16x32xf32>
    %27 = arith.mulf %26, %1 : vector<2x16x32xf32>
    %cst_14 = arith.constant dense<0.000000e+00> : vector<2x32xf32>
    %28 = vector.multi_reduction <add>, %27, %cst_14 [1] : vector<2x16x32xf32> to vector<2x32xf32>
    %29 = tpu.concatenate %3, %28 in 1 : vector<2x32xf32>, vector<2x32xf32> -> vector<2x64xf32>
    %30 = arith.truncf %29 : vector<2x64xf32> to vector<2x64xbf16>
    %c0_15 = arith.constant 0 : index
    %c0_16 = arith.constant 0 : index
    %31 = vector.load %arg6[%c0_15, %c0_16] : memref<64x32xbf16, #tpu.memory_space<vmem>>, vector<64x32xbf16>
    %cst_17 = arith.constant dense<0.000000e+00> : vector<2x32xf32>
    %32 = tpu.matmul %30, %31, %cst_17 {dimension_numbers = #tpu.dot_dimension_numbers<[1], [0], [0], [1], [0, 0, 1, 1], [], []>} : vector<2x64xbf16>, vector<64x32xbf16>, vector<2x32xf32> -> vector<2x32xf32>
    %c0_18 = arith.constant 0 : index
    %c0_19 = arith.constant 0 : index
    %33 = vector.load %arg7[%c0_18, %c0_19] : memref<1x32xf32, #tpu.memory_space<vmem>>, vector<1x32xf32>
    %34 = vector.broadcast %33 : vector<1x32xf32> to vector<2x32xf32>
    %35 = arith.addf %32, %34 : vector<2x32xf32>
    %cst_20 = arith.constant 0.000000e+00 : f32
    %36 = vector.broadcast %cst_20 : f32 to vector<2x32xf32>
    %37 = arith.maximumf %35, %36 : vector<2x32xf32>
    %38 = arith.truncf %37 : vector<2x32xf32> to vector<2x32xbf16>
    %c0_21 = arith.constant 0 : index
    %c0_22 = arith.constant 0 : index
    %39 = vector.load %arg8[%c0_21, %c0_22] : memref<32x5xbf16, #tpu.memory_space<vmem>>, vector<32x5xbf16>
    %cst_23 = arith.constant dense<0.000000e+00> : vector<2x5xf32>
    %40 = tpu.matmul %38, %39, %cst_23 {dimension_numbers = #tpu.dot_dimension_numbers<[1], [0], [0], [1], [0, 0, 1, 1], [], []>} : vector<2x32xbf16>, vector<32x5xbf16>, vector<2x5xf32> -> vector<2x5xf32>
    %c0_24 = arith.constant 0 : index
    %c0_25 = arith.constant 0 : index
    %41 = vector.load %arg9[%c0_24, %c0_25] : memref<1x5xf32, #tpu.memory_space<vmem>>, vector<1x5xf32>
    %42 = vector.broadcast %41 : vector<1x5xf32> to vector<2x5xf32>
    %43 = arith.addf %40, %42 : vector<2x5xf32>
    %cst_26 = arith.constant dense<0xFF800000> : vector<2xf32>
    %44 = vector.multi_reduction <maximumf>, %43, %cst_26 [1] : vector<2x5xf32> to vector<2xf32>
    %45 = vector.shape_cast %44 : vector<2xf32> to vector<2x1xf32>
    %46 = vector.broadcast %45 : vector<2x1xf32> to vector<2x5xf32>
    %47 = arith.subf %43, %46 : vector<2x5xf32>
    %48 = math.exp %47 : vector<2x5xf32>
    %cst_27 = arith.constant dense<0.000000e+00> : vector<2xf32>
    %49 = vector.multi_reduction <add>, %48, %cst_27 [1] : vector<2x5xf32> to vector<2xf32>
    %50 = vector.shape_cast %49 : vector<2xf32> to vector<2x1xf32>
    %51 = vector.broadcast %50 : vector<2x1xf32> to vector<2x5xf32>
    %52 = arith.divf %48, %51 : vector<2x5xf32>
    %53 = arith.truncf %28 : vector<2x32xf32> to vector<2x32xbf16>
    %c0_28 = arith.constant 0 : index
    %c0_29 = arith.constant 0 : index
    %54 = vector.load %arg10[%c0_28, %c0_29] : memref<32x5xbf16, #tpu.memory_space<vmem>>, vector<32x5xbf16>
    %cst_30 = arith.constant dense<0.000000e+00> : vector<2x5xf32>
    %55 = tpu.matmul %53, %54, %cst_30 {dimension_numbers = #tpu.dot_dimension_numbers<[1], [0], [0], [1], [0, 0, 1, 1], [], []>} : vector<2x32xbf16>, vector<32x5xbf16>, vector<2x5xf32> -> vector<2x5xf32>
    %c0_31 = arith.constant 0 : index
    %c0_32 = arith.constant 0 : index
    %56 = vector.load %arg11[%c0_31, %c0_32] : memref<1x5xf32, #tpu.memory_space<vmem>>, vector<1x5xf32>
    %57 = vector.broadcast %56 : vector<1x5xf32> to vector<2x5xf32>
    %58 = arith.addf %55, %57 : vector<2x5xf32>
    %cst_33 = arith.constant dense<0xFF800000> : vector<2xf32>
    %59 = vector.multi_reduction <maximumf>, %58, %cst_33 [1] : vector<2x5xf32> to vector<2xf32>
    %60 = vector.shape_cast %59 : vector<2xf32> to vector<2x1xf32>
    %61 = vector.broadcast %60 : vector<2x1xf32> to vector<2x5xf32>
    %62 = arith.subf %58, %61 : vector<2x5xf32>
    %63 = math.exp %62 : vector<2x5xf32>
    %cst_34 = arith.constant dense<0.000000e+00> : vector<2xf32>
    %64 = vector.multi_reduction <add>, %63, %cst_34 [1] : vector<2x5xf32> to vector<2xf32>
    %65 = vector.shape_cast %64 : vector<2xf32> to vector<2x1xf32>
    %66 = vector.broadcast %65 : vector<2x1xf32> to vector<2x5xf32>
    %67 = arith.divf %63, %66 : vector<2x5xf32>
    %68 = arith.mulf %52, %67 : vector<2x5xf32>
    %69 = vector.extract_strided_slice %68 {offsets = [0, 0], sizes = [2, 1], strides = [1, 1]} : vector<2x5xf32> to vector<2x1xf32>
    %70 = vector.shape_cast %69 : vector<2x1xf32> to vector<2x1xf32>
    %71 = vector.broadcast %70 : vector<2x1xf32> to vector<2x64xf32>
    %72 = vector.extract_strided_slice %68 {offsets = [0, 1], sizes = [2, 1], strides = [1, 1]} : vector<2x5xf32> to vector<2x1xf32>
    %73 = vector.shape_cast %72 : vector<2x1xf32> to vector<2x1xf32>
    %74 = vector.broadcast %73 : vector<2x1xf32> to vector<2x64xf32>
    %75 = vector.extract_strided_slice %68 {offsets = [0, 2], sizes = [2, 1], strides = [1, 1]} : vector<2x5xf32> to vector<2x1xf32>
    %76 = vector.shape_cast %75 : vector<2x1xf32> to vector<2x1xf32>
    %77 = vector.broadcast %76 : vector<2x1xf32> to vector<2x64xf32>
    %78 = vector.extract_strided_slice %68 {offsets = [0, 3], sizes = [2, 1], strides = [1, 1]} : vector<2x5xf32> to vector<2x1xf32>
    %79 = vector.shape_cast %78 : vector<2x1xf32> to vector<2x1xf32>
    %80 = vector.broadcast %79 : vector<2x1xf32> to vector<2x64xf32>
    %81 = vector.extract_strided_slice %68 {offsets = [0, 4], sizes = [2, 1], strides = [1, 1]} : vector<2x5xf32> to vector<2x1xf32>
    %82 = vector.shape_cast %81 : vector<2x1xf32> to vector<2x1xf32>
    %83 = vector.broadcast %82 : vector<2x1xf32> to vector<2x64xf32>
    %84 = tpu.iota {dimensions = array<i32: 0>} : vector<32x1xi32>
    %c16_i32 = arith.constant 16 : i32
    %c0_i32 = arith.constant 0 : i32
    %85 = arith.cmpi eq, %c16_i32, %c0_i32 : i32
    %c1_i32 = arith.constant 1 : i32
    %86 = arith.select %85, %c1_i32, %c16_i32 : i32
    %87 = vector.broadcast %86 : i32 to vector<32x1xi32>
    %88 = arith.remsi %84, %87 : vector<32x1xi32>
    %c0_i32_35 = arith.constant 0 : i32
    %89 = vector.broadcast %c0_i32_35 : i32 to vector<32x1xi32>
    %90 = arith.cmpi ne, %88, %89 : vector<32x1xi32>
    %c0_i32_36 = arith.constant 0 : i32
    %91 = vector.broadcast %c0_i32_36 : i32 to vector<32x1xi32>
    %92 = arith.cmpi slt, %88, %91 : vector<32x1xi32>
    %c0_i32_37 = arith.constant 0 : i32
    %93 = arith.cmpi slt, %86, %c0_i32_37 : i32
    %94 = vector.broadcast %93 : i1 to vector<32x1xi1>
    %95 = vector.broadcast %94 : vector<32x1xi1> to vector<32x1xi1>
    %96 = arith.xori %92, %95 : vector<32x1xi1>
    %97 = arith.andi %96, %90 : vector<32x1xi1>
    %98 = vector.broadcast %86 : i32 to vector<32x1xi32>
    %99 = arith.addi %88, %98 : vector<32x1xi32>
    %100 = arith.select %97, %99, %88 : vector<32x1xi1>, vector<32x1xi32>
    %c0_38 = arith.constant 0 : index
    %c0_39 = arith.constant 0 : index
    %101 = vector.load %arg13[%c0_38, %c0_39] : memref<5x320xf32, #tpu.memory_space<vmem>>, vector<5x320xf32>
    %102 = vector.shape_cast %0 : vector<2x16x32xbf16> to vector<32x32xbf16>
    %c0_40 = arith.constant 0 : index
    %c0_41 = arith.constant 0 : index
    %103 = vector.load %arg12[%c0_40, %c0_41] : memref<32x6912xbf16, #tpu.memory_space<vmem>>, vector<32x320xbf16>
    %cst_42 = arith.constant dense<0.000000e+00> : vector<32x320xf32>
    %104 = tpu.matmul %102, %103, %cst_42 {dimension_numbers = #tpu.dot_dimension_numbers<[1], [0], [0], [1], [0, 0, 1, 1], [], []>} : vector<32x32xbf16>, vector<32x320xbf16>, vector<32x320xf32> -> vector<32x320xf32>
    %c15_i32 = arith.constant 15 : i32
    %105 = vector.broadcast %c15_i32 : i32 to vector<32x1xi32>
    %106 = arith.cmpi sle, %100, %105 : vector<32x1xi32>
    %cst_43 = arith.constant -1.000000e+30 : f32
    %107 = vector.shape_cast %106 : vector<32x1xi1> to vector<32x1xi1>
    %108 = vector.broadcast %107 : vector<32x1xi1> to vector<32x320xi1>
    %109 = vector.broadcast %cst_43 : f32 to vector<32x320xf32>
    %110 = arith.select %108, %104, %109 : vector<32x320xi1>, vector<32x320xf32>
    %111 = vector.shape_cast %110 : vector<32x320xf32> to vector<2x16x320xf32>
    %cst_44 = arith.constant dense<0xFF800000> : vector<2x320xf32>
    %112 = vector.multi_reduction <maximumf>, %111, %cst_44 [1] : vector<2x16x320xf32> to vector<2x320xf32>
    %113 = vector.extract_strided_slice %101 {offsets = [0, 0], sizes = [1, 320], strides = [1, 1]} : vector<5x320xf32> to vector<1x320xf32>
    %114 = vector.broadcast %113 : vector<1x320xf32> to vector<2x320xf32>
    %115 = arith.addf %112, %114 : vector<2x320xf32>
    %116 = vector.extract_strided_slice %115 {offsets = [0, 0], sizes = [2, 64], strides = [1, 1]} : vector<2x320xf32> to vector<2x64xf32>
    %117 = arith.mulf %71, %116 : vector<2x64xf32>
    %118 = vector.extract_strided_slice %115 {offsets = [0, 64], sizes = [2, 64], strides = [1, 1]} : vector<2x320xf32> to vector<2x64xf32>
    %119 = arith.mulf %74, %118 : vector<2x64xf32>
    %120 = arith.addf %117, %119 : vector<2x64xf32>
    %121 = vector.extract_strided_slice %115 {offsets = [0, 128], sizes = [2, 64], strides = [1, 1]} : vector<2x320xf32> to vector<2x64xf32>
    %122 = arith.mulf %77, %121 : vector<2x64xf32>
    %123 = arith.addf %120, %122 : vector<2x64xf32>
    %124 = vector.extract_strided_slice %115 {offsets = [0, 192], sizes = [2, 64], strides = [1, 1]} : vector<2x320xf32> to vector<2x64xf32>
    %125 = arith.mulf %80, %124 : vector<2x64xf32>
    %126 = arith.addf %123, %125 : vector<2x64xf32>
    %127 = vector.extract_strided_slice %115 {offsets = [0, 256], sizes = [2, 64], strides = [1, 1]} : vector<2x320xf32> to vector<2x64xf32>
    %128 = arith.mulf %83, %127 : vector<2x64xf32>
    %129 = arith.addf %126, %128 : vector<2x64xf32>
    %c0_45 = arith.constant 0 : index
    %c384 = arith.constant 384 : index
    %130 = vector.load %arg12[%c0_45, %c384] : memref<32x6912xbf16, #tpu.memory_space<vmem>>, vector<32x640xbf16>
    %cst_46 = arith.constant dense<0.000000e+00> : vector<32x640xf32>
    %131 = tpu.matmul %102, %130, %cst_46 {dimension_numbers = #tpu.dot_dimension_numbers<[1], [0], [0], [1], [0, 0, 1, 1], [], []>} : vector<32x32xbf16>, vector<32x640xbf16>, vector<32x640xf32> -> vector<32x640xf32>
    %132 = vector.extract_strided_slice %131 {offsets = [0, 0], sizes = [32, 320], strides = [1, 1]} : vector<32x640xf32> to vector<32x320xf32>
    %133 = vector.extract_strided_slice %131 {offsets = [0, 320], sizes = [32, 320], strides = [1, 1]} : vector<32x640xf32> to vector<32x320xf32>
    %c31_i32 = arith.constant 31 : i32
    %134 = tpu.dynamic_rotate %133 by %c31_i32 dim 0 : vector<32x320xf32>, i32 -> vector<32x320xf32>
    %135 = arith.addf %132, %134 : vector<32x320xf32>
    %c14_i32 = arith.constant 14 : i32
    %136 = vector.broadcast %c14_i32 : i32 to vector<32x1xi32>
    %137 = arith.cmpi sle, %100, %136 : vector<32x1xi32>
    %cst_47 = arith.constant -1.000000e+30 : f32
    %138 = vector.shape_cast %137 : vector<32x1xi1> to vector<32x1xi1>
    %139 = vector.broadcast %138 : vector<32x1xi1> to vector<32x320xi1>
    %140 = vector.broadcast %cst_47 : f32 to vector<32x320xf32>
    %141 = arith.select %139, %135, %140 : vector<32x320xi1>, vector<32x320xf32>
    %142 = vector.shape_cast %141 : vector<32x320xf32> to vector<2x16x320xf32>
    %cst_48 = arith.constant dense<0xFF800000> : vector<2x320xf32>
    %143 = vector.multi_reduction <maximumf>, %142, %cst_48 [1] : vector<2x16x320xf32> to vector<2x320xf32>
    %144 = vector.extract_strided_slice %101 {offsets = [1, 0], sizes = [1, 320], strides = [1, 1]} : vector<5x320xf32> to vector<1x320xf32>
    %145 = vector.broadcast %144 : vector<1x320xf32> to vector<2x320xf32>
    %146 = arith.addf %143, %145 : vector<2x320xf32>
    %147 = vector.extract_strided_slice %146 {offsets = [0, 0], sizes = [2, 64], strides = [1, 1]} : vector<2x320xf32> to vector<2x64xf32>
    %148 = arith.mulf %71, %147 : vector<2x64xf32>
    %149 = vector.extract_strided_slice %146 {offsets = [0, 64], sizes = [2, 64], strides = [1, 1]} : vector<2x320xf32> to vector<2x64xf32>
    %150 = arith.mulf %74, %149 : vector<2x64xf32>
    %151 = arith.addf %148, %150 : vector<2x64xf32>
    %152 = vector.extract_strided_slice %146 {offsets = [0, 128], sizes = [2, 64], strides = [1, 1]} : vector<2x320xf32> to vector<2x64xf32>
    %153 = arith.mulf %77, %152 : vector<2x64xf32>
    %154 = arith.addf %151, %153 : vector<2x64xf32>
    %155 = vector.extract_strided_slice %146 {offsets = [0, 192], sizes = [2, 64], strides = [1, 1]} : vector<2x320xf32> to vector<2x64xf32>
    %156 = arith.mulf %80, %155 : vector<2x64xf32>
    %157 = arith.addf %154, %156 : vector<2x64xf32>
    %158 = vector.extract_strided_slice %146 {offsets = [0, 256], sizes = [2, 64], strides = [1, 1]} : vector<2x320xf32> to vector<2x64xf32>
    %159 = arith.mulf %83, %158 : vector<2x64xf32>
    %160 = arith.addf %157, %159 : vector<2x64xf32>
    %c0_49 = arith.constant 0 : index
    %c1024 = arith.constant 1024 : index
    %161 = vector.load %arg12[%c0_49, %c1024] : memref<32x6912xbf16, #tpu.memory_space<vmem>>, vector<32x960xbf16>
    %cst_50 = arith.constant dense<0.000000e+00> : vector<32x960xf32>
    %162 = tpu.matmul %102, %161, %cst_50 {dimension_numbers = #tpu.dot_dimension_numbers<[1], [0], [0], [1], [0, 0, 1, 1], [], []>} : vector<32x32xbf16>, vector<32x960xbf16>, vector<32x960xf32> -> vector<32x960xf32>
    %163 = vector.extract_strided_slice %162 {offsets = [0, 0], sizes = [32, 320], strides = [1, 1]} : vector<32x960xf32> to vector<32x320xf32>
    %164 = vector.extract_strided_slice %162 {offsets = [0, 320], sizes = [32, 320], strides = [1, 1]} : vector<32x960xf32> to vector<32x320xf32>
    %c31_i32_51 = arith.constant 31 : i32
    %165 = tpu.dynamic_rotate %164 by %c31_i32_51 dim 0 : vector<32x320xf32>, i32 -> vector<32x320xf32>
    %166 = arith.addf %163, %165 : vector<32x320xf32>
    %167 = vector.extract_strided_slice %162 {offsets = [0, 640], sizes = [32, 320], strides = [1, 1]} : vector<32x960xf32> to vector<32x320xf32>
    %c30_i32 = arith.constant 30 : i32
    %168 = tpu.dynamic_rotate %167 by %c30_i32 dim 0 : vector<32x320xf32>, i32 -> vector<32x320xf32>
    %169 = arith.addf %166, %168 : vector<32x320xf32>
    %c13_i32 = arith.constant 13 : i32
    %170 = vector.broadcast %c13_i32 : i32 to vector<32x1xi32>
    %171 = arith.cmpi sle, %100, %170 : vector<32x1xi32>
    %cst_52 = arith.constant -1.000000e+30 : f32
    %172 = vector.shape_cast %171 : vector<32x1xi1> to vector<32x1xi1>
    %173 = vector.broadcast %172 : vector<32x1xi1> to vector<32x320xi1>
    %174 = vector.broadcast %cst_52 : f32 to vector<32x320xf32>
    %175 = arith.select %173, %169, %174 : vector<32x320xi1>, vector<32x320xf32>
    %176 = vector.shape_cast %175 : vector<32x320xf32> to vector<2x16x320xf32>
    %cst_53 = arith.constant dense<0xFF800000> : vector<2x320xf32>
    %177 = vector.multi_reduction <maximumf>, %176, %cst_53 [1] : vector<2x16x320xf32> to vector<2x320xf32>
    %178 = vector.extract_strided_slice %101 {offsets = [2, 0], sizes = [1, 320], strides = [1, 1]} : vector<5x320xf32> to vector<1x320xf32>
    %179 = vector.broadcast %178 : vector<1x320xf32> to vector<2x320xf32>
    %180 = arith.addf %177, %179 : vector<2x320xf32>
    %181 = vector.extract_strided_slice %180 {offsets = [0, 0], sizes = [2, 64], strides = [1, 1]} : vector<2x320xf32> to vector<2x64xf32>
    %182 = arith.mulf %71, %181 : vector<2x64xf32>
    %183 = vector.extract_strided_slice %180 {offsets = [0, 64], sizes = [2, 64], strides = [1, 1]} : vector<2x320xf32> to vector<2x64xf32>
    %184 = arith.mulf %74, %183 : vector<2x64xf32>
    %185 = arith.addf %182, %184 : vector<2x64xf32>
    %186 = vector.extract_strided_slice %180 {offsets = [0, 128], sizes = [2, 64], strides = [1, 1]} : vector<2x320xf32> to vector<2x64xf32>
    %187 = arith.mulf %77, %186 : vector<2x64xf32>
    %188 = arith.addf %185, %187 : vector<2x64xf32>
    %189 = vector.extract_strided_slice %180 {offsets = [0, 192], sizes = [2, 64], strides = [1, 1]} : vector<2x320xf32> to vector<2x64xf32>
    %190 = arith.mulf %80, %189 : vector<2x64xf32>
    %191 = arith.addf %188, %190 : vector<2x64xf32>
    %192 = vector.extract_strided_slice %180 {offsets = [0, 256], sizes = [2, 64], strides = [1, 1]} : vector<2x320xf32> to vector<2x64xf32>
    %193 = arith.mulf %83, %192 : vector<2x64xf32>
    %194 = arith.addf %191, %193 : vector<2x64xf32>
    %c0_54 = arith.constant 0 : index
    %c2048 = arith.constant 2048 : index
    %195 = vector.load %arg12[%c0_54, %c2048] : memref<32x6912xbf16, #tpu.memory_space<vmem>>, vector<32x1600xbf16>
    %cst_55 = arith.constant dense<0.000000e+00> : vector<32x1600xf32>
    %196 = tpu.matmul %102, %195, %cst_55 {dimension_numbers = #tpu.dot_dimension_numbers<[1], [0], [0], [1], [0, 0, 1, 1], [], []>} : vector<32x32xbf16>, vector<32x1600xbf16>, vector<32x1600xf32> -> vector<32x1600xf32>
    %197 = vector.extract_strided_slice %196 {offsets = [0, 0], sizes = [32, 320], strides = [1, 1]} : vector<32x1600xf32> to vector<32x320xf32>
    %198 = vector.extract_strided_slice %196 {offsets = [0, 320], sizes = [32, 320], strides = [1, 1]} : vector<32x1600xf32> to vector<32x320xf32>
    %c31_i32_56 = arith.constant 31 : i32
    %199 = tpu.dynamic_rotate %198 by %c31_i32_56 dim 0 : vector<32x320xf32>, i32 -> vector<32x320xf32>
    %200 = arith.addf %197, %199 : vector<32x320xf32>
    %201 = vector.extract_strided_slice %196 {offsets = [0, 640], sizes = [32, 320], strides = [1, 1]} : vector<32x1600xf32> to vector<32x320xf32>
    %c30_i32_57 = arith.constant 30 : i32
    %202 = tpu.dynamic_rotate %201 by %c30_i32_57 dim 0 : vector<32x320xf32>, i32 -> vector<32x320xf32>
    %203 = arith.addf %200, %202 : vector<32x320xf32>
    %204 = vector.extract_strided_slice %196 {offsets = [0, 960], sizes = [32, 320], strides = [1, 1]} : vector<32x1600xf32> to vector<32x320xf32>
    %c29_i32 = arith.constant 29 : i32
    %205 = tpu.dynamic_rotate %204 by %c29_i32 dim 0 : vector<32x320xf32>, i32 -> vector<32x320xf32>
    %206 = arith.addf %203, %205 : vector<32x320xf32>
    %207 = vector.extract_strided_slice %196 {offsets = [0, 1280], sizes = [32, 320], strides = [1, 1]} : vector<32x1600xf32> to vector<32x320xf32>
    %c28_i32 = arith.constant 28 : i32
    %208 = tpu.dynamic_rotate %207 by %c28_i32 dim 0 : vector<32x320xf32>, i32 -> vector<32x320xf32>
    %209 = arith.addf %206, %208 : vector<32x320xf32>
    %c11_i32 = arith.constant 11 : i32
    %210 = vector.broadcast %c11_i32 : i32 to vector<32x1xi32>
    %211 = arith.cmpi sle, %100, %210 : vector<32x1xi32>
    %cst_58 = arith.constant -1.000000e+30 : f32
    %212 = vector.shape_cast %211 : vector<32x1xi1> to vector<32x1xi1>
    %213 = vector.broadcast %212 : vector<32x1xi1> to vector<32x320xi1>
    %214 = vector.broadcast %cst_58 : f32 to vector<32x320xf32>
    %215 = arith.select %213, %209, %214 : vector<32x320xi1>, vector<32x320xf32>
    %216 = vector.shape_cast %215 : vector<32x320xf32> to vector<2x16x320xf32>
    %cst_59 = arith.constant dense<0xFF800000> : vector<2x320xf32>
    %217 = vector.multi_reduction <maximumf>, %216, %cst_59 [1] : vector<2x16x320xf32> to vector<2x320xf32>
    %218 = vector.extract_strided_slice %101 {offsets = [3, 0], sizes = [1, 320], strides = [1, 1]} : vector<5x320xf32> to vector<1x320xf32>
    %219 = vector.broadcast %218 : vector<1x320xf32> to vector<2x320xf32>
    %220 = arith.addf %217, %219 : vector<2x320xf32>
    %221 = vector.extract_strided_slice %220 {offsets = [0, 0], sizes = [2, 64], strides = [1, 1]} : vector<2x320xf32> to vector<2x64xf32>
    %222 = arith.mulf %71, %221 : vector<2x64xf32>
    %223 = vector.extract_strided_slice %220 {offsets = [0, 64], sizes = [2, 64], strides = [1, 1]} : vector<2x320xf32> to vector<2x64xf32>
    %224 = arith.mulf %74, %223 : vector<2x64xf32>
    %225 = arith.addf %222, %224 : vector<2x64xf32>
    %226 = vector.extract_strided_slice %220 {offsets = [0, 128], sizes = [2, 64], strides = [1, 1]} : vector<2x320xf32> to vector<2x64xf32>
    %227 = arith.mulf %77, %226 : vector<2x64xf32>
    %228 = arith.addf %225, %227 : vector<2x64xf32>
    %229 = vector.extract_strided_slice %220 {offsets = [0, 192], sizes = [2, 64], strides = [1, 1]} : vector<2x320xf32> to vector<2x64xf32>
    %230 = arith.mulf %80, %229 : vector<2x64xf32>
    %231 = arith.addf %228, %230 : vector<2x64xf32>
    %232 = vector.extract_strided_slice %220 {offsets = [0, 256], sizes = [2, 64], strides = [1, 1]} : vector<2x320xf32> to vector<2x64xf32>
    %233 = arith.mulf %83, %232 : vector<2x64xf32>
    %234 = arith.addf %231, %233 : vector<2x64xf32>
    %c0_60 = arith.constant 0 : index
    %c3712 = arith.constant 3712 : index
    %235 = vector.load %arg12[%c0_60, %c3712] : memref<32x6912xbf16, #tpu.memory_space<vmem>>, vector<32x3200xbf16>
    %cst_61 = arith.constant dense<0.000000e+00> : vector<32x3200xf32>
    %236 = tpu.matmul %102, %235, %cst_61 {dimension_numbers = #tpu.dot_dimension_numbers<[1], [0], [0], [1], [0, 0, 1, 1], [], []>} : vector<32x32xbf16>, vector<32x3200xbf16>, vector<32x3200xf32> -> vector<32x3200xf32>
    %237 = vector.extract_strided_slice %236 {offsets = [0, 0], sizes = [32, 320], strides = [1, 1]} : vector<32x3200xf32> to vector<32x320xf32>
    %238 = vector.extract_strided_slice %236 {offsets = [0, 320], sizes = [32, 320], strides = [1, 1]} : vector<32x3200xf32> to vector<32x320xf32>
    %c31_i32_62 = arith.constant 31 : i32
    %239 = tpu.dynamic_rotate %238 by %c31_i32_62 dim 0 : vector<32x320xf32>, i32 -> vector<32x320xf32>
    %240 = arith.addf %237, %239 : vector<32x320xf32>
    %241 = vector.extract_strided_slice %236 {offsets = [0, 640], sizes = [32, 320], strides = [1, 1]} : vector<32x3200xf32> to vector<32x320xf32>
    %c30_i32_63 = arith.constant 30 : i32
    %242 = tpu.dynamic_rotate %241 by %c30_i32_63 dim 0 : vector<32x320xf32>, i32 -> vector<32x320xf32>
    %243 = arith.addf %240, %242 : vector<32x320xf32>
    %244 = vector.extract_strided_slice %236 {offsets = [0, 960], sizes = [32, 320], strides = [1, 1]} : vector<32x3200xf32> to vector<32x320xf32>
    %c29_i32_64 = arith.constant 29 : i32
    %245 = tpu.dynamic_rotate %244 by %c29_i32_64 dim 0 : vector<32x320xf32>, i32 -> vector<32x320xf32>
    %246 = arith.addf %243, %245 : vector<32x320xf32>
    %247 = vector.extract_strided_slice %236 {offsets = [0, 1280], sizes = [32, 320], strides = [1, 1]} : vector<32x3200xf32> to vector<32x320xf32>
    %c28_i32_65 = arith.constant 28 : i32
    %248 = tpu.dynamic_rotate %247 by %c28_i32_65 dim 0 : vector<32x320xf32>, i32 -> vector<32x320xf32>
    %249 = arith.addf %246, %248 : vector<32x320xf32>
    %250 = vector.extract_strided_slice %236 {offsets = [0, 1600], sizes = [32, 320], strides = [1, 1]} : vector<32x3200xf32> to vector<32x320xf32>
    %c27_i32 = arith.constant 27 : i32
    %251 = tpu.dynamic_rotate %250 by %c27_i32 dim 0 : vector<32x320xf32>, i32 -> vector<32x320xf32>
    %252 = arith.addf %249, %251 : vector<32x320xf32>
    %253 = vector.extract_strided_slice %236 {offsets = [0, 1920], sizes = [32, 320], strides = [1, 1]} : vector<32x3200xf32> to vector<32x320xf32>
    %c26_i32 = arith.constant 26 : i32
    %254 = tpu.dynamic_rotate %253 by %c26_i32 dim 0 : vector<32x320xf32>, i32 -> vector<32x320xf32>
    %255 = arith.addf %252, %254 : vector<32x320xf32>
    %256 = vector.extract_strided_slice %236 {offsets = [0, 2240], sizes = [32, 320], strides = [1, 1]} : vector<32x3200xf32> to vector<32x320xf32>
    %c25_i32 = arith.constant 25 : i32
    %257 = tpu.dynamic_rotate %256 by %c25_i32 dim 0 : vector<32x320xf32>, i32 -> vector<32x320xf32>
    %258 = arith.addf %255, %257 : vector<32x320xf32>
    %259 = vector.extract_strided_slice %236 {offsets = [0, 2560], sizes = [32, 320], strides = [1, 1]} : vector<32x3200xf32> to vector<32x320xf32>
    %c24_i32 = arith.constant 24 : i32
    %260 = tpu.dynamic_rotate %259 by %c24_i32 dim 0 : vector<32x320xf32>, i32 -> vector<32x320xf32>
    %261 = arith.addf %258, %260 : vector<32x320xf32>
    %262 = vector.extract_strided_slice %236 {offsets = [0, 2880], sizes = [32, 320], strides = [1, 1]} : vector<32x3200xf32> to vector<32x320xf32>
    %c23_i32 = arith.constant 23 : i32
    %263 = tpu.dynamic_rotate %262 by %c23_i32 dim 0 : vector<32x320xf32>, i32 -> vector<32x320xf32>
    %264 = arith.addf %261, %263 : vector<32x320xf32>
    %c6_i32 = arith.constant 6 : i32
    %265 = vector.broadcast %c6_i32 : i32 to vector<32x1xi32>
    %266 = arith.cmpi sle, %100, %265 : vector<32x1xi32>
    %cst_66 = arith.constant -1.000000e+30 : f32
    %267 = vector.shape_cast %266 : vector<32x1xi1> to vector<32x1xi1>
    %268 = vector.broadcast %267 : vector<32x1xi1> to vector<32x320xi1>
    %269 = vector.broadcast %cst_66 : f32 to vector<32x320xf32>
    %270 = arith.select %268, %264, %269 : vector<32x320xi1>, vector<32x320xf32>
    %271 = vector.shape_cast %270 : vector<32x320xf32> to vector<2x16x320xf32>
    %cst_67 = arith.constant dense<0xFF800000> : vector<2x320xf32>
    %272 = vector.multi_reduction <maximumf>, %271, %cst_67 [1] : vector<2x16x320xf32> to vector<2x320xf32>
    %273 = vector.extract_strided_slice %101 {offsets = [4, 0], sizes = [1, 320], strides = [1, 1]} : vector<5x320xf32> to vector<1x320xf32>
    %274 = vector.broadcast %273 : vector<1x320xf32> to vector<2x320xf32>
    %275 = arith.addf %272, %274 : vector<2x320xf32>
    %276 = vector.extract_strided_slice %275 {offsets = [0, 0], sizes = [2, 64], strides = [1, 1]} : vector<2x320xf32> to vector<2x64xf32>
    %277 = arith.mulf %71, %276 : vector<2x64xf32>
    %278 = vector.extract_strided_slice %275 {offsets = [0, 64], sizes = [2, 64], strides = [1, 1]} : vector<2x320xf32> to vector<2x64xf32>
    %279 = arith.mulf %74, %278 : vector<2x64xf32>
    %280 = arith.addf %277, %279 : vector<2x64xf32>
    %281 = vector.extract_strided_slice %275 {offsets = [0, 128], sizes = [2, 64], strides = [1, 1]} : vector<2x320xf32> to vector<2x64xf32>
    %282 = arith.mulf %77, %281 : vector<2x64xf32>
    %283 = arith.addf %280, %282 : vector<2x64xf32>
    %284 = vector.extract_strided_slice %275 {offsets = [0, 192], sizes = [2, 64], strides = [1, 1]} : vector<2x320xf32> to vector<2x64xf32>
    %285 = arith.mulf %80, %284 : vector<2x64xf32>
    %286 = arith.addf %283, %285 : vector<2x64xf32>
    %287 = vector.extract_strided_slice %275 {offsets = [0, 256], sizes = [2, 64], strides = [1, 1]} : vector<2x320xf32> to vector<2x64xf32>
    %288 = arith.mulf %83, %287 : vector<2x64xf32>
    %289 = arith.addf %286, %288 : vector<2x64xf32>
    %cst_68 = arith.constant 0.000000e+00 : f32
    %290 = vector.broadcast %cst_68 : f32 to vector<2x64xf32>
    %291 = tpu.concatenate %129, %160, %194, %234, %289, %290 in 1 : vector<2x64xf32>, vector<2x64xf32>, vector<2x64xf32>, vector<2x64xf32>, vector<2x64xf32>, vector<2x64xf32> -> vector<2x384xf32>
    %c0_69 = arith.constant 0 : index
    %c0_70 = arith.constant 0 : index
    %292 = vector.load %arg19[%c0_69, %c0_70] : memref<2x384xf32, #tpu.memory_space<vmem>>, vector<2x384xf32>
    tpu.vector_store %arg19[%c0_69, %c0_70], %291 {strides = array<i32>} : memref<2x384xf32, #tpu.memory_space<vmem>>, vector<2x384xf32>,
    %293 = arith.truncf %291 : vector<2x384xf32> to vector<2x384xbf16>
    %c0_71 = arith.constant 0 : index
    %c0_72 = arith.constant 0 : index
    %294 = vector.load %arg14[%c0_71, %c0_72] : memref<384x32xbf16, #tpu.memory_space<vmem>>, vector<384x32xbf16>
    %cst_73 = arith.constant dense<0.000000e+00> : vector<2x32xf32>
    %295 = tpu.matmul %293, %294, %cst_73 {dimension_numbers = #tpu.dot_dimension_numbers<[1], [0], [0], [1], [0, 0, 1, 1], [], []>} : vector<2x384xbf16>, vector<384x32xbf16>, vector<2x32xf32> -> vector<2x32xf32>
    %c0_74 = arith.constant 0 : index
    %c0_75 = arith.constant 0 : index
    %296 = vector.load %arg15[%c0_74, %c0_75] : memref<1x32xf32, #tpu.memory_space<vmem>>, vector<1x32xf32>
    %297 = vector.broadcast %296 : vector<1x32xf32> to vector<2x32xf32>
    %298 = arith.addf %295, %297 : vector<2x32xf32>
    %cst_76 = arith.constant 0.000000e+00 : f32
    %299 = vector.broadcast %cst_76 : f32 to vector<2x32xf32>
    %300 = arith.maximumf %298, %299 : vector<2x32xf32>
    %301 = arith.truncf %300 : vector<2x32xf32> to vector<2x32xbf16>
    %c0_77 = arith.constant 0 : index
    %c0_78 = arith.constant 0 : index
    %302 = vector.load %arg16[%c0_77, %c0_78] : memref<32x1xbf16, #tpu.memory_space<vmem>>, vector<32x1xbf16>
    %cst_79 = arith.constant dense<0.000000e+00> : vector<2x1xf32>
    %303 = tpu.matmul %301, %302, %cst_79 {dimension_numbers = #tpu.dot_dimension_numbers<[1], [0], [0], [1], [0, 0, 1, 1], [], []>} : vector<2x32xbf16>, vector<32x1xbf16>, vector<2x1xf32> -> vector<2x1xf32>
    %c0_80 = arith.constant 0 : index
    %c0_81 = arith.constant 0 : index
    %304 = vector.load %arg17[%c0_80, %c0_81] : memref<1x1xf32, #tpu.memory_space<vmem>>, vector<1x1xf32>
    %305 = vector.broadcast %304 : vector<1x1xf32> to vector<2x1xf32>
    %306 = arith.addf %303, %305 : vector<2x1xf32>
    %cst_82 = arith.constant 0.000000e+00 : f32
    %307 = vector.broadcast %cst_82 : f32 to vector<2x1xf32>
    %308 = arith.subf %307, %306 : vector<2x1xf32>
    %309 = math.exp %308 : vector<2x1xf32>
    %cst_83 = arith.constant 1.000000e+00 : f32
    %310 = vector.broadcast %cst_83 : f32 to vector<2x1xf32>
    %311 = arith.addf %310, %309 : vector<2x1xf32>
    %cst_84 = arith.constant 1.000000e+00 : f32
    %312 = vector.broadcast %cst_84 : f32 to vector<2x1xf32>
    %313 = arith.divf %312, %311 : vector<2x1xf32>
    %c0_85 = arith.constant 0 : index
    %c0_86 = arith.constant 0 : index
    %314 = vector.load %arg18[%c0_85, %c0_86] : memref<2x1xf32, #tpu.memory_space<vmem>>, vector<2x1xf32>
    tpu.vector_store %arg18[%c0_85, %c0_86], %313 {strides = array<i32>} : memref<2x1xf32, #tpu.memory_space<vmem>>, vector<2x1xf32>,
    return
  }
  func.func @transform_0(%arg0: i32) -> (i32, i32, i32) {
    %c0_i32 = arith.constant 0 : i32
    %c0_i32_0 = arith.constant 0 : i32
    %c0_i32_1 = arith.constant 0 : i32
    return %arg0, %c0_i32, %c0_i32_0 : i32, i32, i32
  }
  func.func @transform_1(%arg0: i32) -> (i32, i32) {
    %c0_i32 = arith.constant 0 : i32
    %c0_i32_0 = arith.constant 0 : i32
    return %arg0, %c0_i32 : i32, i32
  }
  func.func @transform_2(%arg0: i32) -> (i32, i32) {
    %c0_i32 = arith.constant 0 : i32
    %c0_i32_0 = arith.constant 0 : i32
    return %arg0, %c0_i32 : i32, i32
  }
  func.func @transform_3(%arg0: i32) -> (i32, i32) {
    %c0_i32 = arith.constant 0 : i32
    %c0_i32_0 = arith.constant 0 : i32
    %c0_i32_1 = arith.constant 0 : i32
    return %c0_i32, %c0_i32_0 : i32, i32
  }
  func.func @transform_4(%arg0: i32) -> (i32, i32) {
    %c0_i32 = arith.constant 0 : i32
    %c0_i32_0 = arith.constant 0 : i32
    %c0_i32_1 = arith.constant 0 : i32
    return %c0_i32, %c0_i32_0 : i32, i32
  }
  func.func @transform_5(%arg0: i32) -> (i32, i32) {
    %c0_i32 = arith.constant 0 : i32
    %c0_i32_0 = arith.constant 0 : i32
    %c0_i32_1 = arith.constant 0 : i32
    return %c0_i32, %c0_i32_0 : i32, i32
  }
  func.func @transform_6(%arg0: i32) -> (i32, i32) {
    %c0_i32 = arith.constant 0 : i32
    %c0_i32_0 = arith.constant 0 : i32
    %c0_i32_1 = arith.constant 0 : i32
    return %c0_i32, %c0_i32_0 : i32, i32
  }
  func.func @transform_7(%arg0: i32) -> (i32, i32) {
    %c0_i32 = arith.constant 0 : i32
    %c0_i32_0 = arith.constant 0 : i32
    %c0_i32_1 = arith.constant 0 : i32
    return %c0_i32, %c0_i32_0 : i32, i32
  }
  func.func @transform_8(%arg0: i32) -> (i32, i32) {
    %c0_i32 = arith.constant 0 : i32
    %c0_i32_0 = arith.constant 0 : i32
    %c0_i32_1 = arith.constant 0 : i32
    return %c0_i32, %c0_i32_0 : i32, i32
  }
  func.func @transform_9(%arg0: i32) -> (i32, i32) {
    %c0_i32 = arith.constant 0 : i32
    %c0_i32_0 = arith.constant 0 : i32
    %c0_i32_1 = arith.constant 0 : i32
    return %c0_i32, %c0_i32_0 : i32, i32
  }
  func.func @transform_10(%arg0: i32) -> (i32, i32) {
    %c0_i32 = arith.constant 0 : i32
    %c0_i32_0 = arith.constant 0 : i32
    %c0_i32_1 = arith.constant 0 : i32
    return %c0_i32, %c0_i32_0 : i32, i32
  }
  func.func @transform_11(%arg0: i32) -> (i32, i32) {
    %c0_i32 = arith.constant 0 : i32
    %c0_i32_0 = arith.constant 0 : i32
    %c0_i32_1 = arith.constant 0 : i32
    return %c0_i32, %c0_i32_0 : i32, i32
  }
  func.func @transform_12(%arg0: i32) -> (i32, i32) {
    %c0_i32 = arith.constant 0 : i32
    %c0_i32_0 = arith.constant 0 : i32
    %c0_i32_1 = arith.constant 0 : i32
    return %c0_i32, %c0_i32_0 : i32, i32
  }
  func.func @transform_13(%arg0: i32) -> (i32, i32) {
    %c0_i32 = arith.constant 0 : i32
    %c0_i32_0 = arith.constant 0 : i32
    %c0_i32_1 = arith.constant 0 : i32
    return %c0_i32, %c0_i32_0 : i32, i32
  }
  func.func @transform_14(%arg0: i32) -> (i32, i32) {
    %c0_i32 = arith.constant 0 : i32
    %c0_i32_0 = arith.constant 0 : i32
    %c0_i32_1 = arith.constant 0 : i32
    return %c0_i32, %c0_i32_0 : i32, i32
  }
  func.func @transform_15(%arg0: i32) -> (i32, i32) {
    %c0_i32 = arith.constant 0 : i32
    %c0_i32_0 = arith.constant 0 : i32
    %c0_i32_1 = arith.constant 0 : i32
    return %c0_i32, %c0_i32_0 : i32, i32
  }
  func.func @transform_16(%arg0: i32) -> (i32, i32) {
    %c0_i32 = arith.constant 0 : i32
    %c0_i32_0 = arith.constant 0 : i32
    %c0_i32_1 = arith.constant 0 : i32
    return %c0_i32, %c0_i32_0 : i32, i32
  }
  func.func @transform_17(%arg0: i32) -> (i32, i32) {
    %c0_i32 = arith.constant 0 : i32
    %c0_i32_0 = arith.constant 0 : i32
    return %arg0, %c0_i32 : i32, i32
  }
  func.func @transform_18(%arg0: i32) -> (i32, i32) {
    %c0_i32 = arith.constant 0 : i32
    %c0_i32_0 = arith.constant 0 : i32
    return %arg0, %c0_i32 : i32, i32
  }
}

</mosaic_0001>

<llo_original>
// kernel: fast_plfnd_forward.1
$region0: #{fast_plfnd_forward.1}
  #allocation0 [shape = 'u32[]', space=smem, size = 0x4, offset = 0x4, fixed_abs, tag = 'smem constant byte address 0x4 - core index']
  #allocation1 [shape = 'u32[72,128]{1,0:T(1,128)}', space=vmem, size = 0x9000, scoped, tag = 'internal scratch']
  #allocation2 [shape = 'f32[1,1]{1,0:T(1,128)S(1)}', space=vmem, size = 0x200, scoped, tag = 'scoped memory for fast_plfnd_forward.1']
  #allocation3 [shape = 'f32[1,1]{1,0:T(1,128)S(1)}', space=vmem, size = 0x200, scoped, tag = 'scoped memory for fast_plfnd_forward.1']
  %s0 = inlined_call_operand.vmem [shape: bf16[2,16,32], index: 0, kind: input, shape index: {}]
  %s1 = inlined_call_operand.vmem [shape: f32[2,16], index: 1, kind: input, shape index: {}]
  %s2 = inlined_call_operand.vmem [shape: f32[2,32], index: 2, kind: input, shape index: {}]
  %s3 = inlined_call_operand.vmem [shape: f32[1,32], index: 3, kind: input, shape index: {}]
  %s4 = inlined_call_operand.<no memory space> [shape: f32[1,1], index: 4, kind: input, shape index: {}]
  %s5 = inlined_call_operand.vmem [shape: bf16[64,32], index: 5, kind: input, shape index: {}]
  %s6 = inlined_call_operand.vmem [shape: f32[1,32], index: 6, kind: input, shape index: {}]
  %s7 = inlined_call_operand.vmem [shape: bf16[32,5], index: 7, kind: input, shape index: {}]
  %s8 = inlined_call_operand.vmem [shape: f32[1,5], index: 8, kind: input, shape index: {}]
  %s9 = inlined_call_operand.vmem [shape: bf16[32,5], index: 9, kind: input, shape index: {}]
  %s10 = inlined_call_operand.vmem [shape: f32[1,5], index: 10, kind: input, shape index: {}]
  %s11 = inlined_call_operand.vmem [shape: bf16[32,6912], index: 11, kind: input, shape index: {}]
  %s12 = inlined_call_operand.vmem [shape: f32[5,320], index: 12, kind: input, shape index: {}]
  %s13 = inlined_call_operand.vmem [shape: bf16[384,32], index: 13, kind: input, shape index: {}]
  %s14 = inlined_call_operand.vmem [shape: f32[1,32], index: 14, kind: input, shape index: {}]
  %s15 = inlined_call_operand.vmem [shape: bf16[32,1], index: 15, kind: input, shape index: {}]
  %s16 = inlined_call_operand.<no memory space> [shape: f32[1,1], index: 16, kind: input, shape index: {}]
  %s17 = inlined_call_operand.vmem [shape: f32[2,1], index: 17, kind: output, shape index: {0}]
  %s18 = inlined_call_operand.hbm [shape: f32[2,384], index: 18, kind: output, shape index: {1}]
  %19 = xla_tuple %s17, %s18
  %s20 = sld [smem:[#allocation0]]
  $region86: #{fast_plfnd_forward.1} parent=0
    _
  %s22 = ssub.s32 1, %s20
  %s23 = scalar_select 0, %s22, %s20
  %v24 = vstv %s4
  %25 = vst [vmem:[#allocation2] sm:$0x1] %v24
  %v26 = vstv %s16
  %27 = vst [vmem:[#allocation3] sm:$0x1] %v26
  $region1: #{fast_plfnd_forward.1} parent=0
    #allocation4 [shape = 'u8[3072]{0}', space=vmem, size = 0xc00, scoped, tag = 'output window, operand 1, single buffered']
    #allocation5 [shape = 's32[1]{0}', space=sflag, size = 0x4, scoped, tag = 'scoped memory for fast_plfnd_forward.1']
    %28 = vsyncpa [#allocation5], 0
    // Predicated region
    $region2: #{fast_plfnd_forward.1} parent=1 // pred_check
      _
    $region3: #{fast_plfnd_forward.1} parent=1 // pred_check_branch
      %30 = sbr.rel (0) target = $region5
    $region4: #{fast_plfnd_forward.1} parent=1 // pred_region
      _
    $region5: #{fast_plfnd_forward.1} parent=1 // pred_fallthru
      _
    // Predicated region
    $region6: #{fast_plfnd_forward.1} parent=1 // pred_check
      _
    $region7: #{fast_plfnd_forward.1} parent=1 // pred_check_branch
      %32 = sbr.rel (0) target = $region9
    $region8: #{fast_plfnd_forward.1} parent=1 // pred_region
      _
    $region9: #{fast_plfnd_forward.1} parent=1 // pred_fallthru
      _
    // Predicated region
    $region10: #{fast_plfnd_forward.1} parent=1 // pred_check
      _
    $region11: #{fast_plfnd_forward.1} parent=1 // pred_check_branch
      %34 = sbr.rel (0) target = $region13
    $region12: #{fast_plfnd_forward.1} parent=1 // pred_region
      _
    $region13: #{fast_plfnd_forward.1} parent=1 // pred_fallthru
      _
    // Predicated region
    $region14: #{fast_plfnd_forward.1} parent=1 // pred_check
      _
    $region15: #{fast_plfnd_forward.1} parent=1 // pred_check_branch
      %36 = sbr.rel (0) target = $region17
    $region16: #{fast_plfnd_forward.1} parent=1 // pred_region
      _
    $region17: #{fast_plfnd_forward.1} parent=1 // pred_fallthru
      _
    // Predicated region
    $region18: #{fast_plfnd_forward.1} parent=1 // pred_check
      _
    $region19: #{fast_plfnd_forward.1} parent=1 // pred_check_branch
      %38 = sbr.rel (0) target = $region21
    $region20: #{fast_plfnd_forward.1} parent=1 // pred_region
      _
    $region21: #{fast_plfnd_forward.1} parent=1 // pred_fallthru
      _
    // Predicated region
    $region22: #{fast_plfnd_forward.1} parent=1 // pred_check
      _
    $region23: #{fast_plfnd_forward.1} parent=1 // pred_check_branch
      %40 = sbr.rel (0) target = $region25
    $region24: #{fast_plfnd_forward.1} parent=1 // pred_region
      _
    $region25: #{fast_plfnd_forward.1} parent=1 // pred_fallthru
      _
    // Predicated region
    $region26: #{fast_plfnd_forward.1} parent=1 // pred_check
      _
    $region27: #{fast_plfnd_forward.1} parent=1 // pred_check_branch
      %42 = sbr.rel (0) target = $region29
    $region28: #{fast_plfnd_forward.1} parent=1 // pred_region
      _
    $region29: #{fast_plfnd_forward.1} parent=1 // pred_fallthru
      _
    // Predicated region
    $region30: #{fast_plfnd_forward.1} parent=1 // pred_check
      _
    $region31: #{fast_plfnd_forward.1} parent=1 // pred_check_branch
      %44 = sbr.rel (0) target = $region33
    $region32: #{fast_plfnd_forward.1} parent=1 // pred_region
      _
    $region33: #{fast_plfnd_forward.1} parent=1 // pred_fallthru
      _
    // Predicated region
    $region34: #{fast_plfnd_forward.1} parent=1 // pred_check
      _
    $region35: #{fast_plfnd_forward.1} parent=1 // pred_check_branch
      %46 = sbr.rel (0) target = $region37
    $region36: #{fast_plfnd_forward.1} parent=1 // pred_region
      _
    $region37: #{fast_plfnd_forward.1} parent=1 // pred_fallthru
      _
    // Predicated region
    $region38: #{fast_plfnd_forward.1} parent=1 // pred_check
      _
    $region39: #{fast_plfnd_forward.1} parent=1 // pred_check_branch
      %48 = sbr.rel (0) target = $region41
    $region40: #{fast_plfnd_forward.1} parent=1 // pred_region
      _
    $region41: #{fast_plfnd_forward.1} parent=1 // pred_fallthru
      _
    // Predicated region
    $region42: #{fast_plfnd_forward.1} parent=1 // pred_check
      _
    $region43: #{fast_plfnd_forward.1} parent=1 // pred_check_branch
      %50 = sbr.rel (0) target = $region45
    $region44: #{fast_plfnd_forward.1} parent=1 // pred_region
      _
    $region45: #{fast_plfnd_forward.1} parent=1 // pred_fallthru
      _
    // Predicated region
    $region46: #{fast_plfnd_forward.1} parent=1 // pred_check
      _
    $region47: #{fast_plfnd_forward.1} parent=1 // pred_check_branch
      %52 = sbr.rel (0) target = $region49
    $region48: #{fast_plfnd_forward.1} parent=1 // pred_region
      _
    $region49: #{fast_plfnd_forward.1} parent=1 // pred_fallthru
      _
    // Predicated region
    $region50: #{fast_plfnd_forward.1} parent=1 // pred_check
      _
    $region51: #{fast_plfnd_forward.1} parent=1 // pred_check_branch
      %54 = sbr.rel (0) target = $region53
    $region52: #{fast_plfnd_forward.1} parent=1 // pred_region
      _
    $region53: #{fast_plfnd_forward.1} parent=1 // pred_fallthru
      _
    // Predicated region
    $region54: #{fast_plfnd_forward.1} parent=1 // pred_check
      _
    $region55: #{fast_plfnd_forward.1} parent=1 // pred_check_branch
      %56 = sbr.rel (0) target = $region57
    $region56: #{fast_plfnd_forward.1} parent=1 // pred_region
      _
    $region57: #{fast_plfnd_forward.1} parent=1 // pred_fallthru
      _
    // Predicated region
    $region58: #{fast_plfnd_forward.1} parent=1 // pred_check
      _
    $region59: #{fast_plfnd_forward.1} parent=1 // pred_check_branch
      %58 = sbr.rel (0) target = $region61
    $region60: #{fast_plfnd_forward.1} parent=1 // pred_region
      _
    $region61: #{fast_plfnd_forward.1} parent=1 // pred_fallthru
      _
    // Predicated region
    $region62: #{fast_plfnd_forward.1} parent=1 // pred_check
      _
    $region63: #{fast_plfnd_forward.1} parent=1 // pred_check_branch
      %60 = sbr.rel (0) target = $region65
    $region64: #{fast_plfnd_forward.1} parent=1 // pred_region
      _
    $region65: #{fast_plfnd_forward.1} parent=1 // pred_fallthru
      _
    // Predicated region
    $region66: #{fast_plfnd_forward.1} parent=1 // pred_check
      _
    $region67: #{fast_plfnd_forward.1} parent=1 // pred_check_branch
      %62 = sbr.rel (0) target = $region69
    $region68: #{fast_plfnd_forward.1} parent=1 // pred_region
      _
    $region69: #{fast_plfnd_forward.1} parent=1 // pred_fallthru
      _
    %v64 = vld [vmem:[%s0] sm:$0xf]
    %v65 = vld [vmem:[%s0 + $0x4] sm:$0xf]
    %v66 = vld [vmem:[%s0 + $0x8] sm:$0xf]
    %v67 = vld [vmem:[%s0 + $0xc] sm:$0xf]
    %v68 = vunpack.c.l.bf16 %v64
    %v69 = vunpack.c.l.bf16 %v65
    %v70 = vunpack.c.l.bf16 %v66
    %v71 = vunpack.c.l.bf16 %v67
    %v72 = vld [vmem:[%s1] sm:$0x3]
    %v73 = vld [vmem:[%s2] sm:$0x3]
    %v74 = vld [vmem:[%s3] sm:$0x1]
    %v76 = vperm.slane %v74, 0
    %v78 = vmul.f32 %v68, %v76
    %v79 = vmul.f32 %v69, %v76
    %v80 = vmul.f32 %v70, %v76
    %v81 = vmul.f32 %v71, %v76
    %vm82 = vcmask 261120
    %v83 = vsel %vm82, %v78, 0.0
    %84 = vadd.xlane.f32.xlu0 %v83
    %v85 = vpop.xlane.xlu0 %84
    %v86 = vsel %vm82, %v79, 0.0
    %87 = vadd.xlane.f32.xlu0 %v86
    %v88 = vpop.xlane.xlu0 %87
    %v89 = vsel %vm82, %v80, 0.0
    %90 = vadd.xlane.f32.xlu0 %v89
    %v91 = vpop.xlane.xlu0 %90
    %v92 = vsel %vm82, %v81, 0.0
    %93 = vadd.xlane.f32.xlu0 %v92
    %v94 = vpop.xlane.xlu0 %93
    %v95 = vld [vmem:[#allocation2] sm:$0x1]
    %v97 = vperm.slane %v95, 0
    %98 = vset.pattern.permute.xlu0 0
    %99 = vperm.xlu0 %98, %v97
    %v100 = vpop.permute.xlu0 %99
    %v102 = vadd.f32 %v85, %v100
    %v103 = vadd.f32 %v88, %v100
    %v104 = vadd.f32 %v91, %v100
    %v105 = vadd.f32 %v94, %v100
    %vm106 = vcmp.gt.f32.partialorder %v72, 0.0
    %v111 = vlaneseq
    %v112 = vand.u32 %v111, 127
    %v113 = vperm.slane %v102, %v112
    %v114 = vadd.s32 %v112, 4294967288
    %v115 = vperm.slane %v103, %v114
    %vm116 = vcmask 130112
    %v117 = vsel %vm116, %v115, %v113
    %v118 = vperm.slane %v104, %v112
    %v119 = vperm.slane %v105, %v114
    %v120 = vsel %vm116, %v119, %v118
    %vm121 = vcmask 1041409
    %v122 = vsel %vm121, %v120, %v117
    %v124 = vsel %vm106, %v122, -1e+30
    %vm125 = vcmask 123904
    %v126 = vsel %vm125, %v124, -inf
    %127 = vmax.xlane.f32.xlu0 %v126
    %v128 = vpop.xlane.xlu0 %127
    %v129 = vsub.f32 %v124, %v128
    %v130 = vmul.f32 %v129, 1.442695
    %v131 = vpow.pop %v130
    %v132 = vsel %vm125, %v131, 0.0
    %133 = vadd.xlane.f32.xlu0 %v132
    %v134 = vpop.xlane.xlu0 %133
    %v135 = vrcp.pop %v134
    %v136 = vmul.f32 %v134, %v135
    %v137 = vsub.f32 1.0, %v136
    %v138 = vmul.f32 %v135, %v137
    %v139 = vadd.f32 %v135, %v138
    %vm140 = vweird.f32 %v134
    %vm141 = vweird.f32 %v135
    %vm142 = vmor %vm140, %vm141
    %v143 = vsel %vm142, %v135, %v139
    %v144 = vand.u32 2147483647, %v134
    %vm145 = vcmp.eq.f32.partialorder %v144, 8.507059e+37
    %v146 = vand.u32 %v134, 2147483648
    %v147 = vor.u32 1.1754944e-38, %v146
    %v148 = vsel %vm145, %v147, %v143
    %v149 = vmul.f32 %v131, %v148
    %v150 = vperm.slane %v149, 0
    %v151 = vlaneseq
    %v152 = vshrl.u32 %v151, 7
    %154 = vset.pattern.permute.xlu0 %v152
    %155 = vperm.xlu0 %154, %v150
    %v156 = vpop.permute.xlu0 %155
    %v157 = vlaneseq
    %v158 = vshrl.u32 %v157, 7
    %v159 = vadd.s32 %v158, 8
    %160 = vset.pattern.permute.xlu0 %v159
    %161 = vperm.xlu0 %160, %v150
    %v162 = vpop.permute.xlu0 %161
    %v163 = vperm.slane %v149, 1
    %v164 = vlaneseq
    %v165 = vshrl.u32 %v164, 7
    %167 = vset.pattern.permute.xlu0 %v165
    %168 = vperm.xlu0 %167, %v163
    %v169 = vpop.permute.xlu0 %168
    %v170 = vlaneseq
    %v171 = vshrl.u32 %v170, 7
    %v172 = vadd.s32 %v171, 8
    %173 = vset.pattern.permute.xlu0 %v172
    %174 = vperm.xlu0 %173, %v163
    %v175 = vpop.permute.xlu0 %174
    %v176 = vmul.f32 %v156, %v68
    %v177 = vmul.f32 %v162, %v69
    %v178 = vmul.f32 %v169, %v70
    %v179 = vmul.f32 %v175, %v71
    %v180 = vsel %vm82, %v176, 0.0
    %v181 = vsel %vm82, %v177, 0.0
    %v182 = vadd.f32 %v180, %v181
    %v183 = vrot.slane %v182, 4
    %v184 = vadd.f32 %v182, %v183
    %v185 = vrot.slane %v184, 2
    %v186 = vadd.f32 %v184, %v185
    %v187 = vrot.slane %v186, 1
    %v188 = vadd.f32 %v186, %v187
    %v189 = vsel %vm82, %v178, 0.0
    %v190 = vsel %vm82, %v179, 0.0
    %v191 = vadd.f32 %v189, %v190
    %v192 = vrot.slane %v191, 4
    %v193 = vadd.f32 %v191, %v192
    %v194 = vrot.slane %v193, 2
    %v195 = vadd.f32 %v193, %v194
    %v196 = vrot.slane %v195, 1
    %v197 = vadd.f32 %v195, %v196
    %v200 = vsel %vm121, %v197, %v188
    %201 = vrot.lane.b32.xlu0 %v200, 32
    %v202 = vpop.permute.xlu0 %201
    %v204 = vsel %vm82, %v73, %v202
    %v205 = vpack.c.bf16 %v204, %v204
    %v206 = vld [vmem:[%s5] sm:$0xf]
    %v207 = vld [vmem:[%s5 + $0x4] sm:$0xf]
    %v208 = vld [vmem:[%s5 + $0x8] sm:$0xf]
    %v209 = vld [vmem:[%s5 + $0xc] sm:$0xf]
    %v210 = vld [vmem:[%s5 + $0x10] sm:$0xf]
    %v211 = vld [vmem:[%s5 + $0x14] sm:$0xf]
    %v212 = vld [vmem:[%s5 + $0x18] sm:$0xf]
    %v213 = vld [vmem:[%s5 + $0x1c] sm:$0xf]
    %v214 = vld [vmem:[%s6] sm:$0x1]
    %v216 = vperm.slane %v214, 0
    %v226 = vunpack.c.l.b16 %v206
    %v227 = vunpack.c.l.b16 %v207
    %v228 = vunpack.c.l.b16 %v208
    %v229 = vunpack.c.l.b16 %v209
    %v230 = vunpack.c.l.b16 %v210
    %v231 = vunpack.c.l.b16 %v211
    %v232 = vunpack.c.l.b16 %v212
    %v233 = vunpack.c.l.b16 %v213
    %v234 = vpack.c.b16 %v227, %v226
    %v235 = vpack.c.b16 %v229, %v228
    %v236 = vpack.c.b16 %v231, %v230
    %v237 = vpack.c.b16 %v233, %v232
    %vm242 = vcmask 523264
    %v244 = vsel %vm242, %v205, 0
    %246 = vmatpush.bf16.msra.mxu0 0
    %247 = vmatpush.bf16.msra.mxu0 0
    %248 = vmatpush.bf16.msra.mxu0 0
    %249 = vmatpush.bf16.msra.mxu0 0
    %250 = vmatpush.bf16.msra.mxu0 %v237
    %251 = vmatpush.bf16.msra.mxu0 %v236
    %252 = vmatpush.bf16.msra.mxu0 %v235
    %253 = vmatpush.bf16.msra.mxu0 %v234
    %254 = vmatmul.bf16.gmra.mxu0 %v244
    %v255 = vpop.f32.mrf.mxu0
    %v256 = vadd.f32 %v216, %v255
    %v257 = vpop.f32.mrf.mxu0
    %258 = vdwg.mxu0
    %v259 = vmax.f32 %v256, 0.0
    %v260 = vpack.c.bf16 %v259, %v259
    %v261 = vld [vmem:[%s7] sm:$0xf]
    %v262 = vld [vmem:[%s7 + $0x4] sm:$0xf]
    %v263 = vld [vmem:[%s7 + $0x8] sm:$0xf]
    %v264 = vld [vmem:[%s7 + $0xc] sm:$0xf]
    %v265 = vld [vmem:[%s8] sm:$0x1]
    %v267 = vperm.slane %v265, 0
    %v273 = vunpack.c.l.b16 %v261
    %v274 = vunpack.c.l.b16 %v262
    %v275 = vunpack.c.l.b16 %v263
    %v276 = vunpack.c.l.b16 %v264
    %v277 = vpack.c.b16 %v274, %v273
    %v278 = vpack.c.b16 %v276, %v275
    %v282 = vsel %vm82, %v260, 0
    %284 = vmatpush.bf16.msra.mxu0 0
    %285 = vmatpush.bf16.msra.mxu0 0
    %286 = vmatpush.bf16.msra.mxu0 0
    %287 = vmatpush.bf16.msra.mxu0 0
    %288 = vmatpush.bf16.msra.mxu0 0
    %289 = vmatpush.bf16.msra.mxu0 0
    %290 = vmatpush.bf16.msra.mxu0 %v278
    %291 = vmatpush.bf16.msra.mxu0 %v277
    %292 = vmatmul.bf16.gmra.mxu0 %v282
    %v293 = vpop.f32.mrf.mxu0
    %v294 = vadd.f32 %v267, %v293
    %v295 = vpop.f32.mrf.mxu0
    %296 = vdwg.mxu0
    %vm297 = vcmask 33792
    %v298 = vsel %vm297, %v294, -inf
    %299 = vmax.xlane.f32.xlu0 %v298
    %v300 = vpop.xlane.xlu0 %299
    %v301 = vsub.f32 %v294, %v300
    %v302 = vmul.f32 %v301, 1.442695
    %v303 = vpow.pop %v302
    %v304 = vsel %vm297, %v303, 0.0
    %305 = vadd.xlane.f32.xlu0 %v304
    %v306 = vpop.xlane.xlu0 %305
    %v307 = vrcp.pop %v306
    %v308 = vmul.f32 %v306, %v307
    %v309 = vsub.f32 1.0, %v308
    %v310 = vmul.f32 %v307, %v309
    %v311 = vadd.f32 %v307, %v310
    %vm312 = vweird.f32 %v306
    %vm313 = vweird.f32 %v307
    %vm314 = vmor %vm312, %vm313
    %v315 = vsel %vm314, %v307, %v311
    %v316 = vand.u32 2147483647, %v306
    %vm317 = vcmp.eq.f32.partialorder %v316, 8.507059e+37
    %v318 = vand.u32 %v306, 2147483648
    %v319 = vor.u32 1.1754944e-38, %v318
    %v320 = vsel %vm317, %v319, %v315
    %v321 = vmul.f32 %v303, %v320
    %v322 = vpack.c.bf16 %v188, %v188
    %v323 = vpack.c.bf16 %v197, %v197
    %v324 = vld [vmem:[%s9] sm:$0xf]
    %v325 = vld [vmem:[%s9 + $0x4] sm:$0xf]
    %v326 = vld [vmem:[%s9 + $0x8] sm:$0xf]
    %v327 = vld [vmem:[%s9 + $0xc] sm:$0xf]
    %v328 = vld [vmem:[%s10] sm:$0x1]
    %v330 = vperm.slane %v328, 0
    %v334 = vunpack.c.l.b16 %v322
    %v335 = vunpack.c.l.b16 %v323
    %v336 = vsel %vm121, %v335, %v334
    %v337 = vpack.c.b16 %v336, %v336
    %v342 = vunpack.c.l.b16 %v324
    %v343 = vunpack.c.l.b16 %v325
    %v344 = vunpack.c.l.b16 %v326
    %v345 = vunpack.c.l.b16 %v327
    %v346 = vpack.c.b16 %v343, %v342
    %v347 = vpack.c.b16 %v345, %v344
    %v351 = vsel %vm82, %v337, 0
    %353 = vmatpush.bf16.msra.mxu0 0
    %354 = vmatpush.bf16.msra.mxu0 0
    %355 = vmatpush.bf16.msra.mxu0 0
    %356 = vmatpush.bf16.msra.mxu0 0
    %357 = vmatpush.bf16.msra.mxu0 0
    %358 = vmatpush.bf16.msra.mxu0 0
    %359 = vmatpush.bf16.msra.mxu0 %v347
    %360 = vmatpush.bf16.msra.mxu0 %v346
    %361 = vmatmul.bf16.gmra.mxu0 %v351
    %v362 = vpop.f32.mrf.mxu0
    %v363 = vadd.f32 %v330, %v362
    %v364 = vpop.f32.mrf.mxu0
    %365 = vdwg.mxu0
    %v366 = vsel %vm297, %v363, -inf
    %367 = vmax.xlane.f32.xlu0 %v366
    %v368 = vpop.xlane.xlu0 %367
    %v369 = vsub.f32 %v363, %v368
    %v370 = vmul.f32 %v369, 1.442695
    %v371 = vpow.pop %v370
    %v372 = vsel %vm297, %v371, 0.0
    %373 = vadd.xlane.f32.xlu0 %v372
    %v374 = vpop.xlane.xlu0 %373
    %v375 = vrcp.pop %v374
    %v376 = vmul.f32 %v374, %v375
    %v377 = vsub.f32 1.0, %v376
    %v378 = vmul.f32 %v375, %v377
    %v379 = vadd.f32 %v375, %v378
    %vm380 = vweird.f32 %v374
    %vm381 = vweird.f32 %v375
    %vm382 = vmor %vm380, %vm381
    %v383 = vsel %vm382, %v375, %v379
    %v384 = vand.u32 2147483647, %v374
    %vm385 = vcmp.eq.f32.partialorder %v384, 8.507059e+37
    %v386 = vand.u32 %v374, 2147483648
    %v387 = vor.u32 1.1754944e-38, %v386
    %v388 = vsel %vm385, %v387, %v383
    %v389 = vmul.f32 %v371, %v388
    %v390 = vmul.f32 %v321, %v389
    %392 = vset.pattern.permute.xlu0 0
    %393 = vperm.xlu0 %392, %v390
    %v394 = vpop.permute.xlu0 %393
    %396 = vset.pattern.permute.xlu0 1
    %397 = vperm.xlu0 %396, %v390
    %v398 = vpop.permute.xlu0 %397
    %400 = vset.pattern.permute.xlu0 2
    %401 = vperm.xlu0 %400, %v390
    %v402 = vpop.permute.xlu0 %401
    %404 = vset.pattern.permute.xlu0 3
    %405 = vperm.xlu0 %404, %v390
    %v406 = vpop.permute.xlu0 %405
    %408 = vset.pattern.permute.xlu0 4
    %409 = vperm.xlu0 %408, %v390
    %v410 = vpop.permute.xlu0 %409
    %v412 = vlaneseq
    %v413 = vshrl.u32 %v412, 7
    %v414 = vadd.s32 %v413, 8
    %v415 = vadd.s32 %v413, 16
    %v416 = vadd.s32 %v413, 24
    %vm417 = vcmp.lt.s32.totalorder %v413, 0
    %v418 = vsub.s32 0, %v413
    %v419 = vsel %vm417, %v418, %v413
    %v420 = vshrl.u32 %v419, 4
    %v421 = vand.u32 %v419, 15
    %v422 = vsub.s32 0, %v421
    %v423 = vsel %vm417, %v422, %v421
    %vm424 = vcmp.lt.s32.totalorder %v414, 0
    %v425 = vsub.s32 0, %v414
    %v426 = vsel %vm424, %v425, %v414
    %v427 = vshrl.u32 %v426, 4
    %v428 = vand.u32 %v426, 15
    %v429 = vsub.s32 0, %v428
    %v430 = vsel %vm424, %v429, %v428
    %vm431 = vcmp.lt.s32.totalorder %v415, 0
    %v432 = vsub.s32 0, %v415
    %v433 = vsel %vm431, %v432, %v415
    %v434 = vshrl.u32 %v433, 4
    %v435 = vand.u32 %v433, 15
    %v436 = vsub.s32 0, %v435
    %v437 = vsel %vm431, %v436, %v435
    %vm438 = vcmp.lt.s32.totalorder %v416, 0
    %v439 = vsub.s32 0, %v416
    %v440 = vsel %vm438, %v439, %v416
    %v441 = vshrl.u32 %v440, 4
    %v442 = vand.u32 %v440, 15
    %v443 = vsub.s32 0, %v442
    %v444 = vsel %vm438, %v443, %v442
    %vm445 = vcmp.ne.s32.totalorder %v423, 0
    %vm446 = vcmp.ne.s32.totalorder %v430, 0
    %vm447 = vcmp.ne.s32.totalorder %v437, 0
    %vm448 = vcmp.ne.s32.totalorder %v444, 0
    %vm449 = vcmp.lt.s32.totalorder %v423, 0
    %vm450 = vcmp.lt.s32.totalorder %v430, 0
    %vm451 = vcmp.lt.s32.totalorder %v437, 0
    %vm452 = vcmp.lt.s32.totalorder %v444, 0
    %vm453 = vmand %vm449, %vm445
    %vm454 = vmand %vm450, %vm446
    %vm455 = vmand %vm451, %vm447
    %vm456 = vmand %vm452, %vm448
    %v457 = vadd.s32 %v423, 16
    %v458 = vadd.s32 %v430, 16
    %v459 = vadd.s32 %v437, 16
    %v460 = vadd.s32 %v444, 16
    %v461 = vsel %vm453, %v457, %v423
    %v462 = vsel %vm454, %v458, %v430
    %v463 = vsel %vm455, %v459, %v437
    %v464 = vsel %vm456, %v460, %v444
    %v465 = vld [vmem:[%s12] sm:$0x1f]
    %v466 = vld [vmem:[%s12 + $0x8] sm:$0x1f]
    %v467 = vld [vmem:[%s12 + $0x10] sm:$0x1f]
    %v468 = vld [vmem:[%s11] sm:$0xff]
    %v469 = vld [vmem:[%s11 + $0x8] sm:$0xf]
    %v470 = vld [vmem:[%s11 + $0xd8] sm:$0xff]
    %v471 = vld [vmem:[%s11 + $0xe0] sm:$0xf]
    %v472 = vld [vmem:[%s11 + $0x1b0] sm:$0xff]
    %v473 = vld [vmem:[%s11 + $0x1b8] sm:$0xf]
    %v474 = vld [vmem:[%s11 + $0x288] sm:$0xff]
    %v475 = vld [vmem:[%s11 + $0x290] sm:$0xf]
    %v480 = vunpack.c.l.b16 %v64
    %v481 = vunpack.c.l.b16 %v65
    %v482 = vunpack.c.l.b16 %v66
    %v483 = vunpack.c.l.b16 %v67
    %v484 = vpack.c.b16 %v481, %v480
    %v485 = vpack.c.b16 %v483, %v482
    %v494 = vunpack.c.l.b16 %v468
    %v495 = vunpack.c.h.b16 %v468
    %v496 = vunpack.c.l.b16 %v469
    %v497 = vunpack.c.l.b16 %v470
    %v498 = vunpack.c.h.b16 %v470
    %v499 = vunpack.c.l.b16 %v471
    %v500 = vunpack.c.l.b16 %v472
    %v501 = vunpack.c.h.b16 %v472
    %v502 = vunpack.c.l.b16 %v473
    %v503 = vunpack.c.l.b16 %v474
    %v504 = vunpack.c.h.b16 %v474
    %v505 = vunpack.c.l.b16 %v475
    %v506 = vpack.c.b16 %v497, %v494
    %v507 = vpack.c.b16 %v498, %v495
    %v508 = vpack.c.b16 %v499, %v496
    %v509 = vpack.c.b16 %v503, %v500
    %v510 = vpack.c.b16 %v504, %v501
    %v511 = vpack.c.b16 %v505, %v502
    %v519 = vsel %vm82, %v484, 0
    %v522 = vsel %vm82, %v485, 0
    %524 = vmatpush.bf16.msra.mxu0 0
    %525 = vmatpush.bf16.msra.mxu0 0
    %526 = vmatpush.bf16.msra.mxu0 0
    %527 = vmatpush.bf16.msra.mxu0 0
    %528 = vmatpush.bf16.msra.mxu0 0
    %529 = vmatpush.bf16.msra.mxu0 0
    %530 = vmatpush.bf16.msra.mxu0 %v509
    %531 = vmatpush.bf16.msra.mxu0 %v506
    %532 = vmatmul.bf16.gmra.mxu0 %v519
    %v533 = vpop.f32.mrf.mxu0
    %v534 = vadd.f32 0.0, %v533
    %v535 = vpop.f32.mrf.mxu0
    %v536 = vadd.f32 0.0, %v535
    %537 = vmatmul.bf16.gmra.mxu0 %v522
    %v538 = vpop.f32.mrf.mxu0
    %v539 = vadd.f32 0.0, %v538
    %v540 = vpop.f32.mrf.mxu0
    %v541 = vadd.f32 0.0, %v540
    %542 = vdwg.mxu0
    %543 = vmatpush.bf16.msra.mxu0 0
    %544 = vmatpush.bf16.msra.mxu0 0
    %545 = vmatpush.bf16.msra.mxu0 0
    %546 = vmatpush.bf16.msra.mxu0 0
    %547 = vmatpush.bf16.msra.mxu0 0
    %548 = vmatpush.bf16.msra.mxu0 0
    %549 = vmatpush.bf16.msra.mxu0 %v510
    %550 = vmatpush.bf16.msra.mxu0 %v507
    %551 = vmatmul.bf16.gmra.mxu0 %v519
    %v552 = vpop.f32.mrf.mxu0
    %v553 = vadd.f32 0.0, %v552
    %v554 = vpop.f32.mrf.mxu0
    %v555 = vadd.f32 0.0, %v554
    %556 = vmatmul.bf16.gmra.mxu0 %v522
    %v557 = vpop.f32.mrf.mxu0
    %v558 = vadd.f32 0.0, %v557
    %v559 = vpop.f32.mrf.mxu0
    %v560 = vadd.f32 0.0, %v559
    %561 = vdwg.mxu0
    %562 = vmatpush.bf16.msra.mxu0 0
    %563 = vmatpush.bf16.msra.mxu0 0
    %564 = vmatpush.bf16.msra.mxu0 0
    %565 = vmatpush.bf16.msra.mxu0 0
    %566 = vmatpush.bf16.msra.mxu0 0
    %567 = vmatpush.bf16.msra.mxu0 0
    %568 = vmatpush.bf16.msra.mxu0 %v511
    %569 = vmatpush.bf16.msra.mxu0 %v508
    %570 = vmatmul.bf16.gmra.mxu0 %v519
    %v571 = vpop.f32.mrf.mxu0
    %v572 = vadd.f32 0.0, %v571
    %v573 = vpop.f32.mrf.mxu0
    %v574 = vadd.f32 0.0, %v573
    %575 = vmatmul.bf16.gmra.mxu0 %v522
    %v576 = vpop.f32.mrf.mxu0
    %v577 = vadd.f32 0.0, %v576
    %v578 = vpop.f32.mrf.mxu0
    %v579 = vadd.f32 0.0, %v578
    %580 = vdwg.mxu0
    %vm581 = vcmp.le.s32.totalorder %v461, 15
    %vm582 = vcmp.le.s32.totalorder %v462, 15
    %vm583 = vcmp.le.s32.totalorder %v463, 15
    %vm584 = vcmp.le.s32.totalorder %v464, 15
    %v585 = vsel %vm581, 1, 0
    %v586 = vsel %vm582, 1, 0
    %v587 = vsel %vm583, 1, 0
    %v588 = vsel %vm584, 1, 0
    %vm589 = vcmp.eq.s32.totalorder %v585, 1
    %vm590 = vcmp.eq.s32.totalorder %v586, 1
    %vm591 = vcmp.eq.s32.totalorder %v587, 1
    %vm592 = vcmp.eq.s32.totalorder %v588, 1
    %v593 = vsel %vm589, %v534, -1e+30
    %v594 = vsel %vm589, %v553, -1e+30
    %v595 = vsel %vm589, %v572, -1e+30
    %v596 = vsel %vm590, %v536, -1e+30
    %v597 = vsel %vm590, %v555, -1e+30
    %v598 = vsel %vm590, %v574, -1e+30
    %v599 = vsel %vm591, %v539, -1e+30
    %v600 = vsel %vm591, %v558, -1e+30
    %v601 = vsel %vm591, %v577, -1e+30
    %v602 = vsel %vm592, %v541, -1e+30
    %v603 = vsel %vm592, %v560, -1e+30
    %v604 = vsel %vm592, %v579, -1e+30
    %v605 = vmax.f32 %v593, %v596
    %v606 = vrot.slane %v605, 4
    %v607 = vmax.f32 %v605, %v606
    %v608 = vrot.slane %v607, 2
    %v609 = vmax.f32 %v607, %v608
    %v610 = vrot.slane %v609, 1
    %v611 = vmax.f32 %v609, %v610
    %v612 = vmax.f32 %v594, %v597
    %v613 = vrot.slane %v612, 4
    %v614 = vmax.f32 %v612, %v613
    %v615 = vrot.slane %v614, 2
    %v616 = vmax.f32 %v614, %v615
    %v617 = vrot.slane %v616, 1
    %v618 = vmax.f32 %v616, %v617
    %v619 = vsel %vm242, %v595, -inf
    %v620 = vsel %vm242, %v598, -inf
    %v621 = vmax.f32 %v619, %v620
    %v622 = vrot.slane %v621, 4
    %v623 = vmax.f32 %v621, %v622
    %v624 = vrot.slane %v623, 2
    %v625 = vmax.f32 %v623, %v624
    %v626 = vrot.slane %v625, 1
    %v627 = vmax.f32 %v625, %v626
    %v628 = vmax.f32 %v599, %v602
    %v629 = vrot.slane %v628, 4
    %v630 = vmax.f32 %v628, %v629
    %v631 = vrot.slane %v630, 2
    %v632 = vmax.f32 %v630, %v631
    %v633 = vrot.slane %v632, 1
    %v634 = vmax.f32 %v632, %v633
    %v635 = vmax.f32 %v600, %v603
    %v636 = vrot.slane %v635, 4
    %v637 = vmax.f32 %v635, %v636
    %v638 = vrot.slane %v637, 2
    %v639 = vmax.f32 %v637, %v638
    %v640 = vrot.slane %v639, 1
    %v641 = vmax.f32 %v639, %v640
    %v642 = vsel %vm242, %v601, -inf
    %v643 = vsel %vm242, %v604, -inf
    %v644 = vmax.f32 %v642, %v643
    %v645 = vrot.slane %v644, 4
    %v646 = vmax.f32 %v644, %v645
    %v647 = vrot.slane %v646, 2
    %v648 = vmax.f32 %v646, %v647
    %v649 = vrot.slane %v648, 1
    %v650 = vmax.f32 %v648, %v649
    %v651 = vperm.slane %v465, 0
    %v652 = vperm.slane %v466, 0
    %v653 = vperm.slane %v467, 0
    %v654 = vadd.f32 %v611, %v651
    %v655 = vadd.f32 %v618, %v652
    %v656 = vadd.f32 %v627, %v653
    %v657 = vadd.f32 %v634, %v651
    %v658 = vadd.f32 %v641, %v652
    %v659 = vadd.f32 %v650, %v653
    %v662 = vrot.slane %v657, 7
    %v663 = vsel %vm121, %v662, %v654
    %v665 = vmul.f32 %v394, %v663
    %666 = vrot.lane.b32.xlu0 %v663, 64
    %v667 = vpop.permute.xlu0 %666
    %v669 = vmul.f32 %v398, %v667
    %v670 = vadd.f32 %v665, %v669
    %v673 = vrot.slane %v658, 7
    %v674 = vsel %vm121, %v673, %v655
    %v676 = vmul.f32 %v402, %v674
    %v677 = vadd.f32 %v670, %v676
    %678 = vrot.lane.b32.xlu0 %v674, 64
    %v679 = vpop.permute.xlu0 %678
    %v681 = vmul.f32 %v406, %v679
    %v682 = vadd.f32 %v677, %v681
    %v685 = vrot.slane %v659, 7
    %v686 = vsel %vm121, %v685, %v656
    %v688 = vmul.f32 %v410, %v686
    %v689 = vadd.f32 %v682, %v688
    %v690 = vld [vmem:[%s11 + $0xc] sm:$0xff]
    %v691 = vld [vmem:[%s11 + $0x14] sm:$0xff]
    %v692 = vld [vmem:[%s11 + $0x1c] sm:$0xf]
    %v693 = vld [vmem:[%s11 + $0xe4] sm:$0xff]
    %v694 = vld [vmem:[%s11 + $0xec] sm:$0xff]
    %v695 = vld [vmem:[%s11 + $0xf4] sm:$0xf]
    %v696 = vld [vmem:[%s11 + $0x1bc] sm:$0xff]
    %v697 = vld [vmem:[%s11 + $0x1c4] sm:$0xff]
    %v698 = vld [vmem:[%s11 + $0x1cc] sm:$0xf]
    %v699 = vld [vmem:[%s11 + $0x294] sm:$0xff]
    %v700 = vld [vmem:[%s11 + $0x29c] sm:$0xff]
    %v701 = vld [vmem:[%s11 + $0x2a4] sm:$0xf]
    %v714 = vunpack.c.l.b16 %v690
    %v715 = vunpack.c.h.b16 %v690
    %v716 = vunpack.c.l.b16 %v691
    %v717 = vunpack.c.h.b16 %v691
    %v718 = vunpack.c.l.b16 %v692
    %v719 = vunpack.c.l.b16 %v693
    %v720 = vunpack.c.h.b16 %v693
    %v721 = vunpack.c.l.b16 %v694
    %v722 = vunpack.c.h.b16 %v694
    %v723 = vunpack.c.l.b16 %v695
    %v724 = vunpack.c.l.b16 %v696
    %v725 = vunpack.c.h.b16 %v696
    %v726 = vunpack.c.l.b16 %v697
    %v727 = vunpack.c.h.b16 %v697
    %v728 = vunpack.c.l.b16 %v698
    %v729 = vunpack.c.l.b16 %v699
    %v730 = vunpack.c.h.b16 %v699
    %v731 = vunpack.c.l.b16 %v700
    %v732 = vunpack.c.h.b16 %v700
    %v733 = vunpack.c.l.b16 %v701
    %v734 = vpack.c.b16 %v719, %v714
    %v735 = vpack.c.b16 %v720, %v715
    %v736 = vpack.c.b16 %v721, %v716
    %v737 = vpack.c.b16 %v722, %v717
    %v738 = vpack.c.b16 %v723, %v718
    %v739 = vpack.c.b16 %v729, %v724
    %v740 = vpack.c.b16 %v730, %v725
    %v741 = vpack.c.b16 %v731, %v726
    %v742 = vpack.c.b16 %v732, %v727
    %v743 = vpack.c.b16 %v733, %v728
    %754 = vmatpush.bf16.msra.mxu0 0
    %755 = vmatpush.bf16.msra.mxu0 0
    %756 = vmatpush.bf16.msra.mxu0 0
    %757 = vmatpush.bf16.msra.mxu0 0
    %758 = vmatpush.bf16.msra.mxu0 0
    %759 = vmatpush.bf16.msra.mxu0 0
    %760 = vmatpush.bf16.msra.mxu0 %v739
    %761 = vmatpush.bf16.msra.mxu0 %v734
    %762 = vmatmul.bf16.gmra.mxu0 %v519
    %v763 = vpop.f32.mrf.mxu0
    %v764 = vadd.f32 0.0, %v763
    %v765 = vpop.f32.mrf.mxu0
    %v766 = vadd.f32 0.0, %v765
    %767 = vmatmul.bf16.gmra.mxu0 %v522
    %v768 = vpop.f32.mrf.mxu0
    %v769 = vadd.f32 0.0, %v768
    %v770 = vpop.f32.mrf.mxu0
    %v771 = vadd.f32 0.0, %v770
    %772 = vdwg.mxu0
    %773 = vmatpush.bf16.msra.mxu0 0
    %774 = vmatpush.bf16.msra.mxu0 0
    %775 = vmatpush.bf16.msra.mxu0 0
    %776 = vmatpush.bf16.msra.mxu0 0
    %777 = vmatpush.bf16.msra.mxu0 0
    %778 = vmatpush.bf16.msra.mxu0 0
    %779 = vmatpush.bf16.msra.mxu0 %v740
    %780 = vmatpush.bf16.msra.mxu0 %v735
    %781 = vmatmul.bf16.gmra.mxu0 %v519
    %v782 = vpop.f32.mrf.mxu0
    %v783 = vadd.f32 0.0, %v782
    %v784 = vpop.f32.mrf.mxu0
    %v785 = vadd.f32 0.0, %v784
    %786 = vmatmul.bf16.gmra.mxu0 %v522
    %v787 = vpop.f32.mrf.mxu0
    %v788 = vadd.f32 0.0, %v787
    %v789 = vpop.f32.mrf.mxu0
    %v790 = vadd.f32 0.0, %v789
    %791 = vdwg.mxu0
    %792 = vmatpush.bf16.msra.mxu0 0
    %793 = vmatpush.bf16.msra.mxu0 0
    %794 = vmatpush.bf16.msra.mxu0 0
    %795 = vmatpush.bf16.msra.mxu0 0
    %796 = vmatpush.bf16.msra.mxu0 0
    %797 = vmatpush.bf16.msra.mxu0 0
    %798 = vmatpush.bf16.msra.mxu0 %v741
    %799 = vmatpush.bf16.msra.mxu0 %v736
    %800 = vmatmul.bf16.gmra.mxu0 %v519
    %v801 = vpop.f32.mrf.mxu0
    %v802 = vadd.f32 0.0, %v801
    %v803 = vpop.f32.mrf.mxu0
    %v804 = vadd.f32 0.0, %v803
    %805 = vmatmul.bf16.gmra.mxu0 %v522
    %v806 = vpop.f32.mrf.mxu0
    %v807 = vadd.f32 0.0, %v806
    %v808 = vpop.f32.mrf.mxu0
    %v809 = vadd.f32 0.0, %v808
    %810 = vdwg.mxu0
    %811 = vmatpush.bf16.msra.mxu0 0
    %812 = vmatpush.bf16.msra.mxu0 0
    %813 = vmatpush.bf16.msra.mxu0 0
    %814 = vmatpush.bf16.msra.mxu0 0
    %815 = vmatpush.bf16.msra.mxu0 0
    %816 = vmatpush.bf16.msra.mxu0 0
    %817 = vmatpush.bf16.msra.mxu0 %v742
    %818 = vmatpush.bf16.msra.mxu0 %v737
    %819 = vmatmul.bf16.gmra.mxu0 %v519
    %v820 = vpop.f32.mrf.mxu0
    %v821 = vadd.f32 0.0, %v820
    %v822 = vpop.f32.mrf.mxu0
    %v823 = vadd.f32 0.0, %v822
    %824 = vmatmul.bf16.gmra.mxu0 %v522
    %v825 = vpop.f32.mrf.mxu0
    %v826 = vadd.f32 0.0, %v825
    %v827 = vpop.f32.mrf.mxu0
    %v828 = vadd.f32 0.0, %v827
    %829 = vdwg.mxu0
    %830 = vmatpush.bf16.msra.mxu0 0
    %831 = vmatpush.bf16.msra.mxu0 0
    %832 = vmatpush.bf16.msra.mxu0 0
    %833 = vmatpush.bf16.msra.mxu0 0
    %834 = vmatpush.bf16.msra.mxu0 0
    %835 = vmatpush.bf16.msra.mxu0 0
    %836 = vmatpush.bf16.msra.mxu0 %v743
    %837 = vmatpush.bf16.msra.mxu0 %v738
    %838 = vmatmul.bf16.gmra.mxu0 %v519
    %v839 = vpop.f32.mrf.mxu0
    %v840 = vadd.f32 0.0, %v839
    %v841 = vpop.f32.mrf.mxu0
    %v842 = vadd.f32 0.0, %v841
    %843 = vmatmul.bf16.gmra.mxu0 %v522
    %v844 = vpop.f32.mrf.mxu0
    %v845 = vadd.f32 0.0, %v844
    %v846 = vpop.f32.mrf.mxu0
    %v847 = vadd.f32 0.0, %v846
    %848 = vdwg.mxu0
    %861 = vrot.lane.b32.xlu0 %v802, 64
    %v862 = vpop.permute.xlu0 %861
    %863 = vrot.lane.b32.xlu0 %v821, 64
    %v864 = vpop.permute.xlu0 %863
    %865 = vrot.lane.b32.xlu0 %v840, 64
    %v866 = vpop.permute.xlu0 %865
    %867 = vrot.lane.b32.xlu0 %v804, 64
    %v868 = vpop.permute.xlu0 %867
    %869 = vrot.lane.b32.xlu0 %v823, 64
    %v870 = vpop.permute.xlu0 %869
    %871 = vrot.lane.b32.xlu0 %v842, 64
    %v872 = vpop.permute.xlu0 %871
    %873 = vrot.lane.b32.xlu0 %v807, 64
    %v874 = vpop.permute.xlu0 %873
    %875 = vrot.lane.b32.xlu0 %v826, 64
    %v876 = vpop.permute.xlu0 %875
    %877 = vrot.lane.b32.xlu0 %v845, 64
    %v878 = vpop.permute.xlu0 %877
    %879 = vrot.lane.b32.xlu0 %v809, 64
    %v880 = vpop.permute.xlu0 %879
    %881 = vrot.lane.b32.xlu0 %v828, 64
    %v882 = vpop.permute.xlu0 %881
    %883 = vrot.lane.b32.xlu0 %v847, 64
    %v884 = vpop.permute.xlu0 %883
    %v885 = vsel %vm242, %v862, %v864
    %v886 = vsel %vm242, %v864, %v866
    %v887 = vsel %vm242, %v868, %v870
    %v888 = vsel %vm242, %v870, %v872
    %v889 = vsel %vm242, %v874, %v876
    %v890 = vsel %vm242, %v876, %v878
    %v891 = vsel %vm242, %v880, %v882
    %v892 = vsel %vm242, %v882, %v884
    %v905 = vrot.slane %v885, 1
    %v906 = vrot.slane %v886, 1
    %v907 = vrot.slane %v866, 1
    %v908 = vrot.slane %v887, 1
    %v909 = vrot.slane %v888, 1
    %v910 = vrot.slane %v872, 1
    %v911 = vrot.slane %v889, 1
    %v912 = vrot.slane %v890, 1
    %v913 = vrot.slane %v878, 1
    %v914 = vrot.slane %v891, 1
    %v915 = vrot.slane %v892, 1
    %v916 = vrot.slane %v884, 1
    %vm917 = vcmp.lt.s32.totalorder %v413, 7
    %v918 = vsel %vm917, %v911, %v914
    %v919 = vsel %vm917, %v912, %v915
    %v920 = vsel %vm917, %v913, %v916
    %v921 = vsel %vm917, %v908, %v911
    %v922 = vsel %vm917, %v909, %v912
    %v923 = vsel %vm917, %v910, %v913
    %v924 = vsel %vm917, %v905, %v908
    %v925 = vsel %vm917, %v906, %v909
    %v926 = vsel %vm917, %v907, %v910
    %v927 = vsel %vm917, %v914, %v905
    %v928 = vsel %vm917, %v915, %v906
    %v929 = vsel %vm917, %v916, %v907
    %v930 = vadd.f32 %v764, %v924
    %v931 = vadd.f32 %v783, %v925
    %v932 = vadd.f32 %v802, %v926
    %v933 = vadd.f32 %v766, %v921
    %v934 = vadd.f32 %v785, %v922
    %v935 = vadd.f32 %v804, %v923
    %v936 = vadd.f32 %v769, %v918
    %v937 = vadd.f32 %v788, %v919
    %v938 = vadd.f32 %v807, %v920
    %v939 = vadd.f32 %v771, %v927
    %v940 = vadd.f32 %v790, %v928
    %v941 = vadd.f32 %v809, %v929
    %vm942 = vcmp.le.s32.totalorder %v461, 14
    %vm943 = vcmp.le.s32.totalorder %v462, 14
    %vm944 = vcmp.le.s32.totalorder %v463, 14
    %vm945 = vcmp.le.s32.totalorder %v464, 14
    %v946 = vsel %vm942, 1, 0
    %v947 = vsel %vm943, 1, 0
    %v948 = vsel %vm944, 1, 0
    %v949 = vsel %vm945, 1, 0
    %vm950 = vcmp.eq.s32.totalorder %v946, 1
    %vm951 = vcmp.eq.s32.totalorder %v947, 1
    %vm952 = vcmp.eq.s32.totalorder %v948, 1
    %vm953 = vcmp.eq.s32.totalorder %v949, 1
    %v954 = vsel %vm950, %v930, -1e+30
    %v955 = vsel %vm950, %v931, -1e+30
    %v956 = vsel %vm950, %v932, -1e+30
    %v957 = vsel %vm951, %v933, -1e+30
    %v958 = vsel %vm951, %v934, -1e+30
    %v959 = vsel %vm951, %v935, -1e+30
    %v960 = vsel %vm952, %v936, -1e+30
    %v961 = vsel %vm952, %v937, -1e+30
    %v962 = vsel %vm952, %v938, -1e+30
    %v963 = vsel %vm953, %v939, -1e+30
    %v964 = vsel %vm953, %v940, -1e+30
    %v965 = vsel %vm953, %v941, -1e+30
    %v966 = vmax.f32 %v954, %v957
    %v967 = vrot.slane %v966, 4
    %v968 = vmax.f32 %v966, %v967
    %v969 = vrot.slane %v968, 2
    %v970 = vmax.f32 %v968, %v969
    %v971 = vrot.slane %v970, 1
    %v972 = vmax.f32 %v970, %v971
    %v973 = vmax.f32 %v955, %v958
    %v974 = vrot.slane %v973, 4
    %v975 = vmax.f32 %v973, %v974
    %v976 = vrot.slane %v975, 2
    %v977 = vmax.f32 %v975, %v976
    %v978 = vrot.slane %v977, 1
    %v979 = vmax.f32 %v977, %v978
    %v980 = vsel %vm242, %v956, -inf
    %v981 = vsel %vm242, %v959, -inf
    %v982 = vmax.f32 %v980, %v981
    %v983 = vrot.slane %v982, 4
    %v984 = vmax.f32 %v982, %v983
    %v985 = vrot.slane %v984, 2
    %v986 = vmax.f32 %v984, %v985
    %v987 = vrot.slane %v986, 1
    %v988 = vmax.f32 %v986, %v987
    %v989 = vmax.f32 %v960, %v963
    %v990 = vrot.slane %v989, 4
    %v991 = vmax.f32 %v989, %v990
    %v992 = vrot.slane %v991, 2
    %v993 = vmax.f32 %v991, %v992
    %v994 = vrot.slane %v993, 1
    %v995 = vmax.f32 %v993, %v994
    %v996 = vmax.f32 %v961, %v964
    %v997 = vrot.slane %v996, 4
    %v998 = vmax.f32 %v996, %v997
    %v999 = vrot.slane %v998, 2
    %v1000 = vmax.f32 %v998, %v999
    %v1001 = vrot.slane %v1000, 1
    %v1002 = vmax.f32 %v1000, %v1001
    %v1003 = vsel %vm242, %v962, -inf
    %v1004 = vsel %vm242, %v965, -inf
    %v1005 = vmax.f32 %v1003, %v1004
    %v1006 = vrot.slane %v1005, 4
    %v1007 = vmax.f32 %v1005, %v1006
    %v1008 = vrot.slane %v1007, 2
    %v1009 = vmax.f32 %v1007, %v1008
    %v1010 = vrot.slane %v1009, 1
    %v1011 = vmax.f32 %v1009, %v1010
    %v1012 = vperm.slane %v465, 1
    %v1013 = vperm.slane %v466, 1
    %v1014 = vperm.slane %v467, 1
    %v1015 = vadd.f32 %v972, %v1012
    %v1016 = vadd.f32 %v979, %v1013
    %v1017 = vadd.f32 %v988, %v1014
    %v1018 = vadd.f32 %v995, %v1012
    %v1019 = vadd.f32 %v1002, %v1013
    %v1020 = vadd.f32 %v1011, %v1014
    %v1023 = vrot.slane %v1018, 7
    %v1024 = vsel %vm121, %v1023, %v1015
    %v1026 = vmul.f32 %v394, %v1024
    %1027 = vrot.lane.b32.xlu0 %v1024, 64
    %v1028 = vpop.permute.xlu0 %1027
    %v1030 = vmul.f32 %v398, %v1028
    %v1031 = vadd.f32 %v1026, %v1030
    %v1034 = vrot.slane %v1019, 7
    %v1035 = vsel %vm121, %v1034, %v1016
    %v1037 = vmul.f32 %v402, %v1035
    %v1038 = vadd.f32 %v1031, %v1037
    %1039 = vrot.lane.b32.xlu0 %v1035, 64
    %v1040 = vpop.permute.xlu0 %1039
    %v1042 = vmul.f32 %v406, %v1040
    %v1043 = vadd.f32 %v1038, %v1042
    %v1046 = vrot.slane %v1020, 7
    %v1047 = vsel %vm121, %v1046, %v1017
    %v1049 = vmul.f32 %v410, %v1047
    %v1050 = vadd.f32 %v1043, %v1049
    %v1051 = vld [vmem:[%s11 + $0x20] sm:$0xff]
    %v1052 = vld [vmem:[%s11 + $0x28] sm:$0xff]
    %v1053 = vld [vmem:[%s11 + $0x30] sm:$0xff]
    %v1054 = vld [vmem:[%s11 + $0x38] sm:$0xff]
    %v1055 = vld [vmem:[%s11 + $0xf8] sm:$0xff]
    %v1056 = vld [vmem:[%s11 + $0x100] sm:$0xff]
    %v1057 = vld [vmem:[%s11 + $0x108] sm:$0xff]
    %v1058 = vld [vmem:[%s11 + $0x110] sm:$0xff]
    %v1059 = vld [vmem:[%s11 + $0x1d0] sm:$0xff]
    %v1060 = vld [vmem:[%s11 + $0x1d8] sm:$0xff]
    %v1061 = vld [vmem:[%s11 + $0x1e0] sm:$0xff]
    %v1062 = vld [vmem:[%s11 + $0x1e8] sm:$0xff]
    %v1063 = vld [vmem:[%s11 + $0x2a8] sm:$0xff]
    %v1064 = vld [vmem:[%s11 + $0x2b0] sm:$0xff]
    %v1065 = vld [vmem:[%s11 + $0x2b8] sm:$0xff]
    %v1066 = vld [vmem:[%s11 + $0x2c0] sm:$0xff]
    %v1083 = vunpack.c.l.b16 %v1051
    %v1084 = vunpack.c.h.b16 %v1051
    %v1085 = vunpack.c.l.b16 %v1052
    %v1086 = vunpack.c.h.b16 %v1052
    %v1087 = vunpack.c.l.b16 %v1053
    %v1088 = vunpack.c.h.b16 %v1053
    %v1089 = vunpack.c.l.b16 %v1054
    %v1090 = vunpack.c.h.b16 %v1054
    %v1091 = vunpack.c.l.b16 %v1055
    %v1092 = vunpack.c.h.b16 %v1055
    %v1093 = vunpack.c.l.b16 %v1056
    %v1094 = vunpack.c.h.b16 %v1056
    %v1095 = vunpack.c.l.b16 %v1057
    %v1096 = vunpack.c.h.b16 %v1057
    %v1097 = vunpack.c.l.b16 %v1058
    %v1098 = vunpack.c.h.b16 %v1058
    %v1099 = vunpack.c.l.b16 %v1059
    %v1100 = vunpack.c.h.b16 %v1059
    %v1101 = vunpack.c.l.b16 %v1060
    %v1102 = vunpack.c.h.b16 %v1060
    %v1103 = vunpack.c.l.b16 %v1061
    %v1104 = vunpack.c.h.b16 %v1061
    %v1105 = vunpack.c.l.b16 %v1062
    %v1106 = vunpack.c.h.b16 %v1062
    %v1107 = vunpack.c.l.b16 %v1063
    %v1108 = vunpack.c.h.b16 %v1063
    %v1109 = vunpack.c.l.b16 %v1064
    %v1110 = vunpack.c.h.b16 %v1064
    %v1111 = vunpack.c.l.b16 %v1065
    %v1112 = vunpack.c.h.b16 %v1065
    %v1113 = vunpack.c.l.b16 %v1066
    %v1114 = vunpack.c.h.b16 %v1066
    %v1115 = vpack.c.b16 %v1091, %v1083
    %v1116 = vpack.c.b16 %v1092, %v1084
    %v1117 = vpack.c.b16 %v1093, %v1085
    %v1118 = vpack.c.b16 %v1094, %v1086
    %v1119 = vpack.c.b16 %v1095, %v1087
    %v1120 = vpack.c.b16 %v1096, %v1088
    %v1121 = vpack.c.b16 %v1097, %v1089
    %v1122 = vpack.c.b16 %v1098, %v1090
    %v1123 = vpack.c.b16 %v1107, %v1099
    %v1124 = vpack.c.b16 %v1108, %v1100
    %v1125 = vpack.c.b16 %v1109, %v1101
    %v1126 = vpack.c.b16 %v1110, %v1102
    %v1127 = vpack.c.b16 %v1111, %v1103
    %v1128 = vpack.c.b16 %v1112, %v1104
    %v1129 = vpack.c.b16 %v1113, %v1105
    %v1130 = vpack.c.b16 %v1114, %v1106
    %1147 = vmatpush.bf16.msra.mxu0 0
    %1148 = vmatpush.bf16.msra.mxu0 0
    %1149 = vmatpush.bf16.msra.mxu0 0
    %1150 = vmatpush.bf16.msra.mxu0 0
    %1151 = vmatpush.bf16.msra.mxu0 0
    %1152 = vmatpush.bf16.msra.mxu0 0
    %1153 = vmatpush.bf16.msra.mxu0 %v1123
    %1154 = vmatpush.bf16.msra.mxu0 %v1115
    %1155 = vmatmul.bf16.gmra.mxu0 %v519
    %v1156 = vpop.f32.mrf.mxu0
    %v1157 = vadd.f32 0.0, %v1156
    %v1158 = vpop.f32.mrf.mxu0
    %v1159 = vadd.f32 0.0, %v1158
    %1160 = vmatmul.bf16.gmra.mxu0 %v522
    %v1161 = vpop.f32.mrf.mxu0
    %v1162 = vadd.f32 0.0, %v1161
    %v1163 = vpop.f32.mrf.mxu0
    %v1164 = vadd.f32 0.0, %v1163
    %1165 = vdwg.mxu0
    %1166 = vmatpush.bf16.msra.mxu0 0
    %1167 = vmatpush.bf16.msra.mxu0 0
    %1168 = vmatpush.bf16.msra.mxu0 0
    %1169 = vmatpush.bf16.msra.mxu0 0
    %1170 = vmatpush.bf16.msra.mxu0 0
    %1171 = vmatpush.bf16.msra.mxu0 0
    %1172 = vmatpush.bf16.msra.mxu0 %v1124
    %1173 = vmatpush.bf16.msra.mxu0 %v1116
    %1174 = vmatmul.bf16.gmra.mxu0 %v519
    %v1175 = vpop.f32.mrf.mxu0
    %v1176 = vadd.f32 0.0, %v1175
    %v1177 = vpop.f32.mrf.mxu0
    %v1178 = vadd.f32 0.0, %v1177
    %1179 = vmatmul.bf16.gmra.mxu0 %v522
    %v1180 = vpop.f32.mrf.mxu0
    %v1181 = vadd.f32 0.0, %v1180
    %v1182 = vpop.f32.mrf.mxu0
    %v1183 = vadd.f32 0.0, %v1182
    %1184 = vdwg.mxu0
    %1185 = vmatpush.bf16.msra.mxu0 0
    %1186 = vmatpush.bf16.msra.mxu0 0
    %1187 = vmatpush.bf16.msra.mxu0 0
    %1188 = vmatpush.bf16.msra.mxu0 0
    %1189 = vmatpush.bf16.msra.mxu0 0
    %1190 = vmatpush.bf16.msra.mxu0 0
    %1191 = vmatpush.bf16.msra.mxu0 %v1125
    %1192 = vmatpush.bf16.msra.mxu0 %v1117
    %1193 = vmatmul.bf16.gmra.mxu0 %v519
    %v1194 = vpop.f32.mrf.mxu0
    %v1195 = vadd.f32 0.0, %v1194
    %v1196 = vpop.f32.mrf.mxu0
    %v1197 = vadd.f32 0.0, %v1196
    %1198 = vmatmul.bf16.gmra.mxu0 %v522
    %v1199 = vpop.f32.mrf.mxu0
    %v1200 = vadd.f32 0.0, %v1199
    %v1201 = vpop.f32.mrf.mxu0
    %v1202 = vadd.f32 0.0, %v1201
    %1203 = vdwg.mxu0
    %1204 = vmatpush.bf16.msra.mxu0 0
    %1205 = vmatpush.bf16.msra.mxu0 0
    %1206 = vmatpush.bf16.msra.mxu0 0
    %1207 = vmatpush.bf16.msra.mxu0 0
    %1208 = vmatpush.bf16.msra.mxu0 0
    %1209 = vmatpush.bf16.msra.mxu0 0
    %1210 = vmatpush.bf16.msra.mxu0 %v1126
    %1211 = vmatpush.bf16.msra.mxu0 %v1118
    %1212 = vmatmul.bf16.gmra.mxu0 %v519
    %v1213 = vpop.f32.mrf.mxu0
    %v1214 = vadd.f32 0.0, %v1213
    %v1215 = vpop.f32.mrf.mxu0
    %v1216 = vadd.f32 0.0, %v1215
    %1217 = vmatmul.bf16.gmra.mxu0 %v522
    %v1218 = vpop.f32.mrf.mxu0
    %v1219 = vadd.f32 0.0, %v1218
    %v1220 = vpop.f32.mrf.mxu0
    %v1221 = vadd.f32 0.0, %v1220
    %1222 = vdwg.mxu0
    %1223 = vmatpush.bf16.msra.mxu0 0
    %1224 = vmatpush.bf16.msra.mxu0 0
    %1225 = vmatpush.bf16.msra.mxu0 0
    %1226 = vmatpush.bf16.msra.mxu0 0
    %1227 = vmatpush.bf16.msra.mxu0 0
    %1228 = vmatpush.bf16.msra.mxu0 0
    %1229 = vmatpush.bf16.msra.mxu0 %v1127
    %1230 = vmatpush.bf16.msra.mxu0 %v1119
    %1231 = vmatmul.bf16.gmra.mxu0 %v519
    %v1232 = vpop.f32.mrf.mxu0
    %v1233 = vadd.f32 0.0, %v1232
    %v1234 = vpop.f32.mrf.mxu0
    %v1235 = vadd.f32 0.0, %v1234
    %1236 = vmatmul.bf16.gmra.mxu0 %v522
    %v1237 = vpop.f32.mrf.mxu0
    %v1238 = vadd.f32 0.0, %v1237
    %v1239 = vpop.f32.mrf.mxu0
    %v1240 = vadd.f32 0.0, %v1239
    %1241 = vdwg.mxu0
    %1242 = vmatpush.bf16.msra.mxu0 0
    %1243 = vmatpush.bf16.msra.mxu0 0
    %1244 = vmatpush.bf16.msra.mxu0 0
    %1245 = vmatpush.bf16.msra.mxu0 0
    %1246 = vmatpush.bf16.msra.mxu0 0
    %1247 = vmatpush.bf16.msra.mxu0 0
    %1248 = vmatpush.bf16.msra.mxu0 %v1128
    %1249 = vmatpush.bf16.msra.mxu0 %v1120
    %1250 = vmatmul.bf16.gmra.mxu0 %v519
    %v1251 = vpop.f32.mrf.mxu0
    %v1252 = vadd.f32 0.0, %v1251
    %v1253 = vpop.f32.mrf.mxu0
    %v1254 = vadd.f32 0.0, %v1253
    %1255 = vmatmul.bf16.gmra.mxu0 %v522
    %v1256 = vpop.f32.mrf.mxu0
    %v1257 = vadd.f32 0.0, %v1256
    %v1258 = vpop.f32.mrf.mxu0
    %v1259 = vadd.f32 0.0, %v1258
    %1260 = vdwg.mxu0
    %1261 = vmatpush.bf16.msra.mxu0 0
    %1262 = vmatpush.bf16.msra.mxu0 0
    %1263 = vmatpush.bf16.msra.mxu0 0
    %1264 = vmatpush.bf16.msra.mxu0 0
    %1265 = vmatpush.bf16.msra.mxu0 0
    %1266 = vmatpush.bf16.msra.mxu0 0
    %1267 = vmatpush.bf16.msra.mxu0 %v1129
    %1268 = vmatpush.bf16.msra.mxu0 %v1121
    %1269 = vmatmul.bf16.gmra.mxu0 %v519
    %v1270 = vpop.f32.mrf.mxu0
    %v1271 = vadd.f32 0.0, %v1270
    %v1272 = vpop.f32.mrf.mxu0
    %v1273 = vadd.f32 0.0, %v1272
    %1274 = vmatmul.bf16.gmra.mxu0 %v522
    %v1275 = vpop.f32.mrf.mxu0
    %v1276 = vadd.f32 0.0, %v1275
    %v1277 = vpop.f32.mrf.mxu0
    %v1278 = vadd.f32 0.0, %v1277
    %1279 = vdwg.mxu0
    %1280 = vmatpush.bf16.msra.mxu0 0
    %1281 = vmatpush.bf16.msra.mxu0 0
    %1282 = vmatpush.bf16.msra.mxu0 0
    %1283 = vmatpush.bf16.msra.mxu0 0
    %1284 = vmatpush.bf16.msra.mxu0 0
    %1285 = vmatpush.bf16.msra.mxu0 0
    %1286 = vmatpush.bf16.msra.mxu0 %v1130
    %1287 = vmatpush.bf16.msra.mxu0 %v1122
    %1288 = vmatmul.bf16.gmra.mxu0 %v519
    %v1289 = vpop.f32.mrf.mxu0
    %v1290 = vadd.f32 0.0, %v1289
    %v1291 = vpop.f32.mrf.mxu0
    %v1292 = vadd.f32 0.0, %v1291
    %1293 = vmatmul.bf16.gmra.mxu0 %v522
    %v1294 = vpop.f32.mrf.mxu0
    %v1295 = vadd.f32 0.0, %v1294
    %v1296 = vpop.f32.mrf.mxu0
    %v1297 = vadd.f32 0.0, %v1296
    %1298 = vdwg.mxu0
    %1311 = vrot.lane.b32.xlu0 %v1195, 64
    %v1312 = vpop.permute.xlu0 %1311
    %1313 = vrot.lane.b32.xlu0 %v1214, 64
    %v1314 = vpop.permute.xlu0 %1313
    %1315 = vrot.lane.b32.xlu0 %v1233, 64
    %v1316 = vpop.permute.xlu0 %1315
    %1317 = vrot.lane.b32.xlu0 %v1197, 64
    %v1318 = vpop.permute.xlu0 %1317
    %1319 = vrot.lane.b32.xlu0 %v1216, 64
    %v1320 = vpop.permute.xlu0 %1319
    %1321 = vrot.lane.b32.xlu0 %v1235, 64
    %v1322 = vpop.permute.xlu0 %1321
    %1323 = vrot.lane.b32.xlu0 %v1200, 64
    %v1324 = vpop.permute.xlu0 %1323
    %1325 = vrot.lane.b32.xlu0 %v1219, 64
    %v1326 = vpop.permute.xlu0 %1325
    %1327 = vrot.lane.b32.xlu0 %v1238, 64
    %v1328 = vpop.permute.xlu0 %1327
    %1329 = vrot.lane.b32.xlu0 %v1202, 64
    %v1330 = vpop.permute.xlu0 %1329
    %1331 = vrot.lane.b32.xlu0 %v1221, 64
    %v1332 = vpop.permute.xlu0 %1331
    %1333 = vrot.lane.b32.xlu0 %v1240, 64
    %v1334 = vpop.permute.xlu0 %1333
    %v1335 = vsel %vm242, %v1312, %v1314
    %v1336 = vsel %vm242, %v1314, %v1316
    %v1337 = vsel %vm242, %v1318, %v1320
    %v1338 = vsel %vm242, %v1320, %v1322
    %v1339 = vsel %vm242, %v1324, %v1326
    %v1340 = vsel %vm242, %v1326, %v1328
    %v1341 = vsel %vm242, %v1330, %v1332
    %v1342 = vsel %vm242, %v1332, %v1334
    %v1355 = vrot.slane %v1335, 1
    %v1356 = vrot.slane %v1336, 1
    %v1357 = vrot.slane %v1316, 1
    %v1358 = vrot.slane %v1337, 1
    %v1359 = vrot.slane %v1338, 1
    %v1360 = vrot.slane %v1322, 1
    %v1361 = vrot.slane %v1339, 1
    %v1362 = vrot.slane %v1340, 1
    %v1363 = vrot.slane %v1328, 1
    %v1364 = vrot.slane %v1341, 1
    %v1365 = vrot.slane %v1342, 1
    %v1366 = vrot.slane %v1334, 1
    %v1367 = vsel %vm917, %v1361, %v1364
    %v1368 = vsel %vm917, %v1362, %v1365
    %v1369 = vsel %vm917, %v1363, %v1366
    %v1370 = vsel %vm917, %v1358, %v1361
    %v1371 = vsel %vm917, %v1359, %v1362
    %v1372 = vsel %vm917, %v1360, %v1363
    %v1373 = vsel %vm917, %v1355, %v1358
    %v1374 = vsel %vm917, %v1356, %v1359
    %v1375 = vsel %vm917, %v1357, %v1360
    %v1376 = vsel %vm917, %v1364, %v1355
    %v1377 = vsel %vm917, %v1365, %v1356
    %v1378 = vsel %vm917, %v1366, %v1357
    %v1379 = vadd.f32 %v1157, %v1373
    %v1380 = vadd.f32 %v1176, %v1374
    %v1381 = vadd.f32 %v1195, %v1375
    %v1382 = vadd.f32 %v1159, %v1370
    %v1383 = vadd.f32 %v1178, %v1371
    %v1384 = vadd.f32 %v1197, %v1372
    %v1385 = vadd.f32 %v1162, %v1367
    %v1386 = vadd.f32 %v1181, %v1368
    %v1387 = vadd.f32 %v1200, %v1369
    %v1388 = vadd.f32 %v1164, %v1376
    %v1389 = vadd.f32 %v1183, %v1377
    %v1390 = vadd.f32 %v1202, %v1378
    %v1391 = vrot.slane %v1252, 2
    %v1392 = vrot.slane %v1271, 2
    %v1393 = vrot.slane %v1290, 2
    %v1394 = vrot.slane %v1254, 2
    %v1395 = vrot.slane %v1273, 2
    %v1396 = vrot.slane %v1292, 2
    %v1397 = vrot.slane %v1257, 2
    %v1398 = vrot.slane %v1276, 2
    %v1399 = vrot.slane %v1295, 2
    %v1400 = vrot.slane %v1259, 2
    %v1401 = vrot.slane %v1278, 2
    %v1402 = vrot.slane %v1297, 2
    %vm1403 = vcmp.lt.s32.totalorder %v413, 6
    %v1404 = vsel %vm1403, %v1397, %v1400
    %v1405 = vsel %vm1403, %v1398, %v1401
    %v1406 = vsel %vm1403, %v1399, %v1402
    %v1407 = vsel %vm1403, %v1394, %v1397
    %v1408 = vsel %vm1403, %v1395, %v1398
    %v1409 = vsel %vm1403, %v1396, %v1399
    %v1410 = vsel %vm1403, %v1391, %v1394
    %v1411 = vsel %vm1403, %v1392, %v1395
    %v1412 = vsel %vm1403, %v1393, %v1396
    %v1413 = vsel %vm1403, %v1400, %v1391
    %v1414 = vsel %vm1403, %v1401, %v1392
    %v1415 = vsel %vm1403, %v1402, %v1393
    %v1416 = vadd.f32 %v1379, %v1410
    %v1417 = vadd.f32 %v1380, %v1411
    %v1418 = vadd.f32 %v1381, %v1412
    %v1419 = vadd.f32 %v1382, %v1407
    %v1420 = vadd.f32 %v1383, %v1408
    %v1421 = vadd.f32 %v1384, %v1409
    %v1422 = vadd.f32 %v1385, %v1404
    %v1423 = vadd.f32 %v1386, %v1405
    %v1424 = vadd.f32 %v1387, %v1406
    %v1425 = vadd.f32 %v1388, %v1413
    %v1426 = vadd.f32 %v1389, %v1414
    %v1427 = vadd.f32 %v1390, %v1415
    %vm1428 = vcmp.le.s32.totalorder %v461, 13
    %vm1429 = vcmp.le.s32.totalorder %v462, 13
    %vm1430 = vcmp.le.s32.totalorder %v463, 13
    %vm1431 = vcmp.le.s32.totalorder %v464, 13
    %v1432 = vsel %vm1428, 1, 0
    %v1433 = vsel %vm1429, 1, 0
    %v1434 = vsel %vm1430, 1, 0
    %v1435 = vsel %vm1431, 1, 0
    %vm1436 = vcmp.eq.s32.totalorder %v1432, 1
    %vm1437 = vcmp.eq.s32.totalorder %v1433, 1
    %vm1438 = vcmp.eq.s32.totalorder %v1434, 1
    %vm1439 = vcmp.eq.s32.totalorder %v1435, 1
    %v1440 = vsel %vm1436, %v1416, -1e+30
    %v1441 = vsel %vm1436, %v1417, -1e+30
    %v1442 = vsel %vm1436, %v1418, -1e+30
    %v1443 = vsel %vm1437, %v1419, -1e+30
    %v1444 = vsel %vm1437, %v1420, -1e+30
    %v1445 = vsel %vm1437, %v1421, -1e+30
    %v1446 = vsel %vm1438, %v1422, -1e+30
    %v1447 = vsel %vm1438, %v1423, -1e+30
    %v1448 = vsel %vm1438, %v1424, -1e+30
    %v1449 = vsel %vm1439, %v1425, -1e+30
    %v1450 = vsel %vm1439, %v1426, -1e+30
    %v1451 = vsel %vm1439, %v1427, -1e+30
    %v1452 = vmax.f32 %v1440, %v1443
    %v1453 = vrot.slane %v1452, 4
    %v1454 = vmax.f32 %v1452, %v1453
    %v1455 = vrot.slane %v1454, 2
    %v1456 = vmax.f32 %v1454, %v1455
    %v1457 = vrot.slane %v1456, 1
    %v1458 = vmax.f32 %v1456, %v1457
    %v1459 = vmax.f32 %v1441, %v1444
    %v1460 = vrot.slane %v1459, 4
    %v1461 = vmax.f32 %v1459, %v1460
    %v1462 = vrot.slane %v1461, 2
    %v1463 = vmax.f32 %v1461, %v1462
    %v1464 = vrot.slane %v1463, 1
    %v1465 = vmax.f32 %v1463, %v1464
    %v1466 = vsel %vm242, %v1442, -inf
    %v1467 = vsel %vm242, %v1445, -inf
    %v1468 = vmax.f32 %v1466, %v1467
    %v1469 = vrot.slane %v1468, 4
    %v1470 = vmax.f32 %v1468, %v1469
    %v1471 = vrot.slane %v1470, 2
    %v1472 = vmax.f32 %v1470, %v1471
    %v1473 = vrot.slane %v1472, 1
    %v1474 = vmax.f32 %v1472, %v1473
    %v1475 = vmax.f32 %v1446, %v1449
    %v1476 = vrot.slane %v1475, 4
    %v1477 = vmax.f32 %v1475, %v1476
    %v1478 = vrot.slane %v1477, 2
    %v1479 = vmax.f32 %v1477, %v1478
    %v1480 = vrot.slane %v1479, 1
    %v1481 = vmax.f32 %v1479, %v1480
    %v1482 = vmax.f32 %v1447, %v1450
    %v1483 = vrot.slane %v1482, 4
    %v1484 = vmax.f32 %v1482, %v1483
    %v1485 = vrot.slane %v1484, 2
    %v1486 = vmax.f32 %v1484, %v1485
    %v1487 = vrot.slane %v1486, 1
    %v1488 = vmax.f32 %v1486, %v1487
    %v1489 = vsel %vm242, %v1448, -inf
    %v1490 = vsel %vm242, %v1451, -inf
    %v1491 = vmax.f32 %v1489, %v1490
    %v1492 = vrot.slane %v1491, 4
    %v1493 = vmax.f32 %v1491, %v1492
    %v1494 = vrot.slane %v1493, 2
    %v1495 = vmax.f32 %v1493, %v1494
    %v1496 = vrot.slane %v1495, 1
    %v1497 = vmax.f32 %v1495, %v1496
    %v1498 = vperm.slane %v465, 2
    %v1499 = vperm.slane %v466, 2
    %v1500 = vperm.slane %v467, 2
    %v1501 = vadd.f32 %v1458, %v1498
    %v1502 = vadd.f32 %v1465, %v1499
    %v1503 = vadd.f32 %v1474, %v1500
    %v1504 = vadd.f32 %v1481, %v1498
    %v1505 = vadd.f32 %v1488, %v1499
    %v1506 = vadd.f32 %v1497, %v1500
    %v1509 = vrot.slane %v1504, 7
    %v1510 = vsel %vm121, %v1509, %v1501
    %v1512 = vmul.f32 %v394, %v1510
    %1513 = vrot.lane.b32.xlu0 %v1510, 64
    %v1514 = vpop.permute.xlu0 %1513
    %v1516 = vmul.f32 %v398, %v1514
    %v1517 = vadd.f32 %v1512, %v1516
    %v1520 = vrot.slane %v1505, 7
    %v1521 = vsel %vm121, %v1520, %v1502
    %v1523 = vmul.f32 %v402, %v1521
    %v1524 = vadd.f32 %v1517, %v1523
    %1525 = vrot.lane.b32.xlu0 %v1521, 64
    %v1526 = vpop.permute.xlu0 %1525
    %v1528 = vmul.f32 %v406, %v1526
    %v1529 = vadd.f32 %v1524, %v1528
    %v1532 = vrot.slane %v1506, 7
    %v1533 = vsel %vm121, %v1532, %v1503
    %v1535 = vmul.f32 %v410, %v1533
    %v1536 = vadd.f32 %v1529, %v1535
    %v1537 = vld [vmem:[%s11 + $0x40] sm:$0xff]
    %v1538 = vld [vmem:[%s11 + $0x48] sm:$0xff]
    %v1539 = vld [vmem:[%s11 + $0x50] sm:$0xff]
    %v1540 = vld [vmem:[%s11 + $0x58] sm:$0xff]
    %v1541 = vld [vmem:[%s11 + $0x60] sm:$0xff]
    %v1542 = vld [vmem:[%s11 + $0x68] sm:$0xff]
    %v1543 = vld [vmem:[%s11 + $0x70] sm:$0xf]
    %v1544 = vld [vmem:[%s11 + $0x118] sm:$0xff]
    %v1545 = vld [vmem:[%s11 + $0x120] sm:$0xff]
    %v1546 = vld [vmem:[%s11 + $0x128] sm:$0xff]
    %v1547 = vld [vmem:[%s11 + $0x130] sm:$0xff]
    %v1548 = vld [vmem:[%s11 + $0x138] sm:$0xff]
    %v1549 = vld [vmem:[%s11 + $0x140] sm:$0xff]
    %v1550 = vld [vmem:[%s11 + $0x148] sm:$0xf]
    %v1551 = vld [vmem:[%s11 + $0x1f0] sm:$0xff]
    %v1552 = vld [vmem:[%s11 + $0x1f8] sm:$0xff]
    %v1553 = vld [vmem:[%s11 + $0x200] sm:$0xff]
    %v1554 = vld [vmem:[%s11 + $0x208] sm:$0xff]
    %v1555 = vld [vmem:[%s11 + $0x210] sm:$0xff]
    %v1556 = vld [vmem:[%s11 + $0x218] sm:$0xff]
    %v1557 = vld [vmem:[%s11 + $0x220] sm:$0xf]
    %v1558 = vld [vmem:[%s11 + $0x2c8] sm:$0xff]
    %v1559 = vld [vmem:[%s11 + $0x2d0] sm:$0xff]
    %v1560 = vld [vmem:[%s11 + $0x2d8] sm:$0xff]
    %v1561 = vld [vmem:[%s11 + $0x2e0] sm:$0xff]
    %v1562 = vld [vmem:[%s11 + $0x2e8] sm:$0xff]
    %v1563 = vld [vmem:[%s11 + $0x2f0] sm:$0xff]
    %v1564 = vld [vmem:[%s11 + $0x2f8] sm:$0xf]
    %v1593 = vunpack.c.l.b16 %v1537
    %v1594 = vunpack.c.h.b16 %v1537
    %v1595 = vunpack.c.l.b16 %v1538
    %v1596 = vunpack.c.h.b16 %v1538
    %v1597 = vunpack.c.l.b16 %v1539
    %v1598 = vunpack.c.h.b16 %v1539
    %v1599 = vunpack.c.l.b16 %v1540
    %v1600 = vunpack.c.h.b16 %v1540
    %v1601 = vunpack.c.l.b16 %v1541
    %v1602 = vunpack.c.h.b16 %v1541
    %v1603 = vunpack.c.l.b16 %v1542
    %v1604 = vunpack.c.h.b16 %v1542
    %v1605 = vunpack.c.l.b16 %v1543
    %v1606 = vunpack.c.l.b16 %v1544
    %v1607 = vunpack.c.h.b16 %v1544
    %v1608 = vunpack.c.l.b16 %v1545
    %v1609 = vunpack.c.h.b16 %v1545
    %v1610 = vunpack.c.l.b16 %v1546
    %v1611 = vunpack.c.h.b16 %v1546
    %v1612 = vunpack.c.l.b16 %v1547
    %v1613 = vunpack.c.h.b16 %v1547
    %v1614 = vunpack.c.l.b16 %v1548
    %v1615 = vunpack.c.h.b16 %v1548
    %v1616 = vunpack.c.l.b16 %v1549
    %v1617 = vunpack.c.h.b16 %v1549
    %v1618 = vunpack.c.l.b16 %v1550
    %v1619 = vunpack.c.l.b16 %v1551
    %v1620 = vunpack.c.h.b16 %v1551
    %v1621 = vunpack.c.l.b16 %v1552
    %v1622 = vunpack.c.h.b16 %v1552
    %v1623 = vunpack.c.l.b16 %v1553
    %v1624 = vunpack.c.h.b16 %v1553
    %v1625 = vunpack.c.l.b16 %v1554
    %v1626 = vunpack.c.h.b16 %v1554
    %v1627 = vunpack.c.l.b16 %v1555
    %v1628 = vunpack.c.h.b16 %v1555
    %v1629 = vunpack.c.l.b16 %v1556
    %v1630 = vunpack.c.h.b16 %v1556
    %v1631 = vunpack.c.l.b16 %v1557
    %v1632 = vunpack.c.l.b16 %v1558
    %v1633 = vunpack.c.h.b16 %v1558
    %v1634 = vunpack.c.l.b16 %v1559
    %v1635 = vunpack.c.h.b16 %v1559
    %v1636 = vunpack.c.l.b16 %v1560
    %v1637 = vunpack.c.h.b16 %v1560
    %v1638 = vunpack.c.l.b16 %v1561
    %v1639 = vunpack.c.h.b16 %v1561
    %v1640 = vunpack.c.l.b16 %v1562
    %v1641 = vunpack.c.h.b16 %v1562
    %v1642 = vunpack.c.l.b16 %v1563
    %v1643 = vunpack.c.h.b16 %v1563
    %v1644 = vunpack.c.l.b16 %v1564
    %v1645 = vpack.c.b16 %v1606, %v1593
    %v1646 = vpack.c.b16 %v1607, %v1594
    %v1647 = vpack.c.b16 %v1608, %v1595
    %v1648 = vpack.c.b16 %v1609, %v1596
    %v1649 = vpack.c.b16 %v1610, %v1597
    %v1650 = vpack.c.b16 %v1611, %v1598
    %v1651 = vpack.c.b16 %v1612, %v1599
    %v1652 = vpack.c.b16 %v1613, %v1600
    %v1653 = vpack.c.b16 %v1614, %v1601
    %v1654 = vpack.c.b16 %v1615, %v1602
    %v1655 = vpack.c.b16 %v1616, %v1603
    %v1656 = vpack.c.b16 %v1617, %v1604
    %v1657 = vpack.c.b16 %v1618, %v1605
    %v1658 = vpack.c.b16 %v1632, %v1619
    %v1659 = vpack.c.b16 %v1633, %v1620
    %v1660 = vpack.c.b16 %v1634, %v1621
    %v1661 = vpack.c.b16 %v1635, %v1622
    %v1662 = vpack.c.b16 %v1636, %v1623
    %v1663 = vpack.c.b16 %v1637, %v1624
    %v1664 = vpack.c.b16 %v1638, %v1625
    %v1665 = vpack.c.b16 %v1639, %v1626
    %v1666 = vpack.c.b16 %v1640, %v1627
    %v1667 = vpack.c.b16 %v1641, %v1628
    %v1668 = vpack.c.b16 %v1642, %v1629
    %v1669 = vpack.c.b16 %v1643, %v1630
    %v1670 = vpack.c.b16 %v1644, %v1631
    %1697 = vmatpush.bf16.msra.mxu0 0
    %1698 = vmatpush.bf16.msra.mxu0 0
    %1699 = vmatpush.bf16.msra.mxu0 0
    %1700 = vmatpush.bf16.msra.mxu0 0
    %1701 = vmatpush.bf16.msra.mxu0 0
    %1702 = vmatpush.bf16.msra.mxu0 0
    %1703 = vmatpush.bf16.msra.mxu0 %v1658
    %1704 = vmatpush.bf16.msra.mxu0 %v1645
    %1705 = vmatmul.bf16.gmra.mxu0 %v519
    %v1706 = vpop.f32.mrf.mxu0
    %v1707 = vadd.f32 0.0, %v1706
    %v1708 = vpop.f32.mrf.mxu0
    %v1709 = vadd.f32 0.0, %v1708
    %1710 = vmatmul.bf16.gmra.mxu0 %v522
    %v1711 = vpop.f32.mrf.mxu0
    %v1712 = vadd.f32 0.0, %v1711
    %v1713 = vpop.f32.mrf.mxu0
    %v1714 = vadd.f32 0.0, %v1713
    %1715 = vdwg.mxu0
    %1716 = vmatpush.bf16.msra.mxu0 0
    %1717 = vmatpush.bf16.msra.mxu0 0
    %1718 = vmatpush.bf16.msra.mxu0 0
    %1719 = vmatpush.bf16.msra.mxu0 0
    %1720 = vmatpush.bf16.msra.mxu0 0
    %1721 = vmatpush.bf16.msra.mxu0 0
    %1722 = vmatpush.bf16.msra.mxu0 %v1659
    %1723 = vmatpush.bf16.msra.mxu0 %v1646
    %1724 = vmatmul.bf16.gmra.mxu0 %v519
    %v1725 = vpop.f32.mrf.mxu0
    %v1726 = vadd.f32 0.0, %v1725
    %v1727 = vpop.f32.mrf.mxu0
    %v1728 = vadd.f32 0.0, %v1727
    %1729 = vmatmul.bf16.gmra.mxu0 %v522
    %v1730 = vpop.f32.mrf.mxu0
    %v1731 = vadd.f32 0.0, %v1730
    %v1732 = vpop.f32.mrf.mxu0
    %v1733 = vadd.f32 0.0, %v1732
    %1734 = vdwg.mxu0
    %1735 = vmatpush.bf16.msra.mxu0 0
    %1736 = vmatpush.bf16.msra.mxu0 0
    %1737 = vmatpush.bf16.msra.mxu0 0
    %1738 = vmatpush.bf16.msra.mxu0 0
    %1739 = vmatpush.bf16.msra.mxu0 0
    %1740 = vmatpush.bf16.msra.mxu0 0
    %1741 = vmatpush.bf16.msra.mxu0 %v1660
    %1742 = vmatpush.bf16.msra.mxu0 %v1647
    %1743 = vmatmul.bf16.gmra.mxu0 %v519
    %v1744 = vpop.f32.mrf.mxu0
    %v1745 = vadd.f32 0.0, %v1744
    %v1746 = vpop.f32.mrf.mxu0
    %v1747 = vadd.f32 0.0, %v1746
    %1748 = vmatmul.bf16.gmra.mxu0 %v522
    %v1749 = vpop.f32.mrf.mxu0
    %v1750 = vadd.f32 0.0, %v1749
    %v1751 = vpop.f32.mrf.mxu0
    %v1752 = vadd.f32 0.0, %v1751
    %1753 = vdwg.mxu0
    %1754 = vmatpush.bf16.msra.mxu0 0
    %1755 = vmatpush.bf16.msra.mxu0 0
    %1756 = vmatpush.bf16.msra.mxu0 0
    %1757 = vmatpush.bf16.msra.mxu0 0
    %1758 = vmatpush.bf16.msra.mxu0 0
    %1759 = vmatpush.bf16.msra.mxu0 0
    %1760 = vmatpush.bf16.msra.mxu0 %v1661
    %1761 = vmatpush.bf16.msra.mxu0 %v1648
    %1762 = vmatmul.bf16.gmra.mxu0 %v519
    %v1763 = vpop.f32.mrf.mxu0
    %v1764 = vadd.f32 0.0, %v1763
    %v1765 = vpop.f32.mrf.mxu0
    %v1766 = vadd.f32 0.0, %v1765
    %1767 = vmatmul.bf16.gmra.mxu0 %v522
    %v1768 = vpop.f32.mrf.mxu0
    %v1769 = vadd.f32 0.0, %v1768
    %v1770 = vpop.f32.mrf.mxu0
    %v1771 = vadd.f32 0.0, %v1770
    %1772 = vdwg.mxu0
    %1773 = vmatpush.bf16.msra.mxu0 0
    %1774 = vmatpush.bf16.msra.mxu0 0
    %1775 = vmatpush.bf16.msra.mxu0 0
    %1776 = vmatpush.bf16.msra.mxu0 0
    %1777 = vmatpush.bf16.msra.mxu0 0
    %1778 = vmatpush.bf16.msra.mxu0 0
    %1779 = vmatpush.bf16.msra.mxu0 %v1662
    %1780 = vmatpush.bf16.msra.mxu0 %v1649
    %1781 = vmatmul.bf16.gmra.mxu0 %v519
    %v1782 = vpop.f32.mrf.mxu0
    %v1783 = vadd.f32 0.0, %v1782
    %v1784 = vpop.f32.mrf.mxu0
    %v1785 = vadd.f32 0.0, %v1784
    %1786 = vmatmul.bf16.gmra.mxu0 %v522
    %v1787 = vpop.f32.mrf.mxu0
    %v1788 = vadd.f32 0.0, %v1787
    %v1789 = vpop.f32.mrf.mxu0
    %v1790 = vadd.f32 0.0, %v1789
    %1791 = vdwg.mxu0
    %1792 = vmatpush.bf16.msra.mxu0 0
    %1793 = vmatpush.bf16.msra.mxu0 0
    %1794 = vmatpush.bf16.msra.mxu0 0
    %1795 = vmatpush.bf16.msra.mxu0 0
    %1796 = vmatpush.bf16.msra.mxu0 0
    %1797 = vmatpush.bf16.msra.mxu0 0
    %1798 = vmatpush.bf16.msra.mxu0 %v1663
    %1799 = vmatpush.bf16.msra.mxu0 %v1650
    %1800 = vmatmul.bf16.gmra.mxu0 %v519
    %v1801 = vpop.f32.mrf.mxu0
    %v1802 = vadd.f32 0.0, %v1801
    %v1803 = vpop.f32.mrf.mxu0
    %v1804 = vadd.f32 0.0, %v1803
    %1805 = vmatmul.bf16.gmra.mxu0 %v522
    %v1806 = vpop.f32.mrf.mxu0
    %v1807 = vadd.f32 0.0, %v1806
    %v1808 = vpop.f32.mrf.mxu0
    %v1809 = vadd.f32 0.0, %v1808
    %1810 = vdwg.mxu0
    %1811 = vmatpush.bf16.msra.mxu0 0
    %1812 = vmatpush.bf16.msra.mxu0 0
    %1813 = vmatpush.bf16.msra.mxu0 0
    %1814 = vmatpush.bf16.msra.mxu0 0
    %1815 = vmatpush.bf16.msra.mxu0 0
    %1816 = vmatpush.bf16.msra.mxu0 0
    %1817 = vmatpush.bf16.msra.mxu0 %v1664
    %1818 = vmatpush.bf16.msra.mxu0 %v1651
    %1819 = vmatmul.bf16.gmra.mxu0 %v519
    %v1820 = vpop.f32.mrf.mxu0
    %v1821 = vadd.f32 0.0, %v1820
    %v1822 = vpop.f32.mrf.mxu0
    %v1823 = vadd.f32 0.0, %v1822
    %1824 = vmatmul.bf16.gmra.mxu0 %v522
    %v1825 = vpop.f32.mrf.mxu0
    %v1826 = vadd.f32 0.0, %v1825
    %v1827 = vpop.f32.mrf.mxu0
    %v1828 = vadd.f32 0.0, %v1827
    %1829 = vdwg.mxu0
    %1830 = vmatpush.bf16.msra.mxu0 0
    %1831 = vmatpush.bf16.msra.mxu0 0
    %1832 = vmatpush.bf16.msra.mxu0 0
    %1833 = vmatpush.bf16.msra.mxu0 0
    %1834 = vmatpush.bf16.msra.mxu0 0
    %1835 = vmatpush.bf16.msra.mxu0 0
    %1836 = vmatpush.bf16.msra.mxu0 %v1665
    %1837 = vmatpush.bf16.msra.mxu0 %v1652
    %1838 = vmatmul.bf16.gmra.mxu0 %v519
    %v1839 = vpop.f32.mrf.mxu0
    %v1840 = vadd.f32 0.0, %v1839
    %v1841 = vpop.f32.mrf.mxu0
    %v1842 = vadd.f32 0.0, %v1841
    %1843 = vmatmul.bf16.gmra.mxu0 %v522
    %v1844 = vpop.f32.mrf.mxu0
    %v1845 = vadd.f32 0.0, %v1844
    %v1846 = vpop.f32.mrf.mxu0
    %v1847 = vadd.f32 0.0, %v1846
    %1848 = vdwg.mxu0
    %1849 = vmatpush.bf16.msra.mxu0 0
    %1850 = vmatpush.bf16.msra.mxu0 0
    %1851 = vmatpush.bf16.msra.mxu0 0
    %1852 = vmatpush.bf16.msra.mxu0 0
    %1853 = vmatpush.bf16.msra.mxu0 0
    %1854 = vmatpush.bf16.msra.mxu0 0
    %1855 = vmatpush.bf16.msra.mxu0 %v1666
    %1856 = vmatpush.bf16.msra.mxu0 %v1653
    %1857 = vmatmul.bf16.gmra.mxu0 %v519
    %v1858 = vpop.f32.mrf.mxu0
    %v1859 = vadd.f32 0.0, %v1858
    %v1860 = vpop.f32.mrf.mxu0
    %v1861 = vadd.f32 0.0, %v1860
    %1862 = vmatmul.bf16.gmra.mxu0 %v522
    %v1863 = vpop.f32.mrf.mxu0
    %v1864 = vadd.f32 0.0, %v1863
    %v1865 = vpop.f32.mrf.mxu0
    %v1866 = vadd.f32 0.0, %v1865
    %1867 = vdwg.mxu0
    %1868 = vmatpush.bf16.msra.mxu0 0
    %1869 = vmatpush.bf16.msra.mxu0 0
    %1870 = vmatpush.bf16.msra.mxu0 0
    %1871 = vmatpush.bf16.msra.mxu0 0
    %1872 = vmatpush.bf16.msra.mxu0 0
    %1873 = vmatpush.bf16.msra.mxu0 0
    %1874 = vmatpush.bf16.msra.mxu0 %v1667
    %1875 = vmatpush.bf16.msra.mxu0 %v1654
    %1876 = vmatmul.bf16.gmra.mxu0 %v519
    %v1877 = vpop.f32.mrf.mxu0
    %v1878 = vadd.f32 0.0, %v1877
    %v1879 = vpop.f32.mrf.mxu0
    %v1880 = vadd.f32 0.0, %v1879
    %1881 = vmatmul.bf16.gmra.mxu0 %v522
    %v1882 = vpop.f32.mrf.mxu0
    %v1883 = vadd.f32 0.0, %v1882
    %v1884 = vpop.f32.mrf.mxu0
    %v1885 = vadd.f32 0.0, %v1884
    %1886 = vdwg.mxu0
    %1887 = vmatpush.bf16.msra.mxu0 0
    %1888 = vmatpush.bf16.msra.mxu0 0
    %1889 = vmatpush.bf16.msra.mxu0 0
    %1890 = vmatpush.bf16.msra.mxu0 0
    %1891 = vmatpush.bf16.msra.mxu0 0
    %1892 = vmatpush.bf16.msra.mxu0 0
    %1893 = vmatpush.bf16.msra.mxu0 %v1668
    %1894 = vmatpush.bf16.msra.mxu0 %v1655
    %1895 = vmatmul.bf16.gmra.mxu0 %v519
    %v1896 = vpop.f32.mrf.mxu0
    %v1897 = vadd.f32 0.0, %v1896
    %v1898 = vpop.f32.mrf.mxu0
    %v1899 = vadd.f32 0.0, %v1898
    %1900 = vmatmul.bf16.gmra.mxu0 %v522
    %v1901 = vpop.f32.mrf.mxu0
    %v1902 = vadd.f32 0.0, %v1901
    %v1903 = vpop.f32.mrf.mxu0
    %v1904 = vadd.f32 0.0, %v1903
    %1905 = vdwg.mxu0
    %1906 = vmatpush.bf16.msra.mxu0 0
    %1907 = vmatpush.bf16.msra.mxu0 0
    %1908 = vmatpush.bf16.msra.mxu0 0
    %1909 = vmatpush.bf16.msra.mxu0 0
    %1910 = vmatpush.bf16.msra.mxu0 0
    %1911 = vmatpush.bf16.msra.mxu0 0
    %1912 = vmatpush.bf16.msra.mxu0 %v1669
    %1913 = vmatpush.bf16.msra.mxu0 %v1656
    %1914 = vmatmul.bf16.gmra.mxu0 %v519
    %v1915 = vpop.f32.mrf.mxu0
    %v1916 = vadd.f32 0.0, %v1915
    %v1917 = vpop.f32.mrf.mxu0
    %v1918 = vadd.f32 0.0, %v1917
    %1919 = vmatmul.bf16.gmra.mxu0 %v522
    %v1920 = vpop.f32.mrf.mxu0
    %v1921 = vadd.f32 0.0, %v1920
    %v1922 = vpop.f32.mrf.mxu0
    %v1923 = vadd.f32 0.0, %v1922
    %1924 = vdwg.mxu0
    %1925 = vmatpush.bf16.msra.mxu0 0
    %1926 = vmatpush.bf16.msra.mxu0 0
    %1927 = vmatpush.bf16.msra.mxu0 0
    %1928 = vmatpush.bf16.msra.mxu0 0
    %1929 = vmatpush.bf16.msra.mxu0 0
    %1930 = vmatpush.bf16.msra.mxu0 0
    %1931 = vmatpush.bf16.msra.mxu0 %v1670
    %1932 = vmatpush.bf16.msra.mxu0 %v1657
    %1933 = vmatmul.bf16.gmra.mxu0 %v519
    %v1934 = vpop.f32.mrf.mxu0
    %v1935 = vadd.f32 0.0, %v1934
    %v1936 = vpop.f32.mrf.mxu0
    %v1937 = vadd.f32 0.0, %v1936
    %1938 = vmatmul.bf16.gmra.mxu0 %v522
    %v1939 = vpop.f32.mrf.mxu0
    %v1940 = vadd.f32 0.0, %v1939
    %v1941 = vpop.f32.mrf.mxu0
    %v1942 = vadd.f32 0.0, %v1941
    %1943 = vdwg.mxu0
    %1956 = vrot.lane.b32.xlu0 %v1745, 64
    %v1957 = vpop.permute.xlu0 %1956
    %1958 = vrot.lane.b32.xlu0 %v1764, 64
    %v1959 = vpop.permute.xlu0 %1958
    %1960 = vrot.lane.b32.xlu0 %v1783, 64
    %v1961 = vpop.permute.xlu0 %1960
    %1962 = vrot.lane.b32.xlu0 %v1747, 64
    %v1963 = vpop.permute.xlu0 %1962
    %1964 = vrot.lane.b32.xlu0 %v1766, 64
    %v1965 = vpop.permute.xlu0 %1964
    %1966 = vrot.lane.b32.xlu0 %v1785, 64
    %v1967 = vpop.permute.xlu0 %1966
    %1968 = vrot.lane.b32.xlu0 %v1750, 64
    %v1969 = vpop.permute.xlu0 %1968
    %1970 = vrot.lane.b32.xlu0 %v1769, 64
    %v1971 = vpop.permute.xlu0 %1970
    %1972 = vrot.lane.b32.xlu0 %v1788, 64
    %v1973 = vpop.permute.xlu0 %1972
    %1974 = vrot.lane.b32.xlu0 %v1752, 64
    %v1975 = vpop.permute.xlu0 %1974
    %1976 = vrot.lane.b32.xlu0 %v1771, 64
    %v1977 = vpop.permute.xlu0 %1976
    %1978 = vrot.lane.b32.xlu0 %v1790, 64
    %v1979 = vpop.permute.xlu0 %1978
    %v1980 = vsel %vm242, %v1957, %v1959
    %v1981 = vsel %vm242, %v1959, %v1961
    %v1982 = vsel %vm242, %v1963, %v1965
    %v1983 = vsel %vm242, %v1965, %v1967
    %v1984 = vsel %vm242, %v1969, %v1971
    %v1985 = vsel %vm242, %v1971, %v1973
    %v1986 = vsel %vm242, %v1975, %v1977
    %v1987 = vsel %vm242, %v1977, %v1979
    %v2000 = vrot.slane %v1980, 1
    %v2001 = vrot.slane %v1981, 1
    %v2002 = vrot.slane %v1961, 1
    %v2003 = vrot.slane %v1982, 1
    %v2004 = vrot.slane %v1983, 1
    %v2005 = vrot.slane %v1967, 1
    %v2006 = vrot.slane %v1984, 1
    %v2007 = vrot.slane %v1985, 1
    %v2008 = vrot.slane %v1973, 1
    %v2009 = vrot.slane %v1986, 1
    %v2010 = vrot.slane %v1987, 1
    %v2011 = vrot.slane %v1979, 1
    %v2012 = vsel %vm917, %v2006, %v2009
    %v2013 = vsel %vm917, %v2007, %v2010
    %v2014 = vsel %vm917, %v2008, %v2011
    %v2015 = vsel %vm917, %v2003, %v2006
    %v2016 = vsel %vm917, %v2004, %v2007
    %v2017 = vsel %vm917, %v2005, %v2008
    %v2018 = vsel %vm917, %v2000, %v2003
    %v2019 = vsel %vm917, %v2001, %v2004
    %v2020 = vsel %vm917, %v2002, %v2005
    %v2021 = vsel %vm917, %v2009, %v2000
    %v2022 = vsel %vm917, %v2010, %v2001
    %v2023 = vsel %vm917, %v2011, %v2002
    %v2024 = vadd.f32 %v1707, %v2018
    %v2025 = vadd.f32 %v1726, %v2019
    %v2026 = vadd.f32 %v1745, %v2020
    %v2027 = vadd.f32 %v1709, %v2015
    %v2028 = vadd.f32 %v1728, %v2016
    %v2029 = vadd.f32 %v1747, %v2017
    %v2030 = vadd.f32 %v1712, %v2012
    %v2031 = vadd.f32 %v1731, %v2013
    %v2032 = vadd.f32 %v1750, %v2014
    %v2033 = vadd.f32 %v1714, %v2021
    %v2034 = vadd.f32 %v1733, %v2022
    %v2035 = vadd.f32 %v1752, %v2023
    %v2036 = vrot.slane %v1802, 2
    %v2037 = vrot.slane %v1821, 2
    %v2038 = vrot.slane %v1840, 2
    %v2039 = vrot.slane %v1804, 2
    %v2040 = vrot.slane %v1823, 2
    %v2041 = vrot.slane %v1842, 2
    %v2042 = vrot.slane %v1807, 2
    %v2043 = vrot.slane %v1826, 2
    %v2044 = vrot.slane %v1845, 2
    %v2045 = vrot.slane %v1809, 2
    %v2046 = vrot.slane %v1828, 2
    %v2047 = vrot.slane %v1847, 2
    %v2048 = vsel %vm1403, %v2042, %v2045
    %v2049 = vsel %vm1403, %v2043, %v2046
    %v2050 = vsel %vm1403, %v2044, %v2047
    %v2051 = vsel %vm1403, %v2039, %v2042
    %v2052 = vsel %vm1403, %v2040, %v2043
    %v2053 = vsel %vm1403, %v2041, %v2044
    %v2054 = vsel %vm1403, %v2036, %v2039
    %v2055 = vsel %vm1403, %v2037, %v2040
    %v2056 = vsel %vm1403, %v2038, %v2041
    %v2057 = vsel %vm1403, %v2045, %v2036
    %v2058 = vsel %vm1403, %v2046, %v2037
    %v2059 = vsel %vm1403, %v2047, %v2038
    %v2060 = vadd.f32 %v2024, %v2054
    %v2061 = vadd.f32 %v2025, %v2055
    %v2062 = vadd.f32 %v2026, %v2056
    %v2063 = vadd.f32 %v2027, %v2051
    %v2064 = vadd.f32 %v2028, %v2052
    %v2065 = vadd.f32 %v2029, %v2053
    %v2066 = vadd.f32 %v2030, %v2048
    %v2067 = vadd.f32 %v2031, %v2049
    %v2068 = vadd.f32 %v2032, %v2050
    %v2069 = vadd.f32 %v2033, %v2057
    %v2070 = vadd.f32 %v2034, %v2058
    %v2071 = vadd.f32 %v2035, %v2059
    %2084 = vrot.lane.b32.xlu0 %v1840, 64
    %v2085 = vpop.permute.xlu0 %2084
    %2086 = vrot.lane.b32.xlu0 %v1859, 64
    %v2087 = vpop.permute.xlu0 %2086
    %2088 = vrot.lane.b32.xlu0 %v1878, 64
    %v2089 = vpop.permute.xlu0 %2088
    %2090 = vrot.lane.b32.xlu0 %v1842, 64
    %v2091 = vpop.permute.xlu0 %2090
    %2092 = vrot.lane.b32.xlu0 %v1861, 64
    %v2093 = vpop.permute.xlu0 %2092
    %2094 = vrot.lane.b32.xlu0 %v1880, 64
    %v2095 = vpop.permute.xlu0 %2094
    %2096 = vrot.lane.b32.xlu0 %v1845, 64
    %v2097 = vpop.permute.xlu0 %2096
    %2098 = vrot.lane.b32.xlu0 %v1864, 64
    %v2099 = vpop.permute.xlu0 %2098
    %2100 = vrot.lane.b32.xlu0 %v1883, 64
    %v2101 = vpop.permute.xlu0 %2100
    %2102 = vrot.lane.b32.xlu0 %v1847, 64
    %v2103 = vpop.permute.xlu0 %2102
    %2104 = vrot.lane.b32.xlu0 %v1866, 64
    %v2105 = vpop.permute.xlu0 %2104
    %2106 = vrot.lane.b32.xlu0 %v1885, 64
    %v2107 = vpop.permute.xlu0 %2106
    %v2108 = vsel %vm242, %v2085, %v2087
    %v2109 = vsel %vm242, %v2087, %v2089
    %v2110 = vsel %vm242, %v2091, %v2093
    %v2111 = vsel %vm242, %v2093, %v2095
    %v2112 = vsel %vm242, %v2097, %v2099
    %v2113 = vsel %vm242, %v2099, %v2101
    %v2114 = vsel %vm242, %v2103, %v2105
    %v2115 = vsel %vm242, %v2105, %v2107
    %v2128 = vrot.slane %v2108, 3
    %v2129 = vrot.slane %v2109, 3
    %v2130 = vrot.slane %v2089, 3
    %v2131 = vrot.slane %v2110, 3
    %v2132 = vrot.slane %v2111, 3
    %v2133 = vrot.slane %v2095, 3
    %v2134 = vrot.slane %v2112, 3
    %v2135 = vrot.slane %v2113, 3
    %v2136 = vrot.slane %v2101, 3
    %v2137 = vrot.slane %v2114, 3
    %v2138 = vrot.slane %v2115, 3
    %v2139 = vrot.slane %v2107, 3
    %vm2140 = vcmp.lt.s32.totalorder %v413, 5
    %v2141 = vsel %vm2140, %v2134, %v2137
    %v2142 = vsel %vm2140, %v2135, %v2138
    %v2143 = vsel %vm2140, %v2136, %v2139
    %v2144 = vsel %vm2140, %v2131, %v2134
    %v2145 = vsel %vm2140, %v2132, %v2135
    %v2146 = vsel %vm2140, %v2133, %v2136
    %v2147 = vsel %vm2140, %v2128, %v2131
    %v2148 = vsel %vm2140, %v2129, %v2132
    %v2149 = vsel %vm2140, %v2130, %v2133
    %v2150 = vsel %vm2140, %v2137, %v2128
    %v2151 = vsel %vm2140, %v2138, %v2129
    %v2152 = vsel %vm2140, %v2139, %v2130
    %v2153 = vadd.f32 %v2060, %v2147
    %v2154 = vadd.f32 %v2061, %v2148
    %v2155 = vadd.f32 %v2062, %v2149
    %v2156 = vadd.f32 %v2063, %v2144
    %v2157 = vadd.f32 %v2064, %v2145
    %v2158 = vadd.f32 %v2065, %v2146
    %v2159 = vadd.f32 %v2066, %v2141
    %v2160 = vadd.f32 %v2067, %v2142
    %v2161 = vadd.f32 %v2068, %v2143
    %v2162 = vadd.f32 %v2069, %v2150
    %v2163 = vadd.f32 %v2070, %v2151
    %v2164 = vadd.f32 %v2071, %v2152
    %v2165 = vrot.slane %v1897, 4
    %v2166 = vrot.slane %v1916, 4
    %v2167 = vrot.slane %v1935, 4
    %v2168 = vrot.slane %v1899, 4
    %v2169 = vrot.slane %v1918, 4
    %v2170 = vrot.slane %v1937, 4
    %v2171 = vrot.slane %v1902, 4
    %v2172 = vrot.slane %v1921, 4
    %v2173 = vrot.slane %v1940, 4
    %v2174 = vrot.slane %v1904, 4
    %v2175 = vrot.slane %v1923, 4
    %v2176 = vrot.slane %v1942, 4
    %vm2177 = vcmp.lt.s32.totalorder %v413, 4
    %v2178 = vsel %vm2177, %v2171, %v2174
    %v2179 = vsel %vm2177, %v2172, %v2175
    %v2180 = vsel %vm2177, %v2173, %v2176
    %v2181 = vsel %vm2177, %v2168, %v2171
    %v2182 = vsel %vm2177, %v2169, %v2172
    %v2183 = vsel %vm2177, %v2170, %v2173
    %v2184 = vsel %vm2177, %v2165, %v2168
    %v2185 = vsel %vm2177, %v2166, %v2169
    %v2186 = vsel %vm2177, %v2167, %v2170
    %v2187 = vsel %vm2177, %v2174, %v2165
    %v2188 = vsel %vm2177, %v2175, %v2166
    %v2189 = vsel %vm2177, %v2176, %v2167
    %v2190 = vadd.f32 %v2153, %v2184
    %v2191 = vadd.f32 %v2154, %v2185
    %v2192 = vadd.f32 %v2155, %v2186
    %v2193 = vadd.f32 %v2156, %v2181
    %v2194 = vadd.f32 %v2157, %v2182
    %v2195 = vadd.f32 %v2158, %v2183
    %v2196 = vadd.f32 %v2159, %v2178
    %v2197 = vadd.f32 %v2160, %v2179
    %v2198 = vadd.f32 %v2161, %v2180
    %v2199 = vadd.f32 %v2162, %v2187
    %v2200 = vadd.f32 %v2163, %v2188
    %v2201 = vadd.f32 %v2164, %v2189
    %vm2202 = vcmp.le.s32.totalorder %v461, 11
    %vm2203 = vcmp.le.s32.totalorder %v462, 11
    %vm2204 = vcmp.le.s32.totalorder %v463, 11
    %vm2205 = vcmp.le.s32.totalorder %v464, 11
    %v2206 = vsel %vm2202, 1, 0
    %v2207 = vsel %vm2203, 1, 0
    %v2208 = vsel %vm2204, 1, 0
    %v2209 = vsel %vm2205, 1, 0
    %vm2210 = vcmp.eq.s32.totalorder %v2206, 1
    %vm2211 = vcmp.eq.s32.totalorder %v2207, 1
    %vm2212 = vcmp.eq.s32.totalorder %v2208, 1
    %vm2213 = vcmp.eq.s32.totalorder %v2209, 1
    %v2214 = vsel %vm2210, %v2190, -1e+30
    %v2215 = vsel %vm2210, %v2191, -1e+30
    %v2216 = vsel %vm2210, %v2192, -1e+30
    %v2217 = vsel %vm2211, %v2193, -1e+30
    %v2218 = vsel %vm2211, %v2194, -1e+30
    %v2219 = vsel %vm2211, %v2195, -1e+30
    %v2220 = vsel %vm2212, %v2196, -1e+30
    %v2221 = vsel %vm2212, %v2197, -1e+30
    %v2222 = vsel %vm2212, %v2198, -1e+30
    %v2223 = vsel %vm2213, %v2199, -1e+30
    %v2224 = vsel %vm2213, %v2200, -1e+30
    %v2225 = vsel %vm2213, %v2201, -1e+30
    %v2226 = vmax.f32 %v2214, %v2217
    %v2227 = vrot.slane %v2226, 4
    %v2228 = vmax.f32 %v2226, %v2227
    %v2229 = vrot.slane %v2228, 2
    %v2230 = vmax.f32 %v2228, %v2229
    %v2231 = vrot.slane %v2230, 1
    %v2232 = vmax.f32 %v2230, %v2231
    %v2233 = vmax.f32 %v2215, %v2218
    %v2234 = vrot.slane %v2233, 4
    %v2235 = vmax.f32 %v2233, %v2234
    %v2236 = vrot.slane %v2235, 2
    %v2237 = vmax.f32 %v2235, %v2236
    %v2238 = vrot.slane %v2237, 1
    %v2239 = vmax.f32 %v2237, %v2238
    %v2240 = vsel %vm242, %v2216, -inf
    %v2241 = vsel %vm242, %v2219, -inf
    %v2242 = vmax.f32 %v2240, %v2241
    %v2243 = vrot.slane %v2242, 4
    %v2244 = vmax.f32 %v2242, %v2243
    %v2245 = vrot.slane %v2244, 2
    %v2246 = vmax.f32 %v2244, %v2245
    %v2247 = vrot.slane %v2246, 1
    %v2248 = vmax.f32 %v2246, %v2247
    %v2249 = vmax.f32 %v2220, %v2223
    %v2250 = vrot.slane %v2249, 4
    %v2251 = vmax.f32 %v2249, %v2250
    %v2252 = vrot.slane %v2251, 2
    %v2253 = vmax.f32 %v2251, %v2252
    %v2254 = vrot.slane %v2253, 1
    %v2255 = vmax.f32 %v2253, %v2254
    %v2256 = vmax.f32 %v2221, %v2224
    %v2257 = vrot.slane %v2256, 4
    %v2258 = vmax.f32 %v2256, %v2257
    %v2259 = vrot.slane %v2258, 2
    %v2260 = vmax.f32 %v2258, %v2259
    %v2261 = vrot.slane %v2260, 1
    %v2262 = vmax.f32 %v2260, %v2261
    %v2263 = vsel %vm242, %v2222, -inf
    %v2264 = vsel %vm242, %v2225, -inf
    %v2265 = vmax.f32 %v2263, %v2264
    %v2266 = vrot.slane %v2265, 4
    %v2267 = vmax.f32 %v2265, %v2266
    %v2268 = vrot.slane %v2267, 2
    %v2269 = vmax.f32 %v2267, %v2268
    %v2270 = vrot.slane %v2269, 1
    %v2271 = vmax.f32 %v2269, %v2270
    %v2272 = vperm.slane %v465, 3
    %v2273 = vperm.slane %v466, 3
    %v2274 = vperm.slane %v467, 3
    %v2275 = vadd.f32 %v2232, %v2272
    %v2276 = vadd.f32 %v2239, %v2273
    %v2277 = vadd.f32 %v2248, %v2274
    %v2278 = vadd.f32 %v2255, %v2272
    %v2279 = vadd.f32 %v2262, %v2273
    %v2280 = vadd.f32 %v2271, %v2274
    %v2283 = vrot.slane %v2278, 7
    %v2284 = vsel %vm121, %v2283, %v2275
    %v2286 = vmul.f32 %v394, %v2284
    %2287 = vrot.lane.b32.xlu0 %v2284, 64
    %v2288 = vpop.permute.xlu0 %2287
    %v2290 = vmul.f32 %v398, %v2288
    %v2291 = vadd.f32 %v2286, %v2290
    %v2294 = vrot.slane %v2279, 7
    %v2295 = vsel %vm121, %v2294, %v2276
    %v2297 = vmul.f32 %v402, %v2295
    %v2298 = vadd.f32 %v2291, %v2297
    %2299 = vrot.lane.b32.xlu0 %v2295, 64
    %v2300 = vpop.permute.xlu0 %2299
    %v2302 = vmul.f32 %v406, %v2300
    %v2303 = vadd.f32 %v2298, %v2302
    %v2306 = vrot.slane %v2280, 7
    %v2307 = vsel %vm121, %v2306, %v2277
    %v2309 = vmul.f32 %v410, %v2307
    %v2310 = vadd.f32 %v2303, %v2309
    %v2311 = vld [vmem:[%s11 + $0x74] sm:$0xff]
    %v2312 = vld [vmem:[%s11 + $0x7c] sm:$0xff]
    %v2313 = vld [vmem:[%s11 + $0x84] sm:$0xff]
    %v2314 = vld [vmem:[%s11 + $0x8c] sm:$0xff]
    %v2315 = vld [vmem:[%s11 + $0x94] sm:$0xff]
    %v2316 = vld [vmem:[%s11 + $0x9c] sm:$0xff]
    %v2317 = vld [vmem:[%s11 + $0xa4] sm:$0xff]
    %v2318 = vld [vmem:[%s11 + $0xac] sm:$0xff]
    %v2319 = vld [vmem:[%s11 + $0xb4] sm:$0xff]
    %v2320 = vld [vmem:[%s11 + $0xbc] sm:$0xff]
    %v2321 = vld [vmem:[%s11 + $0xc4] sm:$0xff]
    %v2322 = vld [vmem:[%s11 + $0xcc] sm:$0xff]
    %v2323 = vld [vmem:[%s11 + $0xd4] sm:$0xf]
    %v2324 = vld [vmem:[%s11 + $0x14c] sm:$0xff]
    %v2325 = vld [vmem:[%s11 + $0x154] sm:$0xff]
    %v2326 = vld [vmem:[%s11 + $0x15c] sm:$0xff]
    %v2327 = vld [vmem:[%s11 + $0x164] sm:$0xff]
    %v2328 = vld [vmem:[%s11 + $0x16c] sm:$0xff]
    %v2329 = vld [vmem:[%s11 + $0x174] sm:$0xff]
    %v2330 = vld [vmem:[%s11 + $0x17c] sm:$0xff]
    %v2331 = vld [vmem:[%s11 + $0x184] sm:$0xff]
    %v2332 = vld [vmem:[%s11 + $0x18c] sm:$0xff]
    %v2333 = vld [vmem:[%s11 + $0x194] sm:$0xff]
    %v2334 = vld [vmem:[%s11 + $0x19c] sm:$0xff]
    %v2335 = vld [vmem:[%s11 + $0x1a4] sm:$0xff]
    %v2336 = vld [vmem:[%s11 + $0x1ac] sm:$0xf]
    %v2337 = vld [vmem:[%s11 + $0x224] sm:$0xff]
    %v2338 = vld [vmem:[%s11 + $0x22c] sm:$0xff]
    %v2339 = vld [vmem:[%s11 + $0x234] sm:$0xff]
    %v2340 = vld [vmem:[%s11 + $0x23c] sm:$0xff]
    %v2341 = vld [vmem:[%s11 + $0x244] sm:$0xff]
    %v2342 = vld [vmem:[%s11 + $0x24c] sm:$0xff]
    %v2343 = vld [vmem:[%s11 + $0x254] sm:$0xff]
    %v2344 = vld [vmem:[%s11 + $0x25c] sm:$0xff]
    %v2345 = vld [vmem:[%s11 + $0x264] sm:$0xff]
    %v2346 = vld [vmem:[%s11 + $0x26c] sm:$0xff]
    %v2347 = vld [vmem:[%s11 + $0x274] sm:$0xff]
    %v2348 = vld [vmem:[%s11 + $0x27c] sm:$0xff]
    %v2349 = vld [vmem:[%s11 + $0x284] sm:$0xf]
    %v2350 = vld [vmem:[%s11 + $0x2fc] sm:$0xff]
    %v2351 = vld [vmem:[%s11 + $0x304] sm:$0xff]
    %v2352 = vld [vmem:[%s11 + $0x30c] sm:$0xff]
    %v2353 = vld [vmem:[%s11 + $0x314] sm:$0xff]
    %v2354 = vld [vmem:[%s11 + $0x31c] sm:$0xff]
    %v2355 = vld [vmem:[%s11 + $0x324] sm:$0xff]
    %v2356 = vld [vmem:[%s11 + $0x32c] sm:$0xff]
    %v2357 = vld [vmem:[%s11 + $0x334] sm:$0xff]
    %v2358 = vld [vmem:[%s11 + $0x33c] sm:$0xff]
    %v2359 = vld [vmem:[%s11 + $0x344] sm:$0xff]
    %v2360 = vld [vmem:[%s11 + $0x34c] sm:$0xff]
    %v2361 = vld [vmem:[%s11 + $0x354] sm:$0xff]
    %v2362 = vld [vmem:[%s11 + $0x35c] sm:$0xf]
    %v2415 = vunpack.c.l.b16 %v2311
    %v2416 = vunpack.c.h.b16 %v2311
    %v2417 = vunpack.c.l.b16 %v2312
    %v2418 = vunpack.c.h.b16 %v2312
    %v2419 = vunpack.c.l.b16 %v2313
    %v2420 = vunpack.c.h.b16 %v2313
    %v2421 = vunpack.c.l.b16 %v2314
    %v2422 = vunpack.c.h.b16 %v2314
    %v2423 = vunpack.c.l.b16 %v2315
    %v2424 = vunpack.c.h.b16 %v2315
    %v2425 = vunpack.c.l.b16 %v2316
    %v2426 = vunpack.c.h.b16 %v2316
    %v2427 = vunpack.c.l.b16 %v2317
    %v2428 = vunpack.c.h.b16 %v2317
    %v2429 = vunpack.c.l.b16 %v2318
    %v2430 = vunpack.c.h.b16 %v2318
    %v2431 = vunpack.c.l.b16 %v2319
    %v2432 = vunpack.c.h.b16 %v2319
    %v2433 = vunpack.c.l.b16 %v2320
    %v2434 = vunpack.c.h.b16 %v2320
    %v2435 = vunpack.c.l.b16 %v2321
    %v2436 = vunpack.c.h.b16 %v2321
    %v2437 = vunpack.c.l.b16 %v2322
    %v2438 = vunpack.c.h.b16 %v2322
    %v2439 = vunpack.c.l.b16 %v2323
    %v2440 = vunpack.c.l.b16 %v2324
    %v2441 = vunpack.c.h.b16 %v2324
    %v2442 = vunpack.c.l.b16 %v2325
    %v2443 = vunpack.c.h.b16 %v2325
    %v2444 = vunpack.c.l.b16 %v2326
    %v2445 = vunpack.c.h.b16 %v2326
    %v2446 = vunpack.c.l.b16 %v2327
    %v2447 = vunpack.c.h.b16 %v2327
    %v2448 = vunpack.c.l.b16 %v2328
    %v2449 = vunpack.c.h.b16 %v2328
    %v2450 = vunpack.c.l.b16 %v2329
    %v2451 = vunpack.c.h.b16 %v2329
    %v2452 = vunpack.c.l.b16 %v2330
    %v2453 = vunpack.c.h.b16 %v2330
    %v2454 = vunpack.c.l.b16 %v2331
    %v2455 = vunpack.c.h.b16 %v2331
    %v2456 = vunpack.c.l.b16 %v2332
    %v2457 = vunpack.c.h.b16 %v2332
    %v2458 = vunpack.c.l.b16 %v2333
    %v2459 = vunpack.c.h.b16 %v2333
    %v2460 = vunpack.c.l.b16 %v2334
    %v2461 = vunpack.c.h.b16 %v2334
    %v2462 = vunpack.c.l.b16 %v2335
    %v2463 = vunpack.c.h.b16 %v2335
    %v2464 = vunpack.c.l.b16 %v2336
    %v2465 = vunpack.c.l.b16 %v2337
    %v2466 = vunpack.c.h.b16 %v2337
    %v2467 = vunpack.c.l.b16 %v2338
    %v2468 = vunpack.c.h.b16 %v2338
    %v2469 = vunpack.c.l.b16 %v2339
    %v2470 = vunpack.c.h.b16 %v2339
    %v2471 = vunpack.c.l.b16 %v2340
    %v2472 = vunpack.c.h.b16 %v2340
    %v2473 = vunpack.c.l.b16 %v2341
    %v2474 = vunpack.c.h.b16 %v2341
    %v2475 = vunpack.c.l.b16 %v2342
    %v2476 = vunpack.c.h.b16 %v2342
    %v2477 = vunpack.c.l.b16 %v2343
    %v2478 = vunpack.c.h.b16 %v2343
    %v2479 = vunpack.c.l.b16 %v2344
    %v2480 = vunpack.c.h.b16 %v2344
    %v2481 = vunpack.c.l.b16 %v2345
    %v2482 = vunpack.c.h.b16 %v2345
    %v2483 = vunpack.c.l.b16 %v2346
    %v2484 = vunpack.c.h.b16 %v2346
    %v2485 = vunpack.c.l.b16 %v2347
    %v2486 = vunpack.c.h.b16 %v2347
    %v2487 = vunpack.c.l.b16 %v2348
    %v2488 = vunpack.c.h.b16 %v2348
    %v2489 = vunpack.c.l.b16 %v2349
    %v2490 = vunpack.c.l.b16 %v2350
    %v2491 = vunpack.c.h.b16 %v2350
    %v2492 = vunpack.c.l.b16 %v2351
    %v2493 = vunpack.c.h.b16 %v2351
    %v2494 = vunpack.c.l.b16 %v2352
    %v2495 = vunpack.c.h.b16 %v2352
    %v2496 = vunpack.c.l.b16 %v2353
    %v2497 = vunpack.c.h.b16 %v2353
    %v2498 = vunpack.c.l.b16 %v2354
    %v2499 = vunpack.c.h.b16 %v2354
    %v2500 = vunpack.c.l.b16 %v2355
    %v2501 = vunpack.c.h.b16 %v2355
    %v2502 = vunpack.c.l.b16 %v2356
    %v2503 = vunpack.c.h.b16 %v2356
    %v2504 = vunpack.c.l.b16 %v2357
    %v2505 = vunpack.c.h.b16 %v2357
    %v2506 = vunpack.c.l.b16 %v2358
    %v2507 = vunpack.c.h.b16 %v2358
    %v2508 = vunpack.c.l.b16 %v2359
    %v2509 = vunpack.c.h.b16 %v2359
    %v2510 = vunpack.c.l.b16 %v2360
    %v2511 = vunpack.c.h.b16 %v2360
    %v2512 = vunpack.c.l.b16 %v2361
    %v2513 = vunpack.c.h.b16 %v2361
    %v2514 = vunpack.c.l.b16 %v2362
    %v2515 = vpack.c.b16 %v2440, %v2415
    %v2516 = vpack.c.b16 %v2441, %v2416
    %v2517 = vpack.c.b16 %v2442, %v2417
    %v2518 = vpack.c.b16 %v2443, %v2418
    %v2519 = vpack.c.b16 %v2444, %v2419
    %v2520 = vpack.c.b16 %v2445, %v2420
    %v2521 = vpack.c.b16 %v2446, %v2421
    %v2522 = vpack.c.b16 %v2447, %v2422
    %v2523 = vpack.c.b16 %v2448, %v2423
    %v2524 = vpack.c.b16 %v2449, %v2424
    %v2525 = vpack.c.b16 %v2450, %v2425
    %v2526 = vpack.c.b16 %v2451, %v2426
    %v2527 = vpack.c.b16 %v2452, %v2427
    %v2528 = vpack.c.b16 %v2453, %v2428
    %v2529 = vpack.c.b16 %v2454, %v2429
    %v2530 = vpack.c.b16 %v2455, %v2430
    %v2531 = vpack.c.b16 %v2456, %v2431
    %v2532 = vpack.c.b16 %v2457, %v2432
    %v2533 = vpack.c.b16 %v2458, %v2433
    %v2534 = vpack.c.b16 %v2459, %v2434
    %v2535 = vpack.c.b16 %v2460, %v2435
    %v2536 = vpack.c.b16 %v2461, %v2436
    %v2537 = vpack.c.b16 %v2462, %v2437
    %v2538 = vpack.c.b16 %v2463, %v2438
    %v2539 = vpack.c.b16 %v2464, %v2439
    %v2540 = vpack.c.b16 %v2490, %v2465
    %v2541 = vpack.c.b16 %v2491, %v2466
    %v2542 = vpack.c.b16 %v2492, %v2467
    %v2543 = vpack.c.b16 %v2493, %v2468
    %v2544 = vpack.c.b16 %v2494, %v2469
    %v2545 = vpack.c.b16 %v2495, %v2470
    %v2546 = vpack.c.b16 %v2496, %v2471
    %v2547 = vpack.c.b16 %v2497, %v2472
    %v2548 = vpack.c.b16 %v2498, %v2473
    %v2549 = vpack.c.b16 %v2499, %v2474
    %v2550 = vpack.c.b16 %v2500, %v2475
    %v2551 = vpack.c.b16 %v2501, %v2476
    %v2552 = vpack.c.b16 %v2502, %v2477
    %v2553 = vpack.c.b16 %v2503, %v2478
    %v2554 = vpack.c.b16 %v2504, %v2479
    %v2555 = vpack.c.b16 %v2505, %v2480
    %v2556 = vpack.c.b16 %v2506, %v2481
    %v2557 = vpack.c.b16 %v2507, %v2482
    %v2558 = vpack.c.b16 %v2508, %v2483
    %v2559 = vpack.c.b16 %v2509, %v2484
    %v2560 = vpack.c.b16 %v2510, %v2485
    %v2561 = vpack.c.b16 %v2511, %v2486
    %v2562 = vpack.c.b16 %v2512, %v2487
    %v2563 = vpack.c.b16 %v2513, %v2488
    %v2564 = vpack.c.b16 %v2514, %v2489
    %2615 = vmatpush.bf16.msra.mxu0 0
    %2616 = vmatpush.bf16.msra.mxu0 0
    %2617 = vmatpush.bf16.msra.mxu0 0
    %2618 = vmatpush.bf16.msra.mxu0 0
    %2619 = vmatpush.bf16.msra.mxu0 0
    %2620 = vmatpush.bf16.msra.mxu0 0
    %2621 = vmatpush.bf16.msra.mxu0 %v2540
    %2622 = vmatpush.bf16.msra.mxu0 %v2515
    %2623 = vmatmul.bf16.gmra.mxu0 %v519
    %v2624 = vpop.f32.mrf.mxu0
    %v2625 = vadd.f32 0.0, %v2624
    %v2626 = vpop.f32.mrf.mxu0
    %v2627 = vadd.f32 0.0, %v2626
    %2628 = vmatmul.bf16.gmra.mxu0 %v522
    %v2629 = vpop.f32.mrf.mxu0
    %v2630 = vadd.f32 0.0, %v2629
    %v2631 = vpop.f32.mrf.mxu0
    %v2632 = vadd.f32 0.0, %v2631
    %2633 = vdwg.mxu0
    %2634 = vmatpush.bf16.msra.mxu0 0
    %2635 = vmatpush.bf16.msra.mxu0 0
    %2636 = vmatpush.bf16.msra.mxu0 0
    %2637 = vmatpush.bf16.msra.mxu0 0
    %2638 = vmatpush.bf16.msra.mxu0 0
    %2639 = vmatpush.bf16.msra.mxu0 0
    %2640 = vmatpush.bf16.msra.mxu0 %v2541
    %2641 = vmatpush.bf16.msra.mxu0 %v2516
    %2642 = vmatmul.bf16.gmra.mxu0 %v519
    %v2643 = vpop.f32.mrf.mxu0
    %v2644 = vadd.f32 0.0, %v2643
    %v2645 = vpop.f32.mrf.mxu0
    %v2646 = vadd.f32 0.0, %v2645
    %2647 = vmatmul.bf16.gmra.mxu0 %v522
    %v2648 = vpop.f32.mrf.mxu0
    %v2649 = vadd.f32 0.0, %v2648
    %v2650 = vpop.f32.mrf.mxu0
    %v2651 = vadd.f32 0.0, %v2650
    %2652 = vdwg.mxu0
    %2653 = vmatpush.bf16.msra.mxu0 0
    %2654 = vmatpush.bf16.msra.mxu0 0
    %2655 = vmatpush.bf16.msra.mxu0 0
    %2656 = vmatpush.bf16.msra.mxu0 0
    %2657 = vmatpush.bf16.msra.mxu0 0
    %2658 = vmatpush.bf16.msra.mxu0 0
    %2659 = vmatpush.bf16.msra.mxu0 %v2542
    %2660 = vmatpush.bf16.msra.mxu0 %v2517
    %2661 = vmatmul.bf16.gmra.mxu0 %v519
    %v2662 = vpop.f32.mrf.mxu0
    %v2663 = vadd.f32 0.0, %v2662
    %v2664 = vpop.f32.mrf.mxu0
    %v2665 = vadd.f32 0.0, %v2664
    %2666 = vmatmul.bf16.gmra.mxu0 %v522
    %v2667 = vpop.f32.mrf.mxu0
    %v2668 = vadd.f32 0.0, %v2667
    %v2669 = vpop.f32.mrf.mxu0
    %v2670 = vadd.f32 0.0, %v2669
    %2671 = vdwg.mxu0
    %2672 = vmatpush.bf16.msra.mxu0 0
    %2673 = vmatpush.bf16.msra.mxu0 0
    %2674 = vmatpush.bf16.msra.mxu0 0
    %2675 = vmatpush.bf16.msra.mxu0 0
    %2676 = vmatpush.bf16.msra.mxu0 0
    %2677 = vmatpush.bf16.msra.mxu0 0
    %2678 = vmatpush.bf16.msra.mxu0 %v2543
    %2679 = vmatpush.bf16.msra.mxu0 %v2518
    %2680 = vmatmul.bf16.gmra.mxu0 %v519
    %v2681 = vpop.f32.mrf.mxu0
    %v2682 = vadd.f32 0.0, %v2681
    %v2683 = vpop.f32.mrf.mxu0
    %v2684 = vadd.f32 0.0, %v2683
    %2685 = vmatmul.bf16.gmra.mxu0 %v522
    %v2686 = vpop.f32.mrf.mxu0
    %v2687 = vadd.f32 0.0, %v2686
    %v2688 = vpop.f32.mrf.mxu0
    %v2689 = vadd.f32 0.0, %v2688
    %2690 = vdwg.mxu0
    %2691 = vmatpush.bf16.msra.mxu0 0
    %2692 = vmatpush.bf16.msra.mxu0 0
    %2693 = vmatpush.bf16.msra.mxu0 0
    %2694 = vmatpush.bf16.msra.mxu0 0
    %2695 = vmatpush.bf16.msra.mxu0 0
    %2696 = vmatpush.bf16.msra.mxu0 0
    %2697 = vmatpush.bf16.msra.mxu0 %v2544
    %2698 = vmatpush.bf16.msra.mxu0 %v2519
    %2699 = vmatmul.bf16.gmra.mxu0 %v519
    %v2700 = vpop.f32.mrf.mxu0
    %v2701 = vadd.f32 0.0, %v2700
    %v2702 = vpop.f32.mrf.mxu0
    %v2703 = vadd.f32 0.0, %v2702
    %2704 = vmatmul.bf16.gmra.mxu0 %v522
    %v2705 = vpop.f32.mrf.mxu0
    %v2706 = vadd.f32 0.0, %v2705
    %v2707 = vpop.f32.mrf.mxu0
    %v2708 = vadd.f32 0.0, %v2707
    %2709 = vdwg.mxu0
    %2710 = vmatpush.bf16.msra.mxu0 0
    %2711 = vmatpush.bf16.msra.mxu0 0
    %2712 = vmatpush.bf16.msra.mxu0 0
    %2713 = vmatpush.bf16.msra.mxu0 0
    %2714 = vmatpush.bf16.msra.mxu0 0
    %2715 = vmatpush.bf16.msra.mxu0 0
    %2716 = vmatpush.bf16.msra.mxu0 %v2545
    %2717 = vmatpush.bf16.msra.mxu0 %v2520
    %2718 = vmatmul.bf16.gmra.mxu0 %v519
    %v2719 = vpop.f32.mrf.mxu0
    %v2720 = vadd.f32 0.0, %v2719
    %v2721 = vpop.f32.mrf.mxu0
    %v2722 = vadd.f32 0.0, %v2721
    %2723 = vmatmul.bf16.gmra.mxu0 %v522
    %v2724 = vpop.f32.mrf.mxu0
    %v2725 = vadd.f32 0.0, %v2724
    %v2726 = vpop.f32.mrf.mxu0
    %v2727 = vadd.f32 0.0, %v2726
    %2728 = vdwg.mxu0
    %2729 = vmatpush.bf16.msra.mxu0 0
    %2730 = vmatpush.bf16.msra.mxu0 0
    %2731 = vmatpush.bf16.msra.mxu0 0
    %2732 = vmatpush.bf16.msra.mxu0 0
    %2733 = vmatpush.bf16.msra.mxu0 0
    %2734 = vmatpush.bf16.msra.mxu0 0
    %2735 = vmatpush.bf16.msra.mxu0 %v2546
    %2736 = vmatpush.bf16.msra.mxu0 %v2521
    %2737 = vmatmul.bf16.gmra.mxu0 %v519
    %v2738 = vpop.f32.mrf.mxu0
    %v2739 = vadd.f32 0.0, %v2738
    %v2740 = vpop.f32.mrf.mxu0
    %v2741 = vadd.f32 0.0, %v2740
    %2742 = vmatmul.bf16.gmra.mxu0 %v522
    %v2743 = vpop.f32.mrf.mxu0
    %v2744 = vadd.f32 0.0, %v2743
    %v2745 = vpop.f32.mrf.mxu0
    %v2746 = vadd.f32 0.0, %v2745
    %2747 = vdwg.mxu0
    %2748 = vmatpush.bf16.msra.mxu0 0
    %2749 = vmatpush.bf16.msra.mxu0 0
    %2750 = vmatpush.bf16.msra.mxu0 0
    %2751 = vmatpush.bf16.msra.mxu0 0
    %2752 = vmatpush.bf16.msra.mxu0 0
    %2753 = vmatpush.bf16.msra.mxu0 0
    %2754 = vmatpush.bf16.msra.mxu0 %v2547
    %2755 = vmatpush.bf16.msra.mxu0 %v2522
    %2756 = vmatmul.bf16.gmra.mxu0 %v519
    %v2757 = vpop.f32.mrf.mxu0
    %v2758 = vadd.f32 0.0, %v2757
    %v2759 = vpop.f32.mrf.mxu0
    %v2760 = vadd.f32 0.0, %v2759
    %2761 = vmatmul.bf16.gmra.mxu0 %v522
    %v2762 = vpop.f32.mrf.mxu0
    %v2763 = vadd.f32 0.0, %v2762
    %v2764 = vpop.f32.mrf.mxu0
    %v2765 = vadd.f32 0.0, %v2764
    %2766 = vdwg.mxu0
    %2767 = vmatpush.bf16.msra.mxu0 0
    %2768 = vmatpush.bf16.msra.mxu0 0
    %2769 = vmatpush.bf16.msra.mxu0 0
    %2770 = vmatpush.bf16.msra.mxu0 0
    %2771 = vmatpush.bf16.msra.mxu0 0
    %2772 = vmatpush.bf16.msra.mxu0 0
    %2773 = vmatpush.bf16.msra.mxu0 %v2548
    %2774 = vmatpush.bf16.msra.mxu0 %v2523
    %2775 = vmatmul.bf16.gmra.mxu0 %v519
    %v2776 = vpop.f32.mrf.mxu0
    %v2777 = vadd.f32 0.0, %v2776
    %v2778 = vpop.f32.mrf.mxu0
    %v2779 = vadd.f32 0.0, %v2778
    %2780 = vmatmul.bf16.gmra.mxu0 %v522
    %v2781 = vpop.f32.mrf.mxu0
    %v2782 = vadd.f32 0.0, %v2781
    %v2783 = vpop.f32.mrf.mxu0
    %v2784 = vadd.f32 0.0, %v2783
    %2785 = vdwg.mxu0
    %2786 = vmatpush.bf16.msra.mxu0 0
    %2787 = vmatpush.bf16.msra.mxu0 0
    %2788 = vmatpush.bf16.msra.mxu0 0
    %2789 = vmatpush.bf16.msra.mxu0 0
    %2790 = vmatpush.bf16.msra.mxu0 0
    %2791 = vmatpush.bf16.msra.mxu0 0
    %2792 = vmatpush.bf16.msra.mxu0 %v2549
    %2793 = vmatpush.bf16.msra.mxu0 %v2524
    %2794 = vmatmul.bf16.gmra.mxu0 %v519
    %v2795 = vpop.f32.mrf.mxu0
    %v2796 = vadd.f32 0.0, %v2795
    %v2797 = vpop.f32.mrf.mxu0
    %v2798 = vadd.f32 0.0, %v2797
    %2799 = vmatmul.bf16.gmra.mxu0 %v522
    %v2800 = vpop.f32.mrf.mxu0
    %v2801 = vadd.f32 0.0, %v2800
    %v2802 = vpop.f32.mrf.mxu0
    %v2803 = vadd.f32 0.0, %v2802
    %2804 = vdwg.mxu0
    %2805 = vmatpush.bf16.msra.mxu0 0
    %2806 = vmatpush.bf16.msra.mxu0 0
    %2807 = vmatpush.bf16.msra.mxu0 0
    %2808 = vmatpush.bf16.msra.mxu0 0
    %2809 = vmatpush.bf16.msra.mxu0 0
    %2810 = vmatpush.bf16.msra.mxu0 0
    %2811 = vmatpush.bf16.msra.mxu0 %v2550
    %2812 = vmatpush.bf16.msra.mxu0 %v2525
    %2813 = vmatmul.bf16.gmra.mxu0 %v519
    %v2814 = vpop.f32.mrf.mxu0
    %v2815 = vadd.f32 0.0, %v2814
    %v2816 = vpop.f32.mrf.mxu0
    %v2817 = vadd.f32 0.0, %v2816
    %2818 = vmatmul.bf16.gmra.mxu0 %v522
    %v2819 = vpop.f32.mrf.mxu0
    %v2820 = vadd.f32 0.0, %v2819
    %v2821 = vpop.f32.mrf.mxu0
    %v2822 = vadd.f32 0.0, %v2821
    %2823 = vdwg.mxu0
    %2824 = vmatpush.bf16.msra.mxu0 0
    %2825 = vmatpush.bf16.msra.mxu0 0
    %2826 = vmatpush.bf16.msra.mxu0 0
    %2827 = vmatpush.bf16.msra.mxu0 0
    %2828 = vmatpush.bf16.msra.mxu0 0
    %2829 = vmatpush.bf16.msra.mxu0 0
    %2830 = vmatpush.bf16.msra.mxu0 %v2551
    %2831 = vmatpush.bf16.msra.mxu0 %v2526
    %2832 = vmatmul.bf16.gmra.mxu0 %v519
    %v2833 = vpop.f32.mrf.mxu0
    %v2834 = vadd.f32 0.0, %v2833
    %v2835 = vpop.f32.mrf.mxu0
    %v2836 = vadd.f32 0.0, %v2835
    %2837 = vmatmul.bf16.gmra.mxu0 %v522
    %v2838 = vpop.f32.mrf.mxu0
    %v2839 = vadd.f32 0.0, %v2838
    %v2840 = vpop.f32.mrf.mxu0
    %v2841 = vadd.f32 0.0, %v2840
    %2842 = vdwg.mxu0
    %2843 = vmatpush.bf16.msra.mxu0 0
    %2844 = vmatpush.bf16.msra.mxu0 0
    %2845 = vmatpush.bf16.msra.mxu0 0
    %2846 = vmatpush.bf16.msra.mxu0 0
    %2847 = vmatpush.bf16.msra.mxu0 0
    %2848 = vmatpush.bf16.msra.mxu0 0
    %2849 = vmatpush.bf16.msra.mxu0 %v2552
    %2850 = vmatpush.bf16.msra.mxu0 %v2527
    %2851 = vmatmul.bf16.gmra.mxu0 %v519
    %v2852 = vpop.f32.mrf.mxu0
    %v2853 = vadd.f32 0.0, %v2852
    %v2854 = vpop.f32.mrf.mxu0
    %v2855 = vadd.f32 0.0, %v2854
    %2856 = vmatmul.bf16.gmra.mxu0 %v522
    %v2857 = vpop.f32.mrf.mxu0
    %v2858 = vadd.f32 0.0, %v2857
    %v2859 = vpop.f32.mrf.mxu0
    %v2860 = vadd.f32 0.0, %v2859
    %2861 = vdwg.mxu0
    %2862 = vmatpush.bf16.msra.mxu0 0
    %2863 = vmatpush.bf16.msra.mxu0 0
    %2864 = vmatpush.bf16.msra.mxu0 0
    %2865 = vmatpush.bf16.msra.mxu0 0
    %2866 = vmatpush.bf16.msra.mxu0 0
    %2867 = vmatpush.bf16.msra.mxu0 0
    %2868 = vmatpush.bf16.msra.mxu0 %v2553
    %2869 = vmatpush.bf16.msra.mxu0 %v2528
    %2870 = vmatmul.bf16.gmra.mxu0 %v519
    %v2871 = vpop.f32.mrf.mxu0
    %v2872 = vadd.f32 0.0, %v2871
    %v2873 = vpop.f32.mrf.mxu0
    %v2874 = vadd.f32 0.0, %v2873
    %2875 = vmatmul.bf16.gmra.mxu0 %v522
    %v2876 = vpop.f32.mrf.mxu0
    %v2877 = vadd.f32 0.0, %v2876
    %v2878 = vpop.f32.mrf.mxu0
    %v2879 = vadd.f32 0.0, %v2878
    %2880 = vdwg.mxu0
    %2881 = vmatpush.bf16.msra.mxu0 0
    %2882 = vmatpush.bf16.msra.mxu0 0
    %2883 = vmatpush.bf16.msra.mxu0 0
    %2884 = vmatpush.bf16.msra.mxu0 0
    %2885 = vmatpush.bf16.msra.mxu0 0
    %2886 = vmatpush.bf16.msra.mxu0 0
    %2887 = vmatpush.bf16.msra.mxu0 %v2554
    %2888 = vmatpush.bf16.msra.mxu0 %v2529
    %2889 = vmatmul.bf16.gmra.mxu0 %v519
    %v2890 = vpop.f32.mrf.mxu0
    %v2891 = vadd.f32 0.0, %v2890
    %v2892 = vpop.f32.mrf.mxu0
    %v2893 = vadd.f32 0.0, %v2892
    %2894 = vmatmul.bf16.gmra.mxu0 %v522
    %v2895 = vpop.f32.mrf.mxu0
    %v2896 = vadd.f32 0.0, %v2895
    %v2897 = vpop.f32.mrf.mxu0
    %v2898 = vadd.f32 0.0, %v2897
    %2899 = vdwg.mxu0
    %2900 = vmatpush.bf16.msra.mxu0 0
    %2901 = vmatpush.bf16.msra.mxu0 0
    %2902 = vmatpush.bf16.msra.mxu0 0
    %2903 = vmatpush.bf16.msra.mxu0 0
    %2904 = vmatpush.bf16.msra.mxu0 0
    %2905 = vmatpush.bf16.msra.mxu0 0
    %2906 = vmatpush.bf16.msra.mxu0 %v2555
    %2907 = vmatpush.bf16.msra.mxu0 %v2530
    %2908 = vmatmul.bf16.gmra.mxu0 %v519
    %v2909 = vpop.f32.mrf.mxu0
    %v2910 = vadd.f32 0.0, %v2909
    %v2911 = vpop.f32.mrf.mxu0
    %v2912 = vadd.f32 0.0, %v2911
    %2913 = vmatmul.bf16.gmra.mxu0 %v522
    %v2914 = vpop.f32.mrf.mxu0
    %v2915 = vadd.f32 0.0, %v2914
    %v2916 = vpop.f32.mrf.mxu0
    %v2917 = vadd.f32 0.0, %v2916
    %2918 = vdwg.mxu0
    %2919 = vmatpush.bf16.msra.mxu0 0
    %2920 = vmatpush.bf16.msra.mxu0 0
    %2921 = vmatpush.bf16.msra.mxu0 0
    %2922 = vmatpush.bf16.msra.mxu0 0
    %2923 = vmatpush.bf16.msra.mxu0 0
    %2924 = vmatpush.bf16.msra.mxu0 0
    %2925 = vmatpush.bf16.msra.mxu0 %v2556
    %2926 = vmatpush.bf16.msra.mxu0 %v2531
    %2927 = vmatmul.bf16.gmra.mxu0 %v519
    %v2928 = vpop.f32.mrf.mxu0
    %v2929 = vadd.f32 0.0, %v2928
    %v2930 = vpop.f32.mrf.mxu0
    %v2931 = vadd.f32 0.0, %v2930
    %2932 = vmatmul.bf16.gmra.mxu0 %v522
    %v2933 = vpop.f32.mrf.mxu0
    %v2934 = vadd.f32 0.0, %v2933
    %v2935 = vpop.f32.mrf.mxu0
    %v2936 = vadd.f32 0.0, %v2935
    %2937 = vdwg.mxu0
    %2938 = vmatpush.bf16.msra.mxu0 0
    %2939 = vmatpush.bf16.msra.mxu0 0
    %2940 = vmatpush.bf16.msra.mxu0 0
    %2941 = vmatpush.bf16.msra.mxu0 0
    %2942 = vmatpush.bf16.msra.mxu0 0
    %2943 = vmatpush.bf16.msra.mxu0 0
    %2944 = vmatpush.bf16.msra.mxu0 %v2557
    %2945 = vmatpush.bf16.msra.mxu0 %v2532
    %2946 = vmatmul.bf16.gmra.mxu0 %v519
    %v2947 = vpop.f32.mrf.mxu0
    %v2948 = vadd.f32 0.0, %v2947
    %v2949 = vpop.f32.mrf.mxu0
    %v2950 = vadd.f32 0.0, %v2949
    %2951 = vmatmul.bf16.gmra.mxu0 %v522
    %v2952 = vpop.f32.mrf.mxu0
    %v2953 = vadd.f32 0.0, %v2952
    %v2954 = vpop.f32.mrf.mxu0
    %v2955 = vadd.f32 0.0, %v2954
    %2956 = vdwg.mxu0
    %2957 = vmatpush.bf16.msra.mxu0 0
    %2958 = vmatpush.bf16.msra.mxu0 0
    %2959 = vmatpush.bf16.msra.mxu0 0
    %2960 = vmatpush.bf16.msra.mxu0 0
    %2961 = vmatpush.bf16.msra.mxu0 0
    %2962 = vmatpush.bf16.msra.mxu0 0
    %2963 = vmatpush.bf16.msra.mxu0 %v2558
    %2964 = vmatpush.bf16.msra.mxu0 %v2533
    %2965 = vmatmul.bf16.gmra.mxu0 %v519
    %v2966 = vpop.f32.mrf.mxu0
    %v2967 = vadd.f32 0.0, %v2966
    %v2968 = vpop.f32.mrf.mxu0
    %v2969 = vadd.f32 0.0, %v2968
    %2970 = vmatmul.bf16.gmra.mxu0 %v522
    %v2971 = vpop.f32.mrf.mxu0
    %v2972 = vadd.f32 0.0, %v2971
    %v2973 = vpop.f32.mrf.mxu0
    %v2974 = vadd.f32 0.0, %v2973
    %2975 = vdwg.mxu0
    %2976 = vmatpush.bf16.msra.mxu0 0
    %2977 = vmatpush.bf16.msra.mxu0 0
    %2978 = vmatpush.bf16.msra.mxu0 0
    %2979 = vmatpush.bf16.msra.mxu0 0
    %2980 = vmatpush.bf16.msra.mxu0 0
    %2981 = vmatpush.bf16.msra.mxu0 0
    %2982 = vmatpush.bf16.msra.mxu0 %v2559
    %2983 = vmatpush.bf16.msra.mxu0 %v2534
    %2984 = vmatmul.bf16.gmra.mxu0 %v519
    %v2985 = vpop.f32.mrf.mxu0
    %v2986 = vadd.f32 0.0, %v2985
    %v2987 = vpop.f32.mrf.mxu0
    %v2988 = vadd.f32 0.0, %v2987
    %2989 = vmatmul.bf16.gmra.mxu0 %v522
    %v2990 = vpop.f32.mrf.mxu0
    %v2991 = vadd.f32 0.0, %v2990
    %v2992 = vpop.f32.mrf.mxu0
    %v2993 = vadd.f32 0.0, %v2992
    %2994 = vdwg.mxu0
    %2995 = vmatpush.bf16.msra.mxu0 0
    %2996 = vmatpush.bf16.msra.mxu0 0
    %2997 = vmatpush.bf16.msra.mxu0 0
    %2998 = vmatpush.bf16.msra.mxu0 0
    %2999 = vmatpush.bf16.msra.mxu0 0
    %3000 = vmatpush.bf16.msra.mxu0 0
    %3001 = vmatpush.bf16.msra.mxu0 %v2560
    %3002 = vmatpush.bf16.msra.mxu0 %v2535
    %3003 = vmatmul.bf16.gmra.mxu0 %v519
    %v3004 = vpop.f32.mrf.mxu0
    %v3005 = vadd.f32 0.0, %v3004
    %v3006 = vpop.f32.mrf.mxu0
    %v3007 = vadd.f32 0.0, %v3006
    %3008 = vmatmul.bf16.gmra.mxu0 %v522
    %v3009 = vpop.f32.mrf.mxu0
    %v3010 = vadd.f32 0.0, %v3009
    %v3011 = vpop.f32.mrf.mxu0
    %v3012 = vadd.f32 0.0, %v3011
    %3013 = vdwg.mxu0
    %3014 = vmatpush.bf16.msra.mxu0 0
    %3015 = vmatpush.bf16.msra.mxu0 0
    %3016 = vmatpush.bf16.msra.mxu0 0
    %3017 = vmatpush.bf16.msra.mxu0 0
    %3018 = vmatpush.bf16.msra.mxu0 0
    %3019 = vmatpush.bf16.msra.mxu0 0
    %3020 = vmatpush.bf16.msra.mxu0 %v2561
    %3021 = vmatpush.bf16.msra.mxu0 %v2536
    %3022 = vmatmul.bf16.gmra.mxu0 %v519
    %v3023 = vpop.f32.mrf.mxu0
    %v3024 = vadd.f32 0.0, %v3023
    %v3025 = vpop.f32.mrf.mxu0
    %v3026 = vadd.f32 0.0, %v3025
    %3027 = vmatmul.bf16.gmra.mxu0 %v522
    %v3028 = vpop.f32.mrf.mxu0
    %v3029 = vadd.f32 0.0, %v3028
    %v3030 = vpop.f32.mrf.mxu0
    %v3031 = vadd.f32 0.0, %v3030
    %3032 = vdwg.mxu0
    %3033 = vmatpush.bf16.msra.mxu0 0
    %3034 = vmatpush.bf16.msra.mxu0 0
    %3035 = vmatpush.bf16.msra.mxu0 0
    %3036 = vmatpush.bf16.msra.mxu0 0
    %3037 = vmatpush.bf16.msra.mxu0 0
    %3038 = vmatpush.bf16.msra.mxu0 0
    %3039 = vmatpush.bf16.msra.mxu0 %v2562
    %3040 = vmatpush.bf16.msra.mxu0 %v2537
    %3041 = vmatmul.bf16.gmra.mxu0 %v519
    %v3042 = vpop.f32.mrf.mxu0
    %v3043 = vadd.f32 0.0, %v3042
    %v3044 = vpop.f32.mrf.mxu0
    %v3045 = vadd.f32 0.0, %v3044
    %3046 = vmatmul.bf16.gmra.mxu0 %v522
    %v3047 = vpop.f32.mrf.mxu0
    %v3048 = vadd.f32 0.0, %v3047
    %v3049 = vpop.f32.mrf.mxu0
    %v3050 = vadd.f32 0.0, %v3049
    %3051 = vdwg.mxu0
    %3052 = vmatpush.bf16.msra.mxu0 0
    %3053 = vmatpush.bf16.msra.mxu0 0
    %3054 = vmatpush.bf16.msra.mxu0 0
    %3055 = vmatpush.bf16.msra.mxu0 0
    %3056 = vmatpush.bf16.msra.mxu0 0
    %3057 = vmatpush.bf16.msra.mxu0 0
    %3058 = vmatpush.bf16.msra.mxu0 %v2563
    %3059 = vmatpush.bf16.msra.mxu0 %v2538
    %3060 = vmatmul.bf16.gmra.mxu0 %v519
    %v3061 = vpop.f32.mrf.mxu0
    %v3062 = vadd.f32 0.0, %v3061
    %v3063 = vpop.f32.mrf.mxu0
    %v3064 = vadd.f32 0.0, %v3063
    %3065 = vmatmul.bf16.gmra.mxu0 %v522
    %v3066 = vpop.f32.mrf.mxu0
    %v3067 = vadd.f32 0.0, %v3066
    %v3068 = vpop.f32.mrf.mxu0
    %v3069 = vadd.f32 0.0, %v3068
    %3070 = vdwg.mxu0
    %3071 = vmatpush.bf16.msra.mxu0 0
    %3072 = vmatpush.bf16.msra.mxu0 0
    %3073 = vmatpush.bf16.msra.mxu0 0
    %3074 = vmatpush.bf16.msra.mxu0 0
    %3075 = vmatpush.bf16.msra.mxu0 0
    %3076 = vmatpush.bf16.msra.mxu0 0
    %3077 = vmatpush.bf16.msra.mxu0 %v2564
    %3078 = vmatpush.bf16.msra.mxu0 %v2539
    %3079 = vmatmul.bf16.gmra.mxu0 %v519
    %v3080 = vpop.f32.mrf.mxu0
    %v3081 = vadd.f32 0.0, %v3080
    %v3082 = vpop.f32.mrf.mxu0
    %v3083 = vadd.f32 0.0, %v3082
    %3084 = vmatmul.bf16.gmra.mxu0 %v522
    %v3085 = vpop.f32.mrf.mxu0
    %v3086 = vadd.f32 0.0, %v3085
    %v3087 = vpop.f32.mrf.mxu0
    %v3088 = vadd.f32 0.0, %v3087
    %3089 = vdwg.mxu0
    %3102 = vrot.lane.b32.xlu0 %v2663, 64
    %v3103 = vpop.permute.xlu0 %3102
    %3104 = vrot.lane.b32.xlu0 %v2682, 64
    %v3105 = vpop.permute.xlu0 %3104
    %3106 = vrot.lane.b32.xlu0 %v2701, 64
    %v3107 = vpop.permute.xlu0 %3106
    %3108 = vrot.lane.b32.xlu0 %v2665, 64
    %v3109 = vpop.permute.xlu0 %3108
    %3110 = vrot.lane.b32.xlu0 %v2684, 64
    %v3111 = vpop.permute.xlu0 %3110
    %3112 = vrot.lane.b32.xlu0 %v2703, 64
    %v3113 = vpop.permute.xlu0 %3112
    %3114 = vrot.lane.b32.xlu0 %v2668, 64
    %v3115 = vpop.permute.xlu0 %3114
    %3116 = vrot.lane.b32.xlu0 %v2687, 64
    %v3117 = vpop.permute.xlu0 %3116
    %3118 = vrot.lane.b32.xlu0 %v2706, 64
    %v3119 = vpop.permute.xlu0 %3118
    %3120 = vrot.lane.b32.xlu0 %v2670, 64
    %v3121 = vpop.permute.xlu0 %3120
    %3122 = vrot.lane.b32.xlu0 %v2689, 64
    %v3123 = vpop.permute.xlu0 %3122
    %3124 = vrot.lane.b32.xlu0 %v2708, 64
    %v3125 = vpop.permute.xlu0 %3124
    %v3126 = vsel %vm242, %v3103, %v3105
    %v3127 = vsel %vm242, %v3105, %v3107
    %v3128 = vsel %vm242, %v3109, %v3111
    %v3129 = vsel %vm242, %v3111, %v3113
    %v3130 = vsel %vm242, %v3115, %v3117
    %v3131 = vsel %vm242, %v3117, %v3119
    %v3132 = vsel %vm242, %v3121, %v3123
    %v3133 = vsel %vm242, %v3123, %v3125
    %v3146 = vrot.slane %v3126, 1
    %v3147 = vrot.slane %v3127, 1
    %v3148 = vrot.slane %v3107, 1
    %v3149 = vrot.slane %v3128, 1
    %v3150 = vrot.slane %v3129, 1
    %v3151 = vrot.slane %v3113, 1
    %v3152 = vrot.slane %v3130, 1
    %v3153 = vrot.slane %v3131, 1
    %v3154 = vrot.slane %v3119, 1
    %v3155 = vrot.slane %v3132, 1
    %v3156 = vrot.slane %v3133, 1
    %v3157 = vrot.slane %v3125, 1
    %v3158 = vsel %vm917, %v3152, %v3155
    %v3159 = vsel %vm917, %v3153, %v3156
    %v3160 = vsel %vm917, %v3154, %v3157
    %v3161 = vsel %vm917, %v3149, %v3152
    %v3162 = vsel %vm917, %v3150, %v3153
    %v3163 = vsel %vm917, %v3151, %v3154
    %v3164 = vsel %vm917, %v3146, %v3149
    %v3165 = vsel %vm917, %v3147, %v3150
    %v3166 = vsel %vm917, %v3148, %v3151
    %v3167 = vsel %vm917, %v3155, %v3146
    %v3168 = vsel %vm917, %v3156, %v3147
    %v3169 = vsel %vm917, %v3157, %v3148
    %v3170 = vadd.f32 %v2625, %v3164
    %v3171 = vadd.f32 %v2644, %v3165
    %v3172 = vadd.f32 %v2663, %v3166
    %v3173 = vadd.f32 %v2627, %v3161
    %v3174 = vadd.f32 %v2646, %v3162
    %v3175 = vadd.f32 %v2665, %v3163
    %v3176 = vadd.f32 %v2630, %v3158
    %v3177 = vadd.f32 %v2649, %v3159
    %v3178 = vadd.f32 %v2668, %v3160
    %v3179 = vadd.f32 %v2632, %v3167
    %v3180 = vadd.f32 %v2651, %v3168
    %v3181 = vadd.f32 %v2670, %v3169
    %v3182 = vrot.slane %v2720, 2
    %v3183 = vrot.slane %v2739, 2
    %v3184 = vrot.slane %v2758, 2
    %v3185 = vrot.slane %v2722, 2
    %v3186 = vrot.slane %v2741, 2
    %v3187 = vrot.slane %v2760, 2
    %v3188 = vrot.slane %v2725, 2
    %v3189 = vrot.slane %v2744, 2
    %v3190 = vrot.slane %v2763, 2
    %v3191 = vrot.slane %v2727, 2
    %v3192 = vrot.slane %v2746, 2
    %v3193 = vrot.slane %v2765, 2
    %v3194 = vsel %vm1403, %v3188, %v3191
    %v3195 = vsel %vm1403, %v3189, %v3192
    %v3196 = vsel %vm1403, %v3190, %v3193
    %v3197 = vsel %vm1403, %v3185, %v3188
    %v3198 = vsel %vm1403, %v3186, %v3189
    %v3199 = vsel %vm1403, %v3187, %v3190
    %v3200 = vsel %vm1403, %v3182, %v3185
    %v3201 = vsel %vm1403, %v3183, %v3186
    %v3202 = vsel %vm1403, %v3184, %v3187
    %v3203 = vsel %vm1403, %v3191, %v3182
    %v3204 = vsel %vm1403, %v3192, %v3183
    %v3205 = vsel %vm1403, %v3193, %v3184
    %v3206 = vadd.f32 %v3170, %v3200
    %v3207 = vadd.f32 %v3171, %v3201
    %v3208 = vadd.f32 %v3172, %v3202
    %v3209 = vadd.f32 %v3173, %v3197
    %v3210 = vadd.f32 %v3174, %v3198
    %v3211 = vadd.f32 %v3175, %v3199
    %v3212 = vadd.f32 %v3176, %v3194
    %v3213 = vadd.f32 %v3177, %v3195
    %v3214 = vadd.f32 %v3178, %v3196
    %v3215 = vadd.f32 %v3179, %v3203
    %v3216 = vadd.f32 %v3180, %v3204
    %v3217 = vadd.f32 %v3181, %v3205
    %3230 = vrot.lane.b32.xlu0 %v2758, 64
    %v3231 = vpop.permute.xlu0 %3230
    %3232 = vrot.lane.b32.xlu0 %v2777, 64
    %v3233 = vpop.permute.xlu0 %3232
    %3234 = vrot.lane.b32.xlu0 %v2796, 64
    %v3235 = vpop.permute.xlu0 %3234
    %3236 = vrot.lane.b32.xlu0 %v2760, 64
    %v3237 = vpop.permute.xlu0 %3236
    %3238 = vrot.lane.b32.xlu0 %v2779, 64
    %v3239 = vpop.permute.xlu0 %3238
    %3240 = vrot.lane.b32.xlu0 %v2798, 64
    %v3241 = vpop.permute.xlu0 %3240
    %3242 = vrot.lane.b32.xlu0 %v2763, 64
    %v3243 = vpop.permute.xlu0 %3242
    %3244 = vrot.lane.b32.xlu0 %v2782, 64
    %v3245 = vpop.permute.xlu0 %3244
    %3246 = vrot.lane.b32.xlu0 %v2801, 64
    %v3247 = vpop.permute.xlu0 %3246
    %3248 = vrot.lane.b32.xlu0 %v2765, 64
    %v3249 = vpop.permute.xlu0 %3248
    %3250 = vrot.lane.b32.xlu0 %v2784, 64
    %v3251 = vpop.permute.xlu0 %3250
    %3252 = vrot.lane.b32.xlu0 %v2803, 64
    %v3253 = vpop.permute.xlu0 %3252
    %v3254 = vsel %vm242, %v3231, %v3233
    %v3255 = vsel %vm242, %v3233, %v3235
    %v3256 = vsel %vm242, %v3237, %v3239
    %v3257 = vsel %vm242, %v3239, %v3241
    %v3258 = vsel %vm242, %v3243, %v3245
    %v3259 = vsel %vm242, %v3245, %v3247
    %v3260 = vsel %vm242, %v3249, %v3251
    %v3261 = vsel %vm242, %v3251, %v3253
    %v3274 = vrot.slane %v3254, 3
    %v3275 = vrot.slane %v3255, 3
    %v3276 = vrot.slane %v3235, 3
    %v3277 = vrot.slane %v3256, 3
    %v3278 = vrot.slane %v3257, 3
    %v3279 = vrot.slane %v3241, 3
    %v3280 = vrot.slane %v3258, 3
    %v3281 = vrot.slane %v3259, 3
    %v3282 = vrot.slane %v3247, 3
    %v3283 = vrot.slane %v3260, 3
    %v3284 = vrot.slane %v3261, 3
    %v3285 = vrot.slane %v3253, 3
    %v3286 = vsel %vm2140, %v3280, %v3283
    %v3287 = vsel %vm2140, %v3281, %v3284
    %v3288 = vsel %vm2140, %v3282, %v3285
    %v3289 = vsel %vm2140, %v3277, %v3280
    %v3290 = vsel %vm2140, %v3278, %v3281
    %v3291 = vsel %vm2140, %v3279, %v3282
    %v3292 = vsel %vm2140, %v3274, %v3277
    %v3293 = vsel %vm2140, %v3275, %v3278
    %v3294 = vsel %vm2140, %v3276, %v3279
    %v3295 = vsel %vm2140, %v3283, %v3274
    %v3296 = vsel %vm2140, %v3284, %v3275
    %v3297 = vsel %vm2140, %v3285, %v3276
    %v3298 = vadd.f32 %v3206, %v3292
    %v3299 = vadd.f32 %v3207, %v3293
    %v3300 = vadd.f32 %v3208, %v3294
    %v3301 = vadd.f32 %v3209, %v3289
    %v3302 = vadd.f32 %v3210, %v3290
    %v3303 = vadd.f32 %v3211, %v3291
    %v3304 = vadd.f32 %v3212, %v3286
    %v3305 = vadd.f32 %v3213, %v3287
    %v3306 = vadd.f32 %v3214, %v3288
    %v3307 = vadd.f32 %v3215, %v3295
    %v3308 = vadd.f32 %v3216, %v3296
    %v3309 = vadd.f32 %v3217, %v3297
    %v3310 = vrot.slane %v2815, 4
    %v3311 = vrot.slane %v2834, 4
    %v3312 = vrot.slane %v2853, 4
    %v3313 = vrot.slane %v2817, 4
    %v3314 = vrot.slane %v2836, 4
    %v3315 = vrot.slane %v2855, 4
    %v3316 = vrot.slane %v2820, 4
    %v3317 = vrot.slane %v2839, 4
    %v3318 = vrot.slane %v2858, 4
    %v3319 = vrot.slane %v2822, 4
    %v3320 = vrot.slane %v2841, 4
    %v3321 = vrot.slane %v2860, 4
    %v3322 = vsel %vm2177, %v3316, %v3319
    %v3323 = vsel %vm2177, %v3317, %v3320
    %v3324 = vsel %vm2177, %v3318, %v3321
    %v3325 = vsel %vm2177, %v3313, %v3316
    %v3326 = vsel %vm2177, %v3314, %v3317
    %v3327 = vsel %vm2177, %v3315, %v3318
    %v3328 = vsel %vm2177, %v3310, %v3313
    %v3329 = vsel %vm2177, %v3311, %v3314
    %v3330 = vsel %vm2177, %v3312, %v3315
    %v3331 = vsel %vm2177, %v3319, %v3310
    %v3332 = vsel %vm2177, %v3320, %v3311
    %v3333 = vsel %vm2177, %v3321, %v3312
    %v3334 = vadd.f32 %v3298, %v3328
    %v3335 = vadd.f32 %v3299, %v3329
    %v3336 = vadd.f32 %v3300, %v3330
    %v3337 = vadd.f32 %v3301, %v3325
    %v3338 = vadd.f32 %v3302, %v3326
    %v3339 = vadd.f32 %v3303, %v3327
    %v3340 = vadd.f32 %v3304, %v3322
    %v3341 = vadd.f32 %v3305, %v3323
    %v3342 = vadd.f32 %v3306, %v3324
    %v3343 = vadd.f32 %v3307, %v3331
    %v3344 = vadd.f32 %v3308, %v3332
    %v3345 = vadd.f32 %v3309, %v3333
    %3358 = vrot.lane.b32.xlu0 %v2853, 64
    %v3359 = vpop.permute.xlu0 %3358
    %3360 = vrot.lane.b32.xlu0 %v2872, 64
    %v3361 = vpop.permute.xlu0 %3360
    %3362 = vrot.lane.b32.xlu0 %v2891, 64
    %v3363 = vpop.permute.xlu0 %3362
    %3364 = vrot.lane.b32.xlu0 %v2855, 64
    %v3365 = vpop.permute.xlu0 %3364
    %3366 = vrot.lane.b32.xlu0 %v2874, 64
    %v3367 = vpop.permute.xlu0 %3366
    %3368 = vrot.lane.b32.xlu0 %v2893, 64
    %v3369 = vpop.permute.xlu0 %3368
    %3370 = vrot.lane.b32.xlu0 %v2858, 64
    %v3371 = vpop.permute.xlu0 %3370
    %3372 = vrot.lane.b32.xlu0 %v2877, 64
    %v3373 = vpop.permute.xlu0 %3372
    %3374 = vrot.lane.b32.xlu0 %v2896, 64
    %v3375 = vpop.permute.xlu0 %3374
    %3376 = vrot.lane.b32.xlu0 %v2860, 64
    %v3377 = vpop.permute.xlu0 %3376
    %3378 = vrot.lane.b32.xlu0 %v2879, 64
    %v3379 = vpop.permute.xlu0 %3378
    %3380 = vrot.lane.b32.xlu0 %v2898, 64
    %v3381 = vpop.permute.xlu0 %3380
    %v3382 = vsel %vm242, %v3359, %v3361
    %v3383 = vsel %vm242, %v3361, %v3363
    %v3384 = vsel %vm242, %v3365, %v3367
    %v3385 = vsel %vm242, %v3367, %v3369
    %v3386 = vsel %vm242, %v3371, %v3373
    %v3387 = vsel %vm242, %v3373, %v3375
    %v3388 = vsel %vm242, %v3377, %v3379
    %v3389 = vsel %vm242, %v3379, %v3381
    %v3402 = vrot.slane %v3382, 5
    %v3403 = vrot.slane %v3383, 5
    %v3404 = vrot.slane %v3363, 5
    %v3405 = vrot.slane %v3384, 5
    %v3406 = vrot.slane %v3385, 5
    %v3407 = vrot.slane %v3369, 5
    %v3408 = vrot.slane %v3386, 5
    %v3409 = vrot.slane %v3387, 5
    %v3410 = vrot.slane %v3375, 5
    %v3411 = vrot.slane %v3388, 5
    %v3412 = vrot.slane %v3389, 5
    %v3413 = vrot.slane %v3381, 5
    %vm3414 = vcmp.lt.s32.totalorder %v413, 3
    %v3415 = vsel %vm3414, %v3408, %v3411
    %v3416 = vsel %vm3414, %v3409, %v3412
    %v3417 = vsel %vm3414, %v3410, %v3413
    %v3418 = vsel %vm3414, %v3405, %v3408
    %v3419 = vsel %vm3414, %v3406, %v3409
    %v3420 = vsel %vm3414, %v3407, %v3410
    %v3421 = vsel %vm3414, %v3402, %v3405
    %v3422 = vsel %vm3414, %v3403, %v3406
    %v3423 = vsel %vm3414, %v3404, %v3407
    %v3424 = vsel %vm3414, %v3411, %v3402
    %v3425 = vsel %vm3414, %v3412, %v3403
    %v3426 = vsel %vm3414, %v3413, %v3404
    %v3427 = vadd.f32 %v3334, %v3421
    %v3428 = vadd.f32 %v3335, %v3422
    %v3429 = vadd.f32 %v3336, %v3423
    %v3430 = vadd.f32 %v3337, %v3418
    %v3431 = vadd.f32 %v3338, %v3419
    %v3432 = vadd.f32 %v3339, %v3420
    %v3433 = vadd.f32 %v3340, %v3415
    %v3434 = vadd.f32 %v3341, %v3416
    %v3435 = vadd.f32 %v3342, %v3417
    %v3436 = vadd.f32 %v3343, %v3424
    %v3437 = vadd.f32 %v3344, %v3425
    %v3438 = vadd.f32 %v3345, %v3426
    %v3439 = vrot.slane %v2910, 6
    %v3440 = vrot.slane %v2929, 6
    %v3441 = vrot.slane %v2948, 6
    %v3442 = vrot.slane %v2912, 6
    %v3443 = vrot.slane %v2931, 6
    %v3444 = vrot.slane %v2950, 6
    %v3445 = vrot.slane %v2915, 6
    %v3446 = vrot.slane %v2934, 6
    %v3447 = vrot.slane %v2953, 6
    %v3448 = vrot.slane %v2917, 6
    %v3449 = vrot.slane %v2936, 6
    %v3450 = vrot.slane %v2955, 6
    %vm3451 = vcmp.lt.s32.totalorder %v413, 2
    %v3452 = vsel %vm3451, %v3445, %v3448
    %v3453 = vsel %vm3451, %v3446, %v3449
    %v3454 = vsel %vm3451, %v3447, %v3450
    %v3455 = vsel %vm3451, %v3442, %v3445
    %v3456 = vsel %vm3451, %v3443, %v3446
    %v3457 = vsel %vm3451, %v3444, %v3447
    %v3458 = vsel %vm3451, %v3439, %v3442
    %v3459 = vsel %vm3451, %v3440, %v3443
    %v3460 = vsel %vm3451, %v3441, %v3444
    %v3461 = vsel %vm3451, %v3448, %v3439
    %v3462 = vsel %vm3451, %v3449, %v3440
    %v3463 = vsel %vm3451, %v3450, %v3441
    %v3464 = vadd.f32 %v3427, %v3458
    %v3465 = vadd.f32 %v3428, %v3459
    %v3466 = vadd.f32 %v3429, %v3460
    %v3467 = vadd.f32 %v3430, %v3455
    %v3468 = vadd.f32 %v3431, %v3456
    %v3469 = vadd.f32 %v3432, %v3457
    %v3470 = vadd.f32 %v3433, %v3452
    %v3471 = vadd.f32 %v3434, %v3453
    %v3472 = vadd.f32 %v3435, %v3454
    %v3473 = vadd.f32 %v3436, %v3461
    %v3474 = vadd.f32 %v3437, %v3462
    %v3475 = vadd.f32 %v3438, %v3463
    %3488 = vrot.lane.b32.xlu0 %v2948, 64
    %v3489 = vpop.permute.xlu0 %3488
    %3490 = vrot.lane.b32.xlu0 %v2967, 64
    %v3491 = vpop.permute.xlu0 %3490
    %3492 = vrot.lane.b32.xlu0 %v2986, 64
    %v3493 = vpop.permute.xlu0 %3492
    %3494 = vrot.lane.b32.xlu0 %v2950, 64
    %v3495 = vpop.permute.xlu0 %3494
    %3496 = vrot.lane.b32.xlu0 %v2969, 64
    %v3497 = vpop.permute.xlu0 %3496
    %3498 = vrot.lane.b32.xlu0 %v2988, 64
    %v3499 = vpop.permute.xlu0 %3498
    %3500 = vrot.lane.b32.xlu0 %v2953, 64
    %v3501 = vpop.permute.xlu0 %3500
    %3502 = vrot.lane.b32.xlu0 %v2972, 64
    %v3503 = vpop.permute.xlu0 %3502
    %3504 = vrot.lane.b32.xlu0 %v2991, 64
    %v3505 = vpop.permute.xlu0 %3504
    %3506 = vrot.lane.b32.xlu0 %v2955, 64
    %v3507 = vpop.permute.xlu0 %3506
    %3508 = vrot.lane.b32.xlu0 %v2974, 64
    %v3509 = vpop.permute.xlu0 %3508
    %3510 = vrot.lane.b32.xlu0 %v2993, 64
    %v3511 = vpop.permute.xlu0 %3510
    %v3512 = vsel %vm242, %v3489, %v3491
    %v3513 = vsel %vm242, %v3491, %v3493
    %v3514 = vsel %vm242, %v3495, %v3497
    %v3515 = vsel %vm242, %v3497, %v3499
    %v3516 = vsel %vm242, %v3501, %v3503
    %v3517 = vsel %vm242, %v3503, %v3505
    %v3518 = vsel %vm242, %v3507, %v3509
    %v3519 = vsel %vm242, %v3509, %v3511
    %v3532 = vrot.slane %v3512, 7
    %v3533 = vrot.slane %v3513, 7
    %v3534 = vrot.slane %v3493, 7
    %v3535 = vrot.slane %v3514, 7
    %v3536 = vrot.slane %v3515, 7
    %v3537 = vrot.slane %v3499, 7
    %v3538 = vrot.slane %v3516, 7
    %v3539 = vrot.slane %v3517, 7
    %v3540 = vrot.slane %v3505, 7
    %v3541 = vrot.slane %v3518, 7
    %v3542 = vrot.slane %v3519, 7
    %v3543 = vrot.slane %v3511, 7
    %vm3544 = vcmp.lt.s32.totalorder %v413, 1
    %v3545 = vsel %vm3544, %v3538, %v3541
    %v3546 = vsel %vm3544, %v3539, %v3542
    %v3547 = vsel %vm3544, %v3540, %v3543
    %v3548 = vsel %vm3544, %v3535, %v3538
    %v3549 = vsel %vm3544, %v3536, %v3539
    %v3550 = vsel %vm3544, %v3537, %v3540
    %v3551 = vsel %vm3544, %v3532, %v3535
    %v3552 = vsel %vm3544, %v3533, %v3536
    %v3553 = vsel %vm3544, %v3534, %v3537
    %v3554 = vsel %vm3544, %v3541, %v3532
    %v3555 = vsel %vm3544, %v3542, %v3533
    %v3556 = vsel %vm3544, %v3543, %v3534
    %v3557 = vadd.f32 %v3464, %v3551
    %v3558 = vadd.f32 %v3465, %v3552
    %v3559 = vadd.f32 %v3466, %v3553
    %v3560 = vadd.f32 %v3467, %v3548
    %v3561 = vadd.f32 %v3468, %v3549
    %v3562 = vadd.f32 %v3469, %v3550
    %v3563 = vadd.f32 %v3470, %v3545
    %v3564 = vadd.f32 %v3471, %v3546
    %v3565 = vadd.f32 %v3472, %v3547
    %v3566 = vadd.f32 %v3473, %v3554
    %v3567 = vadd.f32 %v3474, %v3555
    %v3568 = vadd.f32 %v3475, %v3556
    %v3569 = vadd.f32 %v3557, %v3007
    %v3570 = vadd.f32 %v3558, %v3026
    %v3571 = vadd.f32 %v3559, %v3045
    %v3572 = vadd.f32 %v3560, %v3010
    %v3573 = vadd.f32 %v3561, %v3029
    %v3574 = vadd.f32 %v3562, %v3048
    %v3575 = vadd.f32 %v3563, %v3012
    %v3576 = vadd.f32 %v3564, %v3031
    %v3577 = vadd.f32 %v3565, %v3050
    %v3578 = vadd.f32 %v3566, %v3005
    %v3579 = vadd.f32 %v3567, %v3024
    %v3580 = vadd.f32 %v3568, %v3043
    %3593 = vrot.lane.b32.xlu0 %v3043, 64
    %v3594 = vpop.permute.xlu0 %3593
    %3595 = vrot.lane.b32.xlu0 %v3062, 64
    %v3596 = vpop.permute.xlu0 %3595
    %3597 = vrot.lane.b32.xlu0 %v3081, 64
    %v3598 = vpop.permute.xlu0 %3597
    %3599 = vrot.lane.b32.xlu0 %v3045, 64
    %v3600 = vpop.permute.xlu0 %3599
    %3601 = vrot.lane.b32.xlu0 %v3064, 64
    %v3602 = vpop.permute.xlu0 %3601
    %3603 = vrot.lane.b32.xlu0 %v3083, 64
    %v3604 = vpop.permute.xlu0 %3603
    %3605 = vrot.lane.b32.xlu0 %v3048, 64
    %v3606 = vpop.permute.xlu0 %3605
    %3607 = vrot.lane.b32.xlu0 %v3067, 64
    %v3608 = vpop.permute.xlu0 %3607
    %3609 = vrot.lane.b32.xlu0 %v3086, 64
    %v3610 = vpop.permute.xlu0 %3609
    %3611 = vrot.lane.b32.xlu0 %v3050, 64
    %v3612 = vpop.permute.xlu0 %3611
    %3613 = vrot.lane.b32.xlu0 %v3069, 64
    %v3614 = vpop.permute.xlu0 %3613
    %3615 = vrot.lane.b32.xlu0 %v3088, 64
    %v3616 = vpop.permute.xlu0 %3615
    %v3617 = vsel %vm242, %v3594, %v3596
    %v3618 = vsel %vm242, %v3596, %v3598
    %v3619 = vsel %vm242, %v3600, %v3602
    %v3620 = vsel %vm242, %v3602, %v3604
    %v3621 = vsel %vm242, %v3606, %v3608
    %v3622 = vsel %vm242, %v3608, %v3610
    %v3623 = vsel %vm242, %v3612, %v3614
    %v3624 = vsel %vm242, %v3614, %v3616
    %v3637 = vrot.slane %v3617, 1
    %v3638 = vrot.slane %v3618, 1
    %v3639 = vrot.slane %v3598, 1
    %v3640 = vrot.slane %v3619, 1
    %v3641 = vrot.slane %v3620, 1
    %v3642 = vrot.slane %v3604, 1
    %v3643 = vrot.slane %v3621, 1
    %v3644 = vrot.slane %v3622, 1
    %v3645 = vrot.slane %v3610, 1
    %v3646 = vrot.slane %v3623, 1
    %v3647 = vrot.slane %v3624, 1
    %v3648 = vrot.slane %v3616, 1
    %v3649 = vsel %vm917, %v3643, %v3646
    %v3650 = vsel %vm917, %v3644, %v3647
    %v3651 = vsel %vm917, %v3645, %v3648
    %v3652 = vsel %vm917, %v3640, %v3643
    %v3653 = vsel %vm917, %v3641, %v3644
    %v3654 = vsel %vm917, %v3642, %v3645
    %v3655 = vsel %vm917, %v3637, %v3640
    %v3656 = vsel %vm917, %v3638, %v3641
    %v3657 = vsel %vm917, %v3639, %v3642
    %v3658 = vsel %vm917, %v3646, %v3637
    %v3659 = vsel %vm917, %v3647, %v3638
    %v3660 = vsel %vm917, %v3648, %v3639
    %v3661 = vadd.f32 %v3569, %v3652
    %v3662 = vadd.f32 %v3570, %v3653
    %v3663 = vadd.f32 %v3571, %v3654
    %v3664 = vadd.f32 %v3572, %v3649
    %v3665 = vadd.f32 %v3573, %v3650
    %v3666 = vadd.f32 %v3574, %v3651
    %v3667 = vadd.f32 %v3575, %v3658
    %v3668 = vadd.f32 %v3576, %v3659
    %v3669 = vadd.f32 %v3577, %v3660
    %v3670 = vadd.f32 %v3578, %v3655
    %v3671 = vadd.f32 %v3579, %v3656
    %v3672 = vadd.f32 %v3580, %v3657
    %vm3673 = vcmp.le.s32.totalorder %v461, 6
    %vm3674 = vcmp.le.s32.totalorder %v462, 6
    %vm3675 = vcmp.le.s32.totalorder %v463, 6
    %vm3676 = vcmp.le.s32.totalorder %v464, 6
    %v3677 = vsel %vm3673, 1, 0
    %v3678 = vsel %vm3674, 1, 0
    %v3679 = vsel %vm3675, 1, 0
    %v3680 = vsel %vm3676, 1, 0
    %vm3681 = vcmp.eq.s32.totalorder %v3677, 1
    %vm3682 = vcmp.eq.s32.totalorder %v3678, 1
    %vm3683 = vcmp.eq.s32.totalorder %v3679, 1
    %vm3684 = vcmp.eq.s32.totalorder %v3680, 1
    %v3685 = vsel %vm3681, %v3661, -1e+30
    %v3686 = vsel %vm3681, %v3662, -1e+30
    %v3687 = vsel %vm3681, %v3663, -1e+30
    %v3688 = vsel %vm3682, %v3664, -1e+30
    %v3689 = vsel %vm3682, %v3665, -1e+30
    %v3690 = vsel %vm3682, %v3666, -1e+30
    %v3691 = vsel %vm3683, %v3667, -1e+30
    %v3692 = vsel %vm3683, %v3668, -1e+30
    %v3693 = vsel %vm3683, %v3669, -1e+30
    %v3694 = vsel %vm3684, %v3670, -1e+30
    %v3695 = vsel %vm3684, %v3671, -1e+30
    %v3696 = vsel %vm3684, %v3672, -1e+30
    %v3697 = vmax.f32 %v3685, %v3688
    %v3698 = vrot.slane %v3697, 4
    %v3699 = vmax.f32 %v3697, %v3698
    %v3700 = vrot.slane %v3699, 2
    %v3701 = vmax.f32 %v3699, %v3700
    %v3702 = vrot.slane %v3701, 1
    %v3703 = vmax.f32 %v3701, %v3702
    %v3704 = vmax.f32 %v3686, %v3689
    %v3705 = vrot.slane %v3704, 4
    %v3706 = vmax.f32 %v3704, %v3705
    %v3707 = vrot.slane %v3706, 2
    %v3708 = vmax.f32 %v3706, %v3707
    %v3709 = vrot.slane %v3708, 1
    %v3710 = vmax.f32 %v3708, %v3709
    %v3711 = vsel %vm242, %v3687, -inf
    %v3712 = vsel %vm242, %v3690, -inf
    %v3713 = vmax.f32 %v3711, %v3712
    %v3714 = vrot.slane %v3713, 4
    %v3715 = vmax.f32 %v3713, %v3714
    %v3716 = vrot.slane %v3715, 2
    %v3717 = vmax.f32 %v3715, %v3716
    %v3718 = vrot.slane %v3717, 1
    %v3719 = vmax.f32 %v3717, %v3718
    %v3720 = vmax.f32 %v3691, %v3694
    %v3721 = vrot.slane %v3720, 4
    %v3722 = vmax.f32 %v3720, %v3721
    %v3723 = vrot.slane %v3722, 2
    %v3724 = vmax.f32 %v3722, %v3723
    %v3725 = vrot.slane %v3724, 1
    %v3726 = vmax.f32 %v3724, %v3725
    %v3727 = vmax.f32 %v3692, %v3695
    %v3728 = vrot.slane %v3727, 4
    %v3729 = vmax.f32 %v3727, %v3728
    %v3730 = vrot.slane %v3729, 2
    %v3731 = vmax.f32 %v3729, %v3730
    %v3732 = vrot.slane %v3731, 1
    %v3733 = vmax.f32 %v3731, %v3732
    %v3734 = vsel %vm242, %v3693, -inf
    %v3735 = vsel %vm242, %v3696, -inf
    %v3736 = vmax.f32 %v3734, %v3735
    %v3737 = vrot.slane %v3736, 4
    %v3738 = vmax.f32 %v3736, %v3737
    %v3739 = vrot.slane %v3738, 2
    %v3740 = vmax.f32 %v3738, %v3739
    %v3741 = vrot.slane %v3740, 1
    %v3742 = vmax.f32 %v3740, %v3741
    %v3743 = vperm.slane %v465, 4
    %v3744 = vperm.slane %v466, 4
    %v3745 = vperm.slane %v467, 4
    %v3746 = vadd.f32 %v3703, %v3743
    %v3747 = vadd.f32 %v3710, %v3744
    %v3748 = vadd.f32 %v3719, %v3745
    %v3749 = vadd.f32 %v3726, %v3743
    %v3750 = vadd.f32 %v3733, %v3744
    %v3751 = vadd.f32 %v3742, %v3745
    %v3754 = vrot.slane %v3749, 7
    %v3755 = vsel %vm121, %v3754, %v3746
    %v3757 = vmul.f32 %v394, %v3755
    %3758 = vrot.lane.b32.xlu0 %v3755, 64
    %v3759 = vpop.permute.xlu0 %3758
    %v3761 = vmul.f32 %v398, %v3759
    %v3762 = vadd.f32 %v3757, %v3761
    %v3765 = vrot.slane %v3750, 7
    %v3766 = vsel %vm121, %v3765, %v3747
    %v3768 = vmul.f32 %v402, %v3766
    %v3769 = vadd.f32 %v3762, %v3768
    %3770 = vrot.lane.b32.xlu0 %v3766, 64
    %v3771 = vpop.permute.xlu0 %3770
    %v3773 = vmul.f32 %v406, %v3771
    %v3774 = vadd.f32 %v3769, %v3773
    %v3777 = vrot.slane %v3751, 7
    %v3778 = vsel %vm121, %v3777, %v3748
    %v3780 = vmul.f32 %v410, %v3778
    %v3781 = vadd.f32 %v3774, %v3780
    %3783 = vrot.lane.b32.xlu0 %v1050, 64
    %v3784 = vpop.permute.xlu0 %3783
    %3787 = vrot.lane.b32.xlu0 %v2310, 64
    %v3788 = vpop.permute.xlu0 %3787
    %v3790 = vsel %vm242, %v689, %v3784
    %v3791 = vsel %vm242, %v1536, %v3788
    %v3792 = vsel %vm242, %v3781, 0.0
    %v3796 = vrot.slane %v3791, 6
    %v3797 = vrot.slane %v3792, 4
    %vm3798 = vcmask 1041408
    %v3799 = vsel %vm3798, %v3790, %v3796
    %vm3800 = vcmask 1043456
    %v3801 = vsel %vm3800, %v3799, %v3797
    %3803 = vst [vmem:[#allocation4] sm:$0x3f] %v3801
    %v3804 = vpack.c.bf16 %v3790, %v3790
    %v3805 = vpack.c.bf16 %v3791, %v3791
    %v3806 = vpack.c.bf16 %v3792, %v3792
    %v3807 = vld [vmem:[%s13] sm:$0xf]
    %v3808 = vld [vmem:[%s13 + $0x4] sm:$0xf]
    %v3809 = vld [vmem:[%s13 + $0x8] sm:$0xf]
    %v3810 = vld [vmem:[%s13 + $0xc] sm:$0xf]
    %v3811 = vld [vmem:[%s13 + $0x10] sm:$0xf]
    %v3812 = vld [vmem:[%s13 + $0x14] sm:$0xf]
    %v3813 = vld [vmem:[%s13 + $0x18] sm:$0xf]
    %v3814 = vld [vmem:[%s13 + $0x1c] sm:$0xf]
    %v3815 = vld [vmem:[%s13 + $0x20] sm:$0xf]
    %v3816 = vld [vmem:[%s13 + $0x24] sm:$0xf]
    %v3817 = vld [vmem:[%s13 + $0x28] sm:$0xf]
    %v3818 = vld [vmem:[%s13 + $0x2c] sm:$0xf]
    %v3819 = vld [vmem:[%s13 + $0x30] sm:$0xf]
    %v3820 = vld [vmem:[%s13 + $0x34] sm:$0xf]
    %v3821 = vld [vmem:[%s13 + $0x38] sm:$0xf]
    %v3822 = vld [vmem:[%s13 + $0x3c] sm:$0xf]
    %v3823 = vld [vmem:[%s13 + $0x40] sm:$0xf]
    %v3824 = vld [vmem:[%s13 + $0x44] sm:$0xf]
    %v3825 = vld [vmem:[%s13 + $0x48] sm:$0xf]
    %v3826 = vld [vmem:[%s13 + $0x4c] sm:$0xf]
    %v3827 = vld [vmem:[%s13 + $0x50] sm:$0xf]
    %v3828 = vld [vmem:[%s13 + $0x54] sm:$0xf]
    %v3829 = vld [vmem:[%s13 + $0x58] sm:$0xf]
    %v3830 = vld [vmem:[%s13 + $0x5c] sm:$0xf]
    %v3831 = vld [vmem:[%s13 + $0x60] sm:$0xf]
    %v3832 = vld [vmem:[%s13 + $0x64] sm:$0xf]
    %v3833 = vld [vmem:[%s13 + $0x68] sm:$0xf]
    %v3834 = vld [vmem:[%s13 + $0x6c] sm:$0xf]
    %v3835 = vld [vmem:[%s13 + $0x70] sm:$0xf]
    %v3836 = vld [vmem:[%s13 + $0x74] sm:$0xf]
    %v3837 = vld [vmem:[%s13 + $0x78] sm:$0xf]
    %v3838 = vld [vmem:[%s13 + $0x7c] sm:$0xf]
    %v3839 = vld [vmem:[%s13 + $0x80] sm:$0xf]
    %v3840 = vld [vmem:[%s13 + $0x84] sm:$0xf]
    %v3841 = vld [vmem:[%s13 + $0x88] sm:$0xf]
    %v3842 = vld [vmem:[%s13 + $0x8c] sm:$0xf]
    %v3843 = vld [vmem:[%s13 + $0x90] sm:$0xf]
    %v3844 = vld [vmem:[%s13 + $0x94] sm:$0xf]
    %v3845 = vld [vmem:[%s13 + $0x98] sm:$0xf]
    %v3846 = vld [vmem:[%s13 + $0x9c] sm:$0xf]
    %v3847 = vld [vmem:[%s13 + $0xa0] sm:$0xf]
    %v3848 = vld [vmem:[%s13 + $0xa4] sm:$0xf]
    %v3849 = vld [vmem:[%s13 + $0xa8] sm:$0xf]
    %v3850 = vld [vmem:[%s13 + $0xac] sm:$0xf]
    %v3851 = vld [vmem:[%s13 + $0xb0] sm:$0xf]
    %v3852 = vld [vmem:[%s13 + $0xb4] sm:$0xf]
    %v3853 = vld [vmem:[%s13 + $0xb8] sm:$0xf]
    %v3854 = vld [vmem:[%s13 + $0xbc] sm:$0xf]
    %v3855 = vld [vmem:[%s14] sm:$0x1]
    %v3857 = vperm.slane %v3855, 0
    %v3907 = vunpack.c.l.b16 %v3807
    %v3908 = vunpack.c.l.b16 %v3808
    %v3909 = vunpack.c.l.b16 %v3809
    %v3910 = vunpack.c.l.b16 %v3810
    %v3911 = vunpack.c.l.b16 %v3811
    %v3912 = vunpack.c.l.b16 %v3812
    %v3913 = vunpack.c.l.b16 %v3813
    %v3914 = vunpack.c.l.b16 %v3814
    %v3915 = vunpack.c.l.b16 %v3815
    %v3916 = vunpack.c.l.b16 %v3816
    %v3917 = vunpack.c.l.b16 %v3817
    %v3918 = vunpack.c.l.b16 %v3818
    %v3919 = vunpack.c.l.b16 %v3819
    %v3920 = vunpack.c.l.b16 %v3820
    %v3921 = vunpack.c.l.b16 %v3821
    %v3922 = vunpack.c.l.b16 %v3822
    %v3923 = vunpack.c.l.b16 %v3823
    %v3924 = vunpack.c.l.b16 %v3824
    %v3925 = vunpack.c.l.b16 %v3825
    %v3926 = vunpack.c.l.b16 %v3826
    %v3927 = vunpack.c.l.b16 %v3827
    %v3928 = vunpack.c.l.b16 %v3828
    %v3929 = vunpack.c.l.b16 %v3829
    %v3930 = vunpack.c.l.b16 %v3830
    %v3931 = vunpack.c.l.b16 %v3831
    %v3932 = vunpack.c.l.b16 %v3832
    %v3933 = vunpack.c.l.b16 %v3833
    %v3934 = vunpack.c.l.b16 %v3834
    %v3935 = vunpack.c.l.b16 %v3835
    %v3936 = vunpack.c.l.b16 %v3836
    %v3937 = vunpack.c.l.b16 %v3837
    %v3938 = vunpack.c.l.b16 %v3838
    %v3939 = vunpack.c.l.b16 %v3839
    %v3940 = vunpack.c.l.b16 %v3840
    %v3941 = vunpack.c.l.b16 %v3841
    %v3942 = vunpack.c.l.b16 %v3842
    %v3943 = vunpack.c.l.b16 %v3843
    %v3944 = vunpack.c.l.b16 %v3844
    %v3945 = vunpack.c.l.b16 %v3845
    %v3946 = vunpack.c.l.b16 %v3846
    %v3947 = vunpack.c.l.b16 %v3847
    %v3948 = vunpack.c.l.b16 %v3848
    %v3949 = vunpack.c.l.b16 %v3849
    %v3950 = vunpack.c.l.b16 %v3850
    %v3951 = vunpack.c.l.b16 %v3851
    %v3952 = vunpack.c.l.b16 %v3852
    %v3953 = vunpack.c.l.b16 %v3853
    %v3954 = vunpack.c.l.b16 %v3854
    %v3955 = vpack.c.b16 %v3908, %v3907
    %v3956 = vpack.c.b16 %v3910, %v3909
    %v3957 = vpack.c.b16 %v3912, %v3911
    %v3958 = vpack.c.b16 %v3914, %v3913
    %v3959 = vpack.c.b16 %v3916, %v3915
    %v3960 = vpack.c.b16 %v3918, %v3917
    %v3961 = vpack.c.b16 %v3920, %v3919
    %v3962 = vpack.c.b16 %v3922, %v3921
    %v3963 = vpack.c.b16 %v3924, %v3923
    %v3964 = vpack.c.b16 %v3926, %v3925
    %v3965 = vpack.c.b16 %v3928, %v3927
    %v3966 = vpack.c.b16 %v3930, %v3929
    %v3967 = vpack.c.b16 %v3932, %v3931
    %v3968 = vpack.c.b16 %v3934, %v3933
    %v3969 = vpack.c.b16 %v3936, %v3935
    %v3970 = vpack.c.b16 %v3938, %v3937
    %v3971 = vpack.c.b16 %v3940, %v3939
    %v3972 = vpack.c.b16 %v3942, %v3941
    %v3973 = vpack.c.b16 %v3944, %v3943
    %v3974 = vpack.c.b16 %v3946, %v3945
    %v3975 = vpack.c.b16 %v3948, %v3947
    %v3976 = vpack.c.b16 %v3950, %v3949
    %v3977 = vpack.c.b16 %v3952, %v3951
    %v3978 = vpack.c.b16 %v3954, %v3953
    %4003 = vmatpush.bf16.msra.mxu0 %v3962
    %4004 = vmatpush.bf16.msra.mxu0 %v3961
    %4005 = vmatpush.bf16.msra.mxu0 %v3960
    %4006 = vmatpush.bf16.msra.mxu0 %v3959
    %4007 = vmatpush.bf16.msra.mxu0 %v3958
    %4008 = vmatpush.bf16.msra.mxu0 %v3957
    %4009 = vmatpush.bf16.msra.mxu0 %v3956
    %4010 = vmatpush.bf16.msra.mxu0 %v3955
    %4011 = vmatmul.bf16.gmra.mxu0 %v3804
    %v4012 = vpop.f32.mrf.mxu0
    %v4013 = vadd.f32 %v3857, %v4012
    %v4014 = vpop.f32.mrf.mxu0
    %4015 = vdwg.mxu0
    %4016 = vmatpush.bf16.msra.mxu0 %v3970
    %4017 = vmatpush.bf16.msra.mxu0 %v3969
    %4018 = vmatpush.bf16.msra.mxu0 %v3968
    %4019 = vmatpush.bf16.msra.mxu0 %v3967
    %4020 = vmatpush.bf16.msra.mxu0 %v3966
    %4021 = vmatpush.bf16.msra.mxu0 %v3965
    %4022 = vmatpush.bf16.msra.mxu0 %v3964
    %4023 = vmatpush.bf16.msra.mxu0 %v3963
    %4024 = vmatmul.bf16.gmra.mxu0 %v3805
    %v4025 = vpop.f32.mrf.mxu0
    %v4026 = vadd.f32 %v4013, %v4025
    %v4027 = vpop.f32.mrf.mxu0
    %4028 = vdwg.mxu0
    %4029 = vmatpush.bf16.msra.mxu0 %v3978
    %4030 = vmatpush.bf16.msra.mxu0 %v3977
    %4031 = vmatpush.bf16.msra.mxu0 %v3976
    %4032 = vmatpush.bf16.msra.mxu0 %v3975
    %4033 = vmatpush.bf16.msra.mxu0 %v3974
    %4034 = vmatpush.bf16.msra.mxu0 %v3973
    %4035 = vmatpush.bf16.msra.mxu0 %v3972
    %4036 = vmatpush.bf16.msra.mxu0 %v3971
    %4037 = vmatmul.bf16.gmra.mxu0 %v3806
    %v4038 = vpop.f32.mrf.mxu0
    %v4039 = vadd.f32 %v4026, %v4038
    %v4040 = vpop.f32.mrf.mxu0
    %4041 = vdwg.mxu0
    %v4042 = vmax.f32 %v4039, 0.0
    %v4043 = vpack.c.bf16 %v4042, %v4042
    %v4044 = vld [vmem:[%s15] sm:$0xf]
    %v4045 = vld [vmem:[%s15 + $0x4] sm:$0xf]
    %v4046 = vld [vmem:[%s15 + $0x8] sm:$0xf]
    %v4047 = vld [vmem:[%s15 + $0xc] sm:$0xf]
    %v4048 = vld [vmem:[#allocation3] sm:$0x1]
    %v4050 = vperm.slane %v4048, 0
    %v4056 = vunpack.c.l.b16 %v4044
    %v4057 = vunpack.c.l.b16 %v4045
    %v4058 = vunpack.c.l.b16 %v4046
    %v4059 = vunpack.c.l.b16 %v4047
    %v4060 = vpack.c.b16 %v4057, %v4056
    %v4061 = vpack.c.b16 %v4059, %v4058
    %v4065 = vsel %vm82, %v4043, 0
    %4067 = vmatpush.bf16.msra.mxu0 0
    %4068 = vmatpush.bf16.msra.mxu0 0
    %4069 = vmatpush.bf16.msra.mxu0 0
    %4070 = vmatpush.bf16.msra.mxu0 0
    %4071 = vmatpush.bf16.msra.mxu0 0
    %4072 = vmatpush.bf16.msra.mxu0 0
    %4073 = vmatpush.bf16.msra.mxu0 %v4061
    %4074 = vmatpush.bf16.msra.mxu0 %v4060
    %4075 = vmatmul.bf16.gmra.mxu0 %v4065
    %v4076 = vpop.f32.mrf.mxu0
    %v4077 = vadd.f32 %v4050, %v4076
    %v4078 = vpop.f32.mrf.mxu0
    %4079 = vdwg.mxu0
    %v4080 = vsub.f32 0.0, %v4077
    %v4081 = vmul.f32 %v4080, 1.442695
    %v4082 = vpow.pop %v4081
    %v4083 = vadd.f32 %v4082, 1.0
    %v4084 = vrcp.pop %v4083
    %v4085 = vmul.f32 %v4083, %v4084
    %v4086 = vsub.f32 1.0, %v4085
    %v4087 = vmul.f32 %v4084, %v4086
    %v4088 = vadd.f32 %v4084, %v4087
    %vm4089 = vweird.f32 %v4083
    %vm4090 = vweird.f32 %v4084
    %vm4091 = vmor %vm4089, %vm4090
    %v4092 = vsel %vm4091, %v4084, %v4088
    %v4093 = vand.u32 2147483647, %v4083
    %vm4094 = vcmp.eq.f32.partialorder %v4093, 8.507059e+37
    %v4095 = vand.u32 %v4083, 2147483648
    %v4096 = vor.u32 1.1754944e-38, %v4095
    %v4097 = vsel %vm4094, %v4096, %v4092
    %v4098 = vmul.f32 1.0, %v4097
    %vm4099 = vcmask 1024
    %4100 = vst.msk [vmem:[%s17] sm:$0x3] %vm4099, %v4098
    // Predicated region
    $region70: #{fast_plfnd_forward.1} parent=1 // pred_check
      _
    $region71: #{fast_plfnd_forward.1} parent=1 // pred_check_branch
      %4102 = sbr.rel (0) target = $region73
    $region72: #{fast_plfnd_forward.1} parent=1 // pred_region
      _
    $region73: #{fast_plfnd_forward.1} parent=1 // pred_fallthru
      _
    // Predicated region
    $region74: #{fast_plfnd_forward.1} parent=1 // pred_check
      _
    $region75: #{fast_plfnd_forward.1} parent=1 // pred_check_branch
      %4104 = sbr.rel (0) target = $region77
    $region76: #{fast_plfnd_forward.1} parent=1 // pred_region
      %4106 = vsyncadd [#allocation5], 0
      %s4108 = sshll.u32 [#allocation4], 4
      %s4109 = int_to_ptr.vmem [resolvable:$true] %s4108
      %s4110 = sshll.u32 %s18, 4
      %s4111 = int_to_ptr.hbm [resolvable:$true] %s4110
      %4113 = dma.vmem_to_hbm [thread:$0]  %s4109, 96, %s4111, [#allocation5]
    $region77: #{fast_plfnd_forward.1} parent=1 // pred_fallthru
      _
    // Predicated region
    $region78: #{fast_plfnd_forward.1} parent=1 // pred_check
      _
    $region79: #{fast_plfnd_forward.1} parent=1 // pred_check_branch
      %4115 = sbr.rel (0) target = $region81
    $region80: #{fast_plfnd_forward.1} parent=1 // pred_region
      _
    $region81: #{fast_plfnd_forward.1} parent=1 // pred_fallthru
      _
    // Predicated region
    $region82: #{fast_plfnd_forward.1} parent=1 // pred_check
      _
    $region83: #{fast_plfnd_forward.1} parent=1 // pred_check_branch
      %4117 = sbr.rel (0) target = $region85
    $region84: #{fast_plfnd_forward.1} parent=1 // pred_region
      %4119 = dma.done [#allocation5], 96
    $region85: #{fast_plfnd_forward.1} parent=1 // pred_fallthru
      _
    %4120 = vsyncpa [#allocation5], 1

</llo_original>
